<compile_context>
chip_gen: v5e
topology: v5e:2x2
jax: 0.10.0
libtpu: 0.0.40
codegen_flags: <defaults>
</compile_context>

<pallas_src>
import jax
import jax.numpy as jnp
from jax.experimental import pallas as pl
from jax.experimental.pallas import tpu as pltpu


def _round_up(x, m):
    return (x + m - 1) // m * m


# ---------------------------------------------------------------------------
# Kernels
# ---------------------------------------------------------------------------

def _conv_relu_pool_kernel(x_ref, w_ref, b_ref, o_ref):
    # x_ref: (4, TN, K) bf16   4 = 2x2 pool-window positions, TN pixels, K=9*Cin
    # w_ref: (K, Cout) bf16, b_ref: (1, Cout) f32, o_ref: (TN, Cout) bf16
    p4, tn, k = x_ref.shape
    x = x_ref[...].reshape(p4 * tn, k)           # layout-trivial: TN % 16 == 0
    z = jnp.dot(x, w_ref[...], preferred_element_type=jnp.float32)  # (4*TN, Cout)
    # max over the 4 pool-window positions (static contiguous row slices).
    m = jnp.maximum(jnp.maximum(z[0 * tn:1 * tn], z[1 * tn:2 * tn]),
                    jnp.maximum(z[2 * tn:3 * tn], z[3 * tn:4 * tn]))
    m = jnp.maximum(m + b_ref[...], 0.0)         # bias + ReLU after the max
    o_ref[...] = m.astype(o_ref.dtype)


def _mlp_kernel(x_ref, w1_ref, b1_ref, w2_ref, b2_ref, o_ref):
    # Fused fc1 + ReLU + fc2.
    h = jnp.dot(x_ref[...], w1_ref[...], preferred_element_type=jnp.float32)
    h = jnp.maximum(h + b1_ref[...], 0.0)
    z = jnp.dot(h.astype(w2_ref.dtype), w2_ref[...],
                preferred_element_type=jnp.float32)
    o_ref[...] = z + b2_ref[...]


# ---------------------------------------------------------------------------
# pallas_call wrappers
# ---------------------------------------------------------------------------

_PARALLEL = pltpu.CompilerParams(dimension_semantics=("parallel",))


def conv_relu_pool(patches, w, b, n_valid):
    """patches: (4, N, K) bf16, w: (K, Cout) bf16, b: (1, Cout) f32
    -> (n_valid, Cout) bf16, fused conv-matmul + bias + ReLU + 2x2 max-pool."""
    _, n, k = patches.shape
    cout = w.shape[1]
    tn = min(512, _round_up(n, 16))              # row tile, multiple of 16
    npad = _round_up(n, tn)
    if npad != n:
        patches = jnp.pad(patches, ((0, 0), (0, npad - n), (0, 0)))
    out = pl.pallas_call(
        _conv_relu_pool_kernel,
        out_shape=jax.ShapeDtypeStruct((npad, cout), jnp.bfloat16),
        grid=(npad // tn,),
        in_specs=[
            pl.BlockSpec((4, tn, k), lambda i: (0, i, 0)),   # pixel tiles
            pl.BlockSpec((k, cout), lambda i: (0, 0)),       # weights resident
            pl.BlockSpec((1, cout), lambda i: (0, 0)),       # bias resident
        ],
        out_specs=pl.BlockSpec((tn, cout), lambda i: (i, 0)),
        compiler_params=_PARALLEL,
    )(patches, w, b)
    return out[:n_valid] if npad != n_valid else out


def mlp(x, w1, b1, w2, b2):
    """x: (B, K) bf16 -> fc2(relu(fc1(x))) logits, (B, n_out) f32."""
    bsz, k = x.shape
    nh = w1.shape[1]
    nout = w2.shape[1]
    if bsz <= 512:
        tm, bpad = bsz, bsz
    else:
        tm = 256
        bpad = _round_up(bsz, tm)
        x = jnp.pad(x, ((0, bpad - bsz), (0, 0)))
    out = pl.pallas_call(
        _mlp_kernel,
        out_shape=jax.ShapeDtypeStruct((bpad, nout), jnp.float32),
        grid=(bpad // tm,),
        in_specs=[
            pl.BlockSpec((tm, k), lambda i: (i, 0)),
            pl.BlockSpec((k, nh), lambda i: (0, 0)),
            pl.BlockSpec((1, nh), lambda i: (0, 0)),
            pl.BlockSpec((nh, nout), lambda i: (0, 0)),
            pl.BlockSpec((1, nout), lambda i: (0, 0)),
        ],
        out_specs=pl.BlockSpec((tm, nout), lambda i: (i, 0)),
        compiler_params=_PARALLEL,
    )(x, w1, b1, w2, b2)
    return out[:bsz] if bpad != bsz else out


# ---------------------------------------------------------------------------
# Data prep (XLA glue): im2col with the 4 pool-window positions as leading axis
# ---------------------------------------------------------------------------

def _pool_patches(x_nhwc):
    """(B,H,W,C) -> (4, B*(H//2)*(W//2), 9*C) patches for a 3x3 pad=1 conv
    followed by a 2x2 stride-2 max-pool (leading axis = pool positions)."""
    b, h, w, c = x_nhwc.shape
    xp = jnp.pad(x_nhwc, ((0, 0), (1, 1), (1, 1), (0, 0)))
    cols = [xp[:, kh:kh + h, kw:kw + w, :] for kh in range(3) for kw in range(3)]
    patches = jnp.concatenate(cols, axis=-1)                 # (B, H, W, 9C)
    ho, wo = h // 2, w // 2
    pos = [patches[:, dh::2, dw::2, :] for dh in range(2) for dw in range(2)]
    stacked = jnp.stack(pos, axis=0)                         # (4, B, Ho, Wo, 9C)
    return stacked.reshape(4, b * ho * wo, 9 * c), (b, ho, wo)


# ---------------------------------------------------------------------------
# Parameters
# ---------------------------------------------------------------------------

def init_params(key):
    ks = jax.random.split(key, 8)

    def t(k, shape, scale):
        return scale * jax.random.normal(k, shape, jnp.float32)

    # Torch-layout parameters, matching the PyTorch module's __init__.
    return dict(
        conv1_w=t(ks[0], (32, 1, 3, 3), 0.2),     # (Cout, Cin, kh, kw)
        conv1_b=t(ks[1], (32,), 0.1),
        conv2_w=t(ks[2], (64, 32, 3, 3), 0.05),
        conv2_b=t(ks[3], (64,), 0.1),
        fc1_w=t(ks[4], (128, 64 * 7 * 7), 0.02),  # (out, in), in = c*49 + pix
        fc1_b=t(ks[5], (128,), 0.1),
        fc2_w=t(ks[6], (10, 128), 0.05),
        fc2_b=t(ks[7], (10,), 0.1),
    )


def prepare_params(params):
    """One-time weight prep: layout transforms + bf16 casts hoisted out of the
    per-call forward.  The torch NCHW flatten is folded into fc1's weight."""
    bf16, f32 = jnp.bfloat16, jnp.float32
    # conv weights: (Cout,Cin,kh,kw) -> (kh,kw,Cin,Cout) -> (9*Cin, Cout)
    c1w = jnp.transpose(params["conv1_w"], (2, 3, 1, 0)).reshape(9 * 1, 32)
    c2w = jnp.transpose(params["conv2_w"], (2, 3, 1, 0)).reshape(9 * 32, 64)
    # fc1: torch flat index = c*49 + p ; our NHWC-flat activation index = p*64 + c.
    f1 = params["fc1_w"].reshape(128, 64, 49)            # (out, c, p)
    f1 = jnp.transpose(f1, (2, 1, 0)).reshape(64 * 49, 128)  # row = p*64 + c
    return dict(
        conv1_w=c1w.astype(bf16), conv1_b=params["conv1_b"].reshape(1, 32).astype(f32),
        conv2_w=c2w.astype(bf16), conv2_b=params["conv2_b"].reshape(1, 64).astype(f32),
        fc1_w=f1.astype(bf16), fc1_b=params["fc1_b"].reshape(1, 128).astype(f32),
        fc2_w=params["fc2_w"].T.astype(bf16), fc2_b=params["fc2_b"].reshape(1, 10).astype(f32),
    )


# ---------------------------------------------------------------------------
# Forward
# ---------------------------------------------------------------------------

def cnn_forward(prepped, x_nchw):
    """Pallas implementation of CNN.forward. x_nchw: (B, 1, 28, 28) float32."""
    b = x_nchw.shape[0]
    x = jnp.transpose(x_nchw, (0, 2, 3, 1)).astype(jnp.bfloat16)   # NHWC bf16

    # conv1(1->32) + ReLU + maxpool(2,2)
    p1, (bb, ho, wo) = _pool_patches(x)                            # (4, B*196, 9)
    y1 = conv_relu_pool(p1, prepped["conv1_w"], prepped["conv1_b"], bb * ho * wo)
    y1 = y1.reshape(bb, ho, wo, 32)                                # (B,14,14,32)

    # conv2(32->64) + ReLU + maxpool(2,2)
    p2, (bb, ho, wo) = _pool_patches(y1)                           # (4, B*49, 288)
    y2 = conv_relu_pool(p2, prepped["conv2_w"], prepped["conv2_b"], bb * ho * wo)

    # NHWC-flat (p*64 + c); the NCHW flatten is folded into fc1_w at prep time.
    flat = y2.reshape(b, 7 * 7 * 64)

    # fc1 + ReLU + fc2 (single fused kernel), logits in f32.
    return mlp(flat, prepped["fc1_w"], prepped["fc1_b"],
               prepped["fc2_w"], prepped["fc2_b"])


if __name__ == "__main__":
    key = jax.random.PRNGKey(0)
    pkey, xkey = jax.random.split(key)
    params = init_params(pkey)
    prepped = prepare_params(params)
    # fc1's 64*7*7 input forces a 28x28 spatial input (MNIST-style).
    x = jax.random.normal(xkey, (2, 1, 28, 28), jnp.float32)
    fwd = jax.jit(cnn_forward)
    out = jax.block_until_ready(fwd(prepped, x))
    assert out.shape == (2, 10) and out.dtype == jnp.float32
    print("KERNEL_OK")
</pallas_src>

<mosaic_0001>
module attributes {stable_mosaic.version = 11 : i64} {
  func.func @_conv_relu_pool_kernel(%arg0: i32, %arg1: memref<4x400x9xbf16, #tpu.memory_space<vmem>>, %arg2: memref<9x32xbf16, #tpu.memory_space<vmem>>, %arg3: memref<1x32xf32, #tpu.memory_space<vmem>>, %arg4: memref<400x32xbf16, #tpu.memory_space<vmem>>) attributes {dimension_semantics = [#tpu.dimension_semantics<parallel>], iteration_bounds = array<i64: 1>, scalar_prefetch = 0 : i64, scratch_operands = 0 : i64, tpu.core_type = #tpu.core_type<tc>, window_params = [{transform_indices = @transform_0, window_bounds = array<i64: 4, 400, 9>}, {pipeline_mode = #tpu.pipeline_mode<synchronous>, transform_indices = @transform_1, window_bounds = array<i64: 9, 32>}, {pipeline_mode = #tpu.pipeline_mode<synchronous>, transform_indices = @transform_2, window_bounds = array<i64: 1, 32>}, {transform_indices = @transform_3, window_bounds = array<i64: 400, 32>}]} {
    %c0 = arith.constant 0 : index
    %c0_0 = arith.constant 0 : index
    %c0_1 = arith.constant 0 : index
    %0 = vector.load %arg1[%c0, %c0_0, %c0_1] : memref<4x400x9xbf16, #tpu.memory_space<vmem>>, vector<4x400x9xbf16>
    %1 = vector.shape_cast %0 : vector<4x400x9xbf16> to vector<1600x9xbf16>
    %c0_2 = arith.constant 0 : index
    %c0_3 = arith.constant 0 : index
    %2 = vector.load %arg2[%c0_2, %c0_3] : memref<9x32xbf16, #tpu.memory_space<vmem>>, vector<9x32xbf16>
    %cst = arith.constant dense<0.000000e+00> : vector<1600x32xf32>
    %3 = tpu.matmul %1, %2, %cst {dimension_numbers = #tpu.dot_dimension_numbers<[1], [0], [0], [1], [0, 0, 1, 1], [], []>} : vector<1600x9xbf16>, vector<9x32xbf16>, vector<1600x32xf32> -> vector<1600x32xf32>
    %4 = vector.extract_strided_slice %3 {offsets = [0, 0], sizes = [400, 32], strides = [1, 1]} : vector<1600x32xf32> to vector<400x32xf32>
    %5 = vector.extract_strided_slice %3 {offsets = [400, 0], sizes = [400, 32], strides = [1, 1]} : vector<1600x32xf32> to vector<400x32xf32>
    %6 = arith.maximumf %4, %5 : vector<400x32xf32>
    %7 = vector.extract_strided_slice %3 {offsets = [800, 0], sizes = [400, 32], strides = [1, 1]} : vector<1600x32xf32> to vector<400x32xf32>
    %8 = vector.extract_strided_slice %3 {offsets = [1200, 0], sizes = [400, 32], strides = [1, 1]} : vector<1600x32xf32> to vector<400x32xf32>
    %9 = arith.maximumf %7, %8 : vector<400x32xf32>
    %10 = arith.maximumf %6, %9 : vector<400x32xf32>
    %c0_4 = arith.constant 0 : index
    %c0_5 = arith.constant 0 : index
    %11 = vector.load %arg3[%c0_4, %c0_5] : memref<1x32xf32, #tpu.memory_space<vmem>>, vector<1x32xf32>
    %12 = vector.broadcast %11 : vector<1x32xf32> to vector<400x32xf32>
    %13 = arith.addf %10, %12 : vector<400x32xf32>
    %cst_6 = arith.constant 0.000000e+00 : f32
    %14 = vector.broadcast %cst_6 : f32 to vector<400x32xf32>
    %15 = arith.maximumf %13, %14 : vector<400x32xf32>
    %16 = arith.truncf %15 : vector<400x32xf32> to vector<400x32xbf16>
    %c0_7 = arith.constant 0 : index
    %c0_8 = arith.constant 0 : index
    %17 = vector.load %arg4[%c0_7, %c0_8] : memref<400x32xbf16, #tpu.memory_space<vmem>>, vector<400x32xbf16>
    tpu.vector_store %arg4[%c0_7, %c0_8], %16 {strides = array<i32>} : memref<400x32xbf16, #tpu.memory_space<vmem>>, vector<400x32xbf16>,
    return
  }
  func.func @transform_0(%arg0: i32) -> (i32, i32, i32) {
    %c0_i32 = arith.constant 0 : i32
    %c0_i32_0 = arith.constant 0 : i32
    %c0_i32_1 = arith.constant 0 : i32
    return %c0_i32, %arg0, %c0_i32_0 : i32, i32, i32
  }
  func.func @transform_1(%arg0: i32) -> (i32, i32) {
    %c0_i32 = arith.constant 0 : i32
    %c0_i32_0 = arith.constant 0 : i32
    %c0_i32_1 = arith.constant 0 : i32
    return %c0_i32, %c0_i32_0 : i32, i32
  }
  func.func @transform_2(%arg0: i32) -> (i32, i32) {
    %c0_i32 = arith.constant 0 : i32
    %c0_i32_0 = arith.constant 0 : i32
    %c0_i32_1 = arith.constant 0 : i32
    return %c0_i32, %c0_i32_0 : i32, i32
  }
  func.func @transform_3(%arg0: i32) -> (i32, i32) {
    %c0_i32 = arith.constant 0 : i32
    %c0_i32_0 = arith.constant 0 : i32
    return %arg0, %c0_i32 : i32, i32
  }
}

module attributes {stable_mosaic.version = 11 : i64} {
  func.func @_conv_relu_pool_kernel(%arg0: i32, %arg1: memref<4x112x288xbf16, #tpu.memory_space<vmem>>, %arg2: memref<288x64xbf16, #tpu.memory_space<vmem>>, %arg3: memref<1x64xf32, #tpu.memory_space<vmem>>, %arg4: memref<112x64xbf16, #tpu.memory_space<vmem>>) attributes {dimension_semantics = [#tpu.dimension_semantics<parallel>], iteration_bounds = array<i64: 1>, scalar_prefetch = 0 : i64, scratch_operands = 0 : i64, tpu.core_type = #tpu.core_type<tc>, window_params = [{transform_indices = @transform_0, window_bounds = array<i64: 4, 112, 288>}, {pipeline_mode = #tpu.pipeline_mode<synchronous>, transform_indices = @transform_1, window_bounds = array<i64: 288, 64>}, {pipeline_mode = #tpu.pipeline_mode<synchronous>, transform_indices = @transform_2, window_bounds = array<i64: 1, 64>}, {transform_indices = @transform_3, window_bounds = array<i64: 112, 64>}]} {
    %c0 = arith.constant 0 : index
    %c0_0 = arith.constant 0 : index
    %c0_1 = arith.constant 0 : index
    %0 = vector.load %arg1[%c0, %c0_0, %c0_1] : memref<4x112x288xbf16, #tpu.memory_space<vmem>>, vector<4x112x288xbf16>
    %1 = vector.shape_cast %0 : vector<4x112x288xbf16> to vector<448x288xbf16>
    %c0_2 = arith.constant 0 : index
    %c0_3 = arith.constant 0 : index
    %2 = vector.load %arg2[%c0_2, %c0_3] : memref<288x64xbf16, #tpu.memory_space<vmem>>, vector<288x64xbf16>
    %cst = arith.constant dense<0.000000e+00> : vector<448x64xf32>
    %3 = tpu.matmul %1, %2, %cst {dimension_numbers = #tpu.dot_dimension_numbers<[1], [0], [0], [1], [0, 0, 1, 1], [], []>} : vector<448x288xbf16>, vector<288x64xbf16>, vector<448x64xf32> -> vector<448x64xf32>
    %4 = vector.extract_strided_slice %3 {offsets = [0, 0], sizes = [112, 64], strides = [1, 1]} : vector<448x64xf32> to vector<112x64xf32>
    %5 = vector.extract_strided_slice %3 {offsets = [112, 0], sizes = [112, 64], strides = [1, 1]} : vector<448x64xf32> to vector<112x64xf32>
    %6 = arith.maximumf %4, %5 : vector<112x64xf32>
    %7 = vector.extract_strided_slice %3 {offsets = [224, 0], sizes = [112, 64], strides = [1, 1]} : vector<448x64xf32> to vector<112x64xf32>
    %8 = vector.extract_strided_slice %3 {offsets = [336, 0], sizes = [112, 64], strides = [1, 1]} : vector<448x64xf32> to vector<112x64xf32>
    %9 = arith.maximumf %7, %8 : vector<112x64xf32>
    %10 = arith.maximumf %6, %9 : vector<112x64xf32>
    %c0_4 = arith.constant 0 : index
    %c0_5 = arith.constant 0 : index
    %11 = vector.load %arg3[%c0_4, %c0_5] : memref<1x64xf32, #tpu.memory_space<vmem>>, vector<1x64xf32>
    %12 = vector.broadcast %11 : vector<1x64xf32> to vector<112x64xf32>
    %13 = arith.addf %10, %12 : vector<112x64xf32>
    %cst_6 = arith.constant 0.000000e+00 : f32
    %14 = vector.broadcast %cst_6 : f32 to vector<112x64xf32>
    %15 = arith.maximumf %13, %14 : vector<112x64xf32>
    %16 = arith.truncf %15 : vector<112x64xf32> to vector<112x64xbf16>
    %c0_7 = arith.constant 0 : index
    %c0_8 = arith.constant 0 : index
    %17 = vector.load %arg4[%c0_7, %c0_8] : memref<112x64xbf16, #tpu.memory_space<vmem>>, vector<112x64xbf16>
    tpu.vector_store %arg4[%c0_7, %c0_8], %16 {strides = array<i32>} : memref<112x64xbf16, #tpu.memory_space<vmem>>, vector<112x64xbf16>,
    return
  }
  func.func @transform_0(%arg0: i32) -> (i32, i32, i32) {
    %c0_i32 = arith.constant 0 : i32
    %c0_i32_0 = arith.constant 0 : i32
    %c0_i32_1 = arith.constant 0 : i32
    return %c0_i32, %arg0, %c0_i32_0 : i32, i32, i32
  }
  func.func @transform_1(%arg0: i32) -> (i32, i32) {
    %c0_i32 = arith.constant 0 : i32
    %c0_i32_0 = arith.constant 0 : i32
    %c0_i32_1 = arith.constant 0 : i32
    return %c0_i32, %c0_i32_0 : i32, i32
  }
  func.func @transform_2(%arg0: i32) -> (i32, i32) {
    %c0_i32 = arith.constant 0 : i32
    %c0_i32_0 = arith.constant 0 : i32
    %c0_i32_1 = arith.constant 0 : i32
    return %c0_i32, %c0_i32_0 : i32, i32
  }
  func.func @transform_3(%arg0: i32) -> (i32, i32) {
    %c0_i32 = arith.constant 0 : i32
    %c0_i32_0 = arith.constant 0 : i32
    return %arg0, %c0_i32 : i32, i32
  }
}

module attributes {stable_mosaic.version = 11 : i64} {
  func.func @_mlp_kernel(%arg0: i32, %arg1: memref<2x3136xbf16, #tpu.memory_space<vmem>>, %arg2: memref<3136x128xbf16, #tpu.memory_space<vmem>>, %arg3: memref<1x128xf32, #tpu.memory_space<vmem>>, %arg4: memref<128x10xbf16, #tpu.memory_space<vmem>>, %arg5: memref<1x10xf32, #tpu.memory_space<vmem>>, %arg6: memref<2x10xf32, #tpu.memory_space<vmem>>) attributes {dimension_semantics = [#tpu.dimension_semantics<parallel>], iteration_bounds = array<i64: 1>, scalar_prefetch = 0 : i64, scratch_operands = 0 : i64, tpu.core_type = #tpu.core_type<tc>, window_params = [{transform_indices = @transform_0, window_bounds = array<i64: 2, 3136>}, {pipeline_mode = #tpu.pipeline_mode<synchronous>, transform_indices = @transform_1, window_bounds = array<i64: 3136, 128>}, {pipeline_mode = #tpu.pipeline_mode<synchronous>, transform_indices = @transform_2, window_bounds = array<i64: 1, 128>}, {pipeline_mode = #tpu.pipeline_mode<synchronous>, transform_indices = @transform_3, window_bounds = array<i64: 128, 10>}, {pipeline_mode = #tpu.pipeline_mode<synchronous>, transform_indices = @transform_4, window_bounds = array<i64: 1, 10>}, {transform_indices = @transform_5, window_bounds = array<i64: 2, 10>}]} {
    %c0 = arith.constant 0 : index
    %c0_0 = arith.constant 0 : index
    %0 = vector.load %arg1[%c0, %c0_0] : memref<2x3136xbf16, #tpu.memory_space<vmem>>, vector<2x3136xbf16>
    %c0_1 = arith.constant 0 : index
    %c0_2 = arith.constant 0 : index
    %1 = vector.load %arg2[%c0_1, %c0_2] : memref<3136x128xbf16, #tpu.memory_space<vmem>>, vector<3136x128xbf16>
    %cst = arith.constant dense<0.000000e+00> : vector<2x128xf32>
    %2 = tpu.matmul %0, %1, %cst {dimension_numbers = #tpu.dot_dimension_numbers<[1], [0], [0], [1], [0, 0, 1, 1], [], []>} : vector<2x3136xbf16>, vector<3136x128xbf16>, vector<2x128xf32> -> vector<2x128xf32>
    %c0_3 = arith.constant 0 : index
    %c0_4 = arith.constant 0 : index
    %3 = vector.load %arg3[%c0_3, %c0_4] : memref<1x128xf32, #tpu.memory_space<vmem>>, vector<1x128xf32>
    %4 = vector.broadcast %3 : vector<1x128xf32> to vector<2x128xf32>
    %5 = arith.addf %2, %4 : vector<2x128xf32>
    %cst_5 = arith.constant 0.000000e+00 : f32
    %6 = vector.broadcast %cst_5 : f32 to vector<2x128xf32>
    %7 = arith.maximumf %5, %6 : vector<2x128xf32>
    %8 = arith.truncf %7 : vector<2x128xf32> to vector<2x128xbf16>
    %c0_6 = arith.constant 0 : index
    %c0_7 = arith.constant 0 : index
    %9 = vector.load %arg4[%c0_6, %c0_7] : memref<128x10xbf16, #tpu.memory_space<vmem>>, vector<128x10xbf16>
    %cst_8 = arith.constant dense<0.000000e+00> : vector<2x10xf32>
    %10 = tpu.matmul %8, %9, %cst_8 {dimension_numbers = #tpu.dot_dimension_numbers<[1], [0], [0], [1], [0, 0, 1, 1], [], []>} : vector<2x128xbf16>, vector<128x10xbf16>, vector<2x10xf32> -> vector<2x10xf32>
    %c0_9 = arith.constant 0 : index
    %c0_10 = arith.constant 0 : index
    %11 = vector.load %arg5[%c0_9, %c0_10] : memref<1x10xf32, #tpu.memory_space<vmem>>, vector<1x10xf32>
    %12 = vector.broadcast %11 : vector<1x10xf32> to vector<2x10xf32>
    %13 = arith.addf %10, %12 : vector<2x10xf32>
    %c0_11 = arith.constant 0 : index
    %c0_12 = arith.constant 0 : index
    %14 = vector.load %arg6[%c0_11, %c0_12] : memref<2x10xf32, #tpu.memory_space<vmem>>, vector<2x10xf32>
    tpu.vector_store %arg6[%c0_11, %c0_12], %13 {strides = array<i32>} : memref<2x10xf32, #tpu.memory_space<vmem>>, vector<2x10xf32>,
    return
  }
  func.func @transform_0(%arg0: i32) -> (i32, i32) {
    %c0_i32 = arith.constant 0 : i32
    %c0_i32_0 = arith.constant 0 : i32
    return %arg0, %c0_i32 : i32, i32
  }
  func.func @transform_1(%arg0: i32) -> (i32, i32) {
    %c0_i32 = arith.constant 0 : i32
    %c0_i32_0 = arith.constant 0 : i32
    %c0_i32_1 = arith.constant 0 : i32
    return %c0_i32, %c0_i32_0 : i32, i32
  }
  func.func @transform_2(%arg0: i32) -> (i32, i32) {
    %c0_i32 = arith.constant 0 : i32
    %c0_i32_0 = arith.constant 0 : i32
    %c0_i32_1 = arith.constant 0 : i32
    return %c0_i32, %c0_i32_0 : i32, i32
  }
  func.func @transform_3(%arg0: i32) -> (i32, i32) {
    %c0_i32 = arith.constant 0 : i32
    %c0_i32_0 = arith.constant 0 : i32
    %c0_i32_1 = arith.constant 0 : i32
    return %c0_i32, %c0_i32_0 : i32, i32
  }
  func.func @transform_4(%arg0: i32) -> (i32, i32) {
    %c0_i32 = arith.constant 0 : i32
    %c0_i32_0 = arith.constant 0 : i32
    %c0_i32_1 = arith.constant 0 : i32
    return %c0_i32, %c0_i32_0 : i32, i32
  }
  func.func @transform_5(%arg0: i32) -> (i32, i32) {
    %c0_i32 = arith.constant 0 : i32
    %c0_i32_0 = arith.constant 0 : i32
    return %arg0, %c0_i32 : i32, i32
  }
}

</mosaic_0001>

<llo_original>
// kernel: cnn_forward.3
$region0: #{cnn_forward.3}
  #allocation0 [shape = 'u32[]', space=smem, size = 0x4, offset = 0x4, fixed_abs, tag = 'smem constant byte address 0x4 - core index']
  #allocation1 [shape = 'u32[72,128]{1,0:T(1,128)}', space=vmem, size = 0x9000, scoped, tag = 'internal scratch']
  %s0 = inlined_call_operand.vmem [shape: bf16[4,400,9], index: 0, kind: input, shape index: {}]
  %s1 = inlined_call_operand.vmem [shape: bf16[9,32], index: 1, kind: input, shape index: {}]
  %s2 = inlined_call_operand.vmem [shape: f32[1,32], index: 2, kind: input, shape index: {}]
  %s3 = inlined_call_operand.vmem [shape: bf16[400,32], index: 3, kind: output, shape index: {}]
  %s4 = sld [smem:[#allocation0]]
  $region22: #{cnn_forward.3} parent=0
    _
  %s6 = ssub.s32 1, %s4
  %s7 = scalar_select 0, %s6, %s4
  // Predicated region
  $region2: #{cnn_forward.3} parent=0 // pred_check
    _
  $region3: #{cnn_forward.3} parent=0 // pred_check_branch
    %9 = sbr.rel (0) target = $region5
  $region4: #{cnn_forward.3} parent=0 // pred_region
    _
  $region5: #{cnn_forward.3} parent=0 // pred_fallthru
    _
  // Predicated region
  $region6: #{cnn_forward.3} parent=0 // pred_check
    _
  $region7: #{cnn_forward.3} parent=0 // pred_check_branch
    %11 = sbr.rel (0) target = $region9
  $region8: #{cnn_forward.3} parent=0 // pred_region
    _
  $region9: #{cnn_forward.3} parent=0 // pred_fallthru
    _
  // Predicated region
  $region10: #{cnn_forward.3} parent=0 // pred_check
    _
  $region11: #{cnn_forward.3} parent=0 // pred_check_branch
    %13 = sbr.rel (0) target = $region13
  $region12: #{cnn_forward.3} parent=0 // pred_region
    _
  $region13: #{cnn_forward.3} parent=0 // pred_fallthru
    _
  %v15 = vld [vmem:[%s0] sm:$0xf]
  %v16 = vld [vmem:[%s0 + $0x4] sm:$0xf]
  %v17 = vld [vmem:[%s0 + $0x8] sm:$0xf]
  %v18 = vld [vmem:[%s0 + $0xc] sm:$0xf]
  %v19 = vld [vmem:[%s0 + $0x10] sm:$0xf]
  %v20 = vld [vmem:[%s0 + $0x14] sm:$0xf]
  %v21 = vld [vmem:[%s0 + $0x18] sm:$0xf]
  %v22 = vld [vmem:[%s0 + $0x1c] sm:$0xf]
  %v23 = vld [vmem:[%s0 + $0x20] sm:$0xf]
  %v24 = vld [vmem:[%s0 + $0x24] sm:$0xf]
  %v25 = vld [vmem:[%s0 + $0x28] sm:$0xf]
  %v26 = vld [vmem:[%s0 + $0x2c] sm:$0xf]
  %v27 = vld [vmem:[%s0 + $0x30] sm:$0xf]
  %v28 = vld [vmem:[%s0 + $0x34] sm:$0xf]
  %v29 = vld [vmem:[%s0 + $0x38] sm:$0xf]
  %v30 = vld [vmem:[%s0 + $0x3c] sm:$0xf]
  %v31 = vld [vmem:[%s0 + $0x40] sm:$0xf]
  %v32 = vld [vmem:[%s0 + $0x44] sm:$0xf]
  %v33 = vld [vmem:[%s0 + $0x48] sm:$0xf]
  %v34 = vld [vmem:[%s0 + $0x4c] sm:$0xf]
  %v35 = vld [vmem:[%s0 + $0x50] sm:$0xf]
  %v36 = vld [vmem:[%s0 + $0x54] sm:$0xf]
  %v37 = vld [vmem:[%s0 + $0x58] sm:$0xf]
  %v38 = vld [vmem:[%s0 + $0x5c] sm:$0xf]
  %v39 = vld [vmem:[%s0 + $0x60] sm:$0xf]
  %v40 = vld [vmem:[%s0 + $0x64] sm:$0xf]
  %v41 = vld [vmem:[%s0 + $0x68] sm:$0xf]
  %v42 = vld [vmem:[%s0 + $0x6c] sm:$0xf]
  %v43 = vld [vmem:[%s0 + $0x70] sm:$0xf]
  %v44 = vld [vmem:[%s0 + $0x74] sm:$0xf]
  %v45 = vld [vmem:[%s0 + $0x78] sm:$0xf]
  %v46 = vld [vmem:[%s0 + $0x7c] sm:$0xf]
  %v47 = vld [vmem:[%s0 + $0x80] sm:$0xf]
  %v48 = vld [vmem:[%s0 + $0x84] sm:$0xf]
  %v49 = vld [vmem:[%s0 + $0x88] sm:$0xf]
  %v50 = vld [vmem:[%s0 + $0x8c] sm:$0xf]
  %v51 = vld [vmem:[%s0 + $0x90] sm:$0xf]
  %v52 = vld [vmem:[%s0 + $0x94] sm:$0xf]
  %v53 = vld [vmem:[%s0 + $0x98] sm:$0xf]
  %v54 = vld [vmem:[%s0 + $0x9c] sm:$0xf]
  %v55 = vld [vmem:[%s0 + $0xa0] sm:$0xf]
  %v56 = vld [vmem:[%s0 + $0xa4] sm:$0xf]
  %v57 = vld [vmem:[%s0 + $0xa8] sm:$0xf]
  %v58 = vld [vmem:[%s0 + $0xac] sm:$0xf]
  %v59 = vld [vmem:[%s0 + $0xb0] sm:$0xf]
  %v60 = vld [vmem:[%s0 + $0xb4] sm:$0xf]
  %v61 = vld [vmem:[%s0 + $0xb8] sm:$0xf]
  %v62 = vld [vmem:[%s0 + $0xbc] sm:$0xf]
  %v63 = vld [vmem:[%s0 + $0xc0] sm:$0xf]
  %v64 = vld [vmem:[%s0 + $0xc4] sm:$0xf]
  %v65 = vld [vmem:[%s0 + $0xc8] sm:$0xf]
  %v66 = vld [vmem:[%s0 + $0xcc] sm:$0xf]
  %v67 = vld [vmem:[%s0 + $0xd0] sm:$0xf]
  %v68 = vld [vmem:[%s0 + $0xd4] sm:$0xf]
  %v69 = vld [vmem:[%s0 + $0xd8] sm:$0xf]
  %v70 = vld [vmem:[%s0 + $0xdc] sm:$0xf]
  %v71 = vld [vmem:[%s0 + $0xe0] sm:$0xf]
  %v72 = vld [vmem:[%s0 + $0xe4] sm:$0xf]
  %v73 = vld [vmem:[%s0 + $0xe8] sm:$0xf]
  %v74 = vld [vmem:[%s0 + $0xec] sm:$0xf]
  %v75 = vld [vmem:[%s0 + $0xf0] sm:$0xf]
  %v76 = vld [vmem:[%s0 + $0xf4] sm:$0xf]
  %v77 = vld [vmem:[%s0 + $0xf8] sm:$0xf]
  %v78 = vld [vmem:[%s0 + $0xfc] sm:$0xf]
  %v79 = vld [vmem:[%s0 + $0x100] sm:$0xf]
  %v80 = vld [vmem:[%s0 + $0x104] sm:$0xf]
  %v81 = vld [vmem:[%s0 + $0x108] sm:$0xf]
  %v82 = vld [vmem:[%s0 + $0x10c] sm:$0xf]
  %v83 = vld [vmem:[%s0 + $0x110] sm:$0xf]
  %v84 = vld [vmem:[%s0 + $0x114] sm:$0xf]
  %v85 = vld [vmem:[%s0 + $0x118] sm:$0xf]
  %v86 = vld [vmem:[%s0 + $0x11c] sm:$0xf]
  %v87 = vld [vmem:[%s0 + $0x120] sm:$0xf]
  %v88 = vld [vmem:[%s0 + $0x124] sm:$0xf]
  %v89 = vld [vmem:[%s0 + $0x128] sm:$0xf]
  %v90 = vld [vmem:[%s0 + $0x12c] sm:$0xf]
  %v91 = vld [vmem:[%s0 + $0x130] sm:$0xf]
  %v92 = vld [vmem:[%s0 + $0x134] sm:$0xf]
  %v93 = vld [vmem:[%s0 + $0x138] sm:$0xf]
  %v94 = vld [vmem:[%s0 + $0x13c] sm:$0xf]
  %v95 = vld [vmem:[%s0 + $0x140] sm:$0xf]
  %v96 = vld [vmem:[%s0 + $0x144] sm:$0xf]
  %v97 = vld [vmem:[%s0 + $0x148] sm:$0xf]
  %v98 = vld [vmem:[%s0 + $0x14c] sm:$0xf]
  %v99 = vld [vmem:[%s0 + $0x150] sm:$0xf]
  %v100 = vld [vmem:[%s0 + $0x154] sm:$0xf]
  %v101 = vld [vmem:[%s0 + $0x158] sm:$0xf]
  %v102 = vld [vmem:[%s0 + $0x15c] sm:$0xf]
  %v103 = vld [vmem:[%s0 + $0x160] sm:$0xf]
  %v104 = vld [vmem:[%s0 + $0x164] sm:$0xf]
  %v105 = vld [vmem:[%s0 + $0x168] sm:$0xf]
  %v106 = vld [vmem:[%s0 + $0x16c] sm:$0xf]
  %v107 = vld [vmem:[%s0 + $0x170] sm:$0xf]
  %v108 = vld [vmem:[%s0 + $0x174] sm:$0xf]
  %v109 = vld [vmem:[%s0 + $0x178] sm:$0xf]
  %v110 = vld [vmem:[%s0 + $0x17c] sm:$0xf]
  %v111 = vld [vmem:[%s0 + $0x180] sm:$0xf]
  %v112 = vld [vmem:[%s0 + $0x184] sm:$0xf]
  %v113 = vld [vmem:[%s0 + $0x188] sm:$0xf]
  %v114 = vld [vmem:[%s0 + $0x18c] sm:$0xf]
  %v115 = vld [vmem:[%s0 + $0x190] sm:$0xf]
  %v116 = vld [vmem:[%s0 + $0x194] sm:$0xf]
  %v117 = vld [vmem:[%s0 + $0x198] sm:$0xf]
  %v118 = vld [vmem:[%s0 + $0x19c] sm:$0xf]
  %v119 = vld [vmem:[%s0 + $0x1a0] sm:$0xf]
  %v120 = vld [vmem:[%s0 + $0x1a4] sm:$0xf]
  %v121 = vld [vmem:[%s0 + $0x1a8] sm:$0xf]
  %v122 = vld [vmem:[%s0 + $0x1ac] sm:$0xf]
  %v123 = vld [vmem:[%s0 + $0x1b0] sm:$0xf]
  %v124 = vld [vmem:[%s0 + $0x1b4] sm:$0xf]
  %v125 = vld [vmem:[%s0 + $0x1b8] sm:$0xf]
  %v126 = vld [vmem:[%s0 + $0x1bc] sm:$0xf]
  %v127 = vld [vmem:[%s0 + $0x1c0] sm:$0xf]
  %v128 = vld [vmem:[%s0 + $0x1c4] sm:$0xf]
  %v129 = vld [vmem:[%s0 + $0x1c8] sm:$0xf]
  %v130 = vld [vmem:[%s0 + $0x1cc] sm:$0xf]
  %v131 = vld [vmem:[%s0 + $0x1d0] sm:$0xf]
  %v132 = vld [vmem:[%s0 + $0x1d4] sm:$0xf]
  %v133 = vld [vmem:[%s0 + $0x1d8] sm:$0xf]
  %v134 = vld [vmem:[%s0 + $0x1dc] sm:$0xf]
  %v135 = vld [vmem:[%s0 + $0x1e0] sm:$0xf]
  %v136 = vld [vmem:[%s0 + $0x1e4] sm:$0xf]
  %v137 = vld [vmem:[%s0 + $0x1e8] sm:$0xf]
  %v138 = vld [vmem:[%s0 + $0x1ec] sm:$0xf]
  %v139 = vld [vmem:[%s0 + $0x1f0] sm:$0xf]
  %v140 = vld [vmem:[%s0 + $0x1f4] sm:$0xf]
  %v141 = vld [vmem:[%s0 + $0x1f8] sm:$0xf]
  %v142 = vld [vmem:[%s0 + $0x1fc] sm:$0xf]
  %v143 = vld [vmem:[%s0 + $0x200] sm:$0xf]
  %v144 = vld [vmem:[%s0 + $0x204] sm:$0xf]
  %v145 = vld [vmem:[%s0 + $0x208] sm:$0xf]
  %v146 = vld [vmem:[%s0 + $0x20c] sm:$0xf]
  %v147 = vld [vmem:[%s0 + $0x210] sm:$0xf]
  %v148 = vld [vmem:[%s0 + $0x214] sm:$0xf]
  %v149 = vld [vmem:[%s0 + $0x218] sm:$0xf]
  %v150 = vld [vmem:[%s0 + $0x21c] sm:$0xf]
  %v151 = vld [vmem:[%s0 + $0x220] sm:$0xf]
  %v152 = vld [vmem:[%s0 + $0x224] sm:$0xf]
  %v153 = vld [vmem:[%s0 + $0x228] sm:$0xf]
  %v154 = vld [vmem:[%s0 + $0x22c] sm:$0xf]
  %v155 = vld [vmem:[%s0 + $0x230] sm:$0xf]
  %v156 = vld [vmem:[%s0 + $0x234] sm:$0xf]
  %v157 = vld [vmem:[%s0 + $0x238] sm:$0xf]
  %v158 = vld [vmem:[%s0 + $0x23c] sm:$0xf]
  %v159 = vld [vmem:[%s0 + $0x240] sm:$0xf]
  %v160 = vld [vmem:[%s0 + $0x244] sm:$0xf]
  %v161 = vld [vmem:[%s0 + $0x248] sm:$0xf]
  %v162 = vld [vmem:[%s0 + $0x24c] sm:$0xf]
  %v163 = vld [vmem:[%s0 + $0x250] sm:$0xf]
  %v164 = vld [vmem:[%s0 + $0x254] sm:$0xf]
  %v165 = vld [vmem:[%s0 + $0x258] sm:$0xf]
  %v166 = vld [vmem:[%s0 + $0x25c] sm:$0xf]
  %v167 = vld [vmem:[%s0 + $0x260] sm:$0xf]
  %v168 = vld [vmem:[%s0 + $0x264] sm:$0xf]
  %v169 = vld [vmem:[%s0 + $0x268] sm:$0xf]
  %v170 = vld [vmem:[%s0 + $0x26c] sm:$0xf]
  %v171 = vld [vmem:[%s0 + $0x270] sm:$0xf]
  %v172 = vld [vmem:[%s0 + $0x274] sm:$0xf]
  %v173 = vld [vmem:[%s0 + $0x278] sm:$0xf]
  %v174 = vld [vmem:[%s0 + $0x27c] sm:$0xf]
  %v175 = vld [vmem:[%s0 + $0x280] sm:$0xf]
  %v176 = vld [vmem:[%s0 + $0x284] sm:$0xf]
  %v177 = vld [vmem:[%s0 + $0x288] sm:$0xf]
  %v178 = vld [vmem:[%s0 + $0x28c] sm:$0xf]
  %v179 = vld [vmem:[%s0 + $0x290] sm:$0xf]
  %v180 = vld [vmem:[%s0 + $0x294] sm:$0xf]
  %v181 = vld [vmem:[%s0 + $0x298] sm:$0xf]
  %v182 = vld [vmem:[%s0 + $0x29c] sm:$0xf]
  %v183 = vld [vmem:[%s0 + $0x2a0] sm:$0xf]
  %v184 = vld [vmem:[%s0 + $0x2a4] sm:$0xf]
  %v185 = vld [vmem:[%s0 + $0x2a8] sm:$0xf]
  %v186 = vld [vmem:[%s0 + $0x2ac] sm:$0xf]
  %v187 = vld [vmem:[%s0 + $0x2b0] sm:$0xf]
  %v188 = vld [vmem:[%s0 + $0x2b4] sm:$0xf]
  %v189 = vld [vmem:[%s0 + $0x2b8] sm:$0xf]
  %v190 = vld [vmem:[%s0 + $0x2bc] sm:$0xf]
  %v191 = vld [vmem:[%s0 + $0x2c0] sm:$0xf]
  %v192 = vld [vmem:[%s0 + $0x2c4] sm:$0xf]
  %v193 = vld [vmem:[%s0 + $0x2c8] sm:$0xf]
  %v194 = vld [vmem:[%s0 + $0x2cc] sm:$0xf]
  %v195 = vld [vmem:[%s0 + $0x2d0] sm:$0xf]
  %v196 = vld [vmem:[%s0 + $0x2d4] sm:$0xf]
  %v197 = vld [vmem:[%s0 + $0x2d8] sm:$0xf]
  %v198 = vld [vmem:[%s0 + $0x2dc] sm:$0xf]
  %v199 = vld [vmem:[%s0 + $0x2e0] sm:$0xf]
  %v200 = vld [vmem:[%s0 + $0x2e4] sm:$0xf]
  %v201 = vld [vmem:[%s0 + $0x2e8] sm:$0xf]
  %v202 = vld [vmem:[%s0 + $0x2ec] sm:$0xf]
  %v203 = vld [vmem:[%s0 + $0x2f0] sm:$0xf]
  %v204 = vld [vmem:[%s0 + $0x2f4] sm:$0xf]
  %v205 = vld [vmem:[%s0 + $0x2f8] sm:$0xf]
  %v206 = vld [vmem:[%s0 + $0x2fc] sm:$0xf]
  %v207 = vld [vmem:[%s0 + $0x300] sm:$0xf]
  %v208 = vld [vmem:[%s0 + $0x304] sm:$0xf]
  %v209 = vld [vmem:[%s0 + $0x308] sm:$0xf]
  %v210 = vld [vmem:[%s0 + $0x30c] sm:$0xf]
  %v211 = vld [vmem:[%s0 + $0x310] sm:$0xf]
  %v212 = vld [vmem:[%s0 + $0x314] sm:$0xf]
  %v213 = vld [vmem:[%s0 + $0x318] sm:$0xf]
  %v214 = vld [vmem:[%s0 + $0x31c] sm:$0xf]
  %v215 = vld [vmem:[%s1] sm:$0xf]
  %v216 = vld [vmem:[%s1 + $0x4] sm:$0x1]
  %v417 = vunpack.c.l.b16 %v15
  %v418 = vunpack.c.l.b16 %v16
  %v419 = vunpack.c.l.b16 %v17
  %v420 = vunpack.c.l.b16 %v18
  %v421 = vunpack.c.l.b16 %v19
  %v422 = vunpack.c.l.b16 %v20
  %v423 = vunpack.c.l.b16 %v21
  %v424 = vunpack.c.l.b16 %v22
  %v425 = vunpack.c.l.b16 %v23
  %v426 = vunpack.c.l.b16 %v24
  %v427 = vunpack.c.l.b16 %v25
  %v428 = vunpack.c.l.b16 %v26
  %v429 = vunpack.c.l.b16 %v27
  %v430 = vunpack.c.l.b16 %v28
  %v431 = vunpack.c.l.b16 %v29
  %v432 = vunpack.c.l.b16 %v30
  %v433 = vunpack.c.l.b16 %v31
  %v434 = vunpack.c.l.b16 %v32
  %v435 = vunpack.c.l.b16 %v33
  %v436 = vunpack.c.l.b16 %v34
  %v437 = vunpack.c.l.b16 %v35
  %v438 = vunpack.c.l.b16 %v36
  %v439 = vunpack.c.l.b16 %v37
  %v440 = vunpack.c.l.b16 %v38
  %v441 = vunpack.c.l.b16 %v39
  %v442 = vunpack.c.l.b16 %v40
  %v443 = vunpack.c.l.b16 %v41
  %v444 = vunpack.c.l.b16 %v42
  %v445 = vunpack.c.l.b16 %v43
  %v446 = vunpack.c.l.b16 %v44
  %v447 = vunpack.c.l.b16 %v45
  %v448 = vunpack.c.l.b16 %v46
  %v449 = vunpack.c.l.b16 %v47
  %v450 = vunpack.c.l.b16 %v48
  %v451 = vunpack.c.l.b16 %v49
  %v452 = vunpack.c.l.b16 %v50
  %v453 = vunpack.c.l.b16 %v51
  %v454 = vunpack.c.l.b16 %v52
  %v455 = vunpack.c.l.b16 %v53
  %v456 = vunpack.c.l.b16 %v54
  %v457 = vunpack.c.l.b16 %v55
  %v458 = vunpack.c.l.b16 %v56
  %v459 = vunpack.c.l.b16 %v57
  %v460 = vunpack.c.l.b16 %v58
  %v461 = vunpack.c.l.b16 %v59
  %v462 = vunpack.c.l.b16 %v60
  %v463 = vunpack.c.l.b16 %v61
  %v464 = vunpack.c.l.b16 %v62
  %v465 = vunpack.c.l.b16 %v63
  %v466 = vunpack.c.l.b16 %v64
  %v467 = vunpack.c.l.b16 %v65
  %v468 = vunpack.c.l.b16 %v66
  %v469 = vunpack.c.l.b16 %v67
  %v470 = vunpack.c.l.b16 %v68
  %v471 = vunpack.c.l.b16 %v69
  %v472 = vunpack.c.l.b16 %v70
  %v473 = vunpack.c.l.b16 %v71
  %v474 = vunpack.c.l.b16 %v72
  %v475 = vunpack.c.l.b16 %v73
  %v476 = vunpack.c.l.b16 %v74
  %v477 = vunpack.c.l.b16 %v75
  %v478 = vunpack.c.l.b16 %v76
  %v479 = vunpack.c.l.b16 %v77
  %v480 = vunpack.c.l.b16 %v78
  %v481 = vunpack.c.l.b16 %v79
  %v482 = vunpack.c.l.b16 %v80
  %v483 = vunpack.c.l.b16 %v81
  %v484 = vunpack.c.l.b16 %v82
  %v485 = vunpack.c.l.b16 %v83
  %v486 = vunpack.c.l.b16 %v84
  %v487 = vunpack.c.l.b16 %v85
  %v488 = vunpack.c.l.b16 %v86
  %v489 = vunpack.c.l.b16 %v87
  %v490 = vunpack.c.l.b16 %v88
  %v491 = vunpack.c.l.b16 %v89
  %v492 = vunpack.c.l.b16 %v90
  %v493 = vunpack.c.l.b16 %v91
  %v494 = vunpack.c.l.b16 %v92
  %v495 = vunpack.c.l.b16 %v93
  %v496 = vunpack.c.l.b16 %v94
  %v497 = vunpack.c.l.b16 %v95
  %v498 = vunpack.c.l.b16 %v96
  %v499 = vunpack.c.l.b16 %v97
  %v500 = vunpack.c.l.b16 %v98
  %v501 = vunpack.c.l.b16 %v99
  %v502 = vunpack.c.l.b16 %v100
  %v503 = vunpack.c.l.b16 %v101
  %v504 = vunpack.c.l.b16 %v102
  %v505 = vunpack.c.l.b16 %v103
  %v506 = vunpack.c.l.b16 %v104
  %v507 = vunpack.c.l.b16 %v105
  %v508 = vunpack.c.l.b16 %v106
  %v509 = vunpack.c.l.b16 %v107
  %v510 = vunpack.c.l.b16 %v108
  %v511 = vunpack.c.l.b16 %v109
  %v512 = vunpack.c.l.b16 %v110
  %v513 = vunpack.c.l.b16 %v111
  %v514 = vunpack.c.l.b16 %v112
  %v515 = vunpack.c.l.b16 %v113
  %v516 = vunpack.c.l.b16 %v114
  %v517 = vunpack.c.l.b16 %v115
  %v518 = vunpack.c.l.b16 %v116
  %v519 = vunpack.c.l.b16 %v117
  %v520 = vunpack.c.l.b16 %v118
  %v521 = vunpack.c.l.b16 %v119
  %v522 = vunpack.c.l.b16 %v120
  %v523 = vunpack.c.l.b16 %v121
  %v524 = vunpack.c.l.b16 %v122
  %v525 = vunpack.c.l.b16 %v123
  %v526 = vunpack.c.l.b16 %v124
  %v527 = vunpack.c.l.b16 %v125
  %v528 = vunpack.c.l.b16 %v126
  %v529 = vunpack.c.l.b16 %v127
  %v530 = vunpack.c.l.b16 %v128
  %v531 = vunpack.c.l.b16 %v129
  %v532 = vunpack.c.l.b16 %v130
  %v533 = vunpack.c.l.b16 %v131
  %v534 = vunpack.c.l.b16 %v132
  %v535 = vunpack.c.l.b16 %v133
  %v536 = vunpack.c.l.b16 %v134
  %v537 = vunpack.c.l.b16 %v135
  %v538 = vunpack.c.l.b16 %v136
  %v539 = vunpack.c.l.b16 %v137
  %v540 = vunpack.c.l.b16 %v138
  %v541 = vunpack.c.l.b16 %v139
  %v542 = vunpack.c.l.b16 %v140
  %v543 = vunpack.c.l.b16 %v141
  %v544 = vunpack.c.l.b16 %v142
  %v545 = vunpack.c.l.b16 %v143
  %v546 = vunpack.c.l.b16 %v144
  %v547 = vunpack.c.l.b16 %v145
  %v548 = vunpack.c.l.b16 %v146
  %v549 = vunpack.c.l.b16 %v147
  %v550 = vunpack.c.l.b16 %v148
  %v551 = vunpack.c.l.b16 %v149
  %v552 = vunpack.c.l.b16 %v150
  %v553 = vunpack.c.l.b16 %v151
  %v554 = vunpack.c.l.b16 %v152
  %v555 = vunpack.c.l.b16 %v153
  %v556 = vunpack.c.l.b16 %v154
  %v557 = vunpack.c.l.b16 %v155
  %v558 = vunpack.c.l.b16 %v156
  %v559 = vunpack.c.l.b16 %v157
  %v560 = vunpack.c.l.b16 %v158
  %v561 = vunpack.c.l.b16 %v159
  %v562 = vunpack.c.l.b16 %v160
  %v563 = vunpack.c.l.b16 %v161
  %v564 = vunpack.c.l.b16 %v162
  %v565 = vunpack.c.l.b16 %v163
  %v566 = vunpack.c.l.b16 %v164
  %v567 = vunpack.c.l.b16 %v165
  %v568 = vunpack.c.l.b16 %v166
  %v569 = vunpack.c.l.b16 %v167
  %v570 = vunpack.c.l.b16 %v168
  %v571 = vunpack.c.l.b16 %v169
  %v572 = vunpack.c.l.b16 %v170
  %v573 = vunpack.c.l.b16 %v171
  %v574 = vunpack.c.l.b16 %v172
  %v575 = vunpack.c.l.b16 %v173
  %v576 = vunpack.c.l.b16 %v174
  %v577 = vunpack.c.l.b16 %v175
  %v578 = vunpack.c.l.b16 %v176
  %v579 = vunpack.c.l.b16 %v177
  %v580 = vunpack.c.l.b16 %v178
  %v581 = vunpack.c.l.b16 %v179
  %v582 = vunpack.c.l.b16 %v180
  %v583 = vunpack.c.l.b16 %v181
  %v584 = vunpack.c.l.b16 %v182
  %v585 = vunpack.c.l.b16 %v183
  %v586 = vunpack.c.l.b16 %v184
  %v587 = vunpack.c.l.b16 %v185
  %v588 = vunpack.c.l.b16 %v186
  %v589 = vunpack.c.l.b16 %v187
  %v590 = vunpack.c.l.b16 %v188
  %v591 = vunpack.c.l.b16 %v189
  %v592 = vunpack.c.l.b16 %v190
  %v593 = vunpack.c.l.b16 %v191
  %v594 = vunpack.c.l.b16 %v192
  %v595 = vunpack.c.l.b16 %v193
  %v596 = vunpack.c.l.b16 %v194
  %v597 = vunpack.c.l.b16 %v195
  %v598 = vunpack.c.l.b16 %v196
  %v599 = vunpack.c.l.b16 %v197
  %v600 = vunpack.c.l.b16 %v198
  %v601 = vunpack.c.l.b16 %v199
  %v602 = vunpack.c.l.b16 %v200
  %v603 = vunpack.c.l.b16 %v201
  %v604 = vunpack.c.l.b16 %v202
  %v605 = vunpack.c.l.b16 %v203
  %v606 = vunpack.c.l.b16 %v204
  %v607 = vunpack.c.l.b16 %v205
  %v608 = vunpack.c.l.b16 %v206
  %v609 = vunpack.c.l.b16 %v207
  %v610 = vunpack.c.l.b16 %v208
  %v611 = vunpack.c.l.b16 %v209
  %v612 = vunpack.c.l.b16 %v210
  %v613 = vunpack.c.l.b16 %v211
  %v614 = vunpack.c.l.b16 %v212
  %v615 = vunpack.c.l.b16 %v213
  %v616 = vunpack.c.l.b16 %v214
  %v617 = vpack.c.b16 %v418, %v417
  %v618 = vpack.c.b16 %v420, %v419
  %v619 = vpack.c.b16 %v422, %v421
  %v620 = vpack.c.b16 %v424, %v423
  %v621 = vpack.c.b16 %v426, %v425
  %v622 = vpack.c.b16 %v428, %v427
  %v623 = vpack.c.b16 %v430, %v429
  %v624 = vpack.c.b16 %v432, %v431
  %v625 = vpack.c.b16 %v434, %v433
  %v626 = vpack.c.b16 %v436, %v435
  %v627 = vpack.c.b16 %v438, %v437
  %v628 = vpack.c.b16 %v440, %v439
  %v629 = vpack.c.b16 %v442, %v441
  %v630 = vpack.c.b16 %v444, %v443
  %v631 = vpack.c.b16 %v446, %v445
  %v632 = vpack.c.b16 %v448, %v447
  %v633 = vpack.c.b16 %v450, %v449
  %v634 = vpack.c.b16 %v452, %v451
  %v635 = vpack.c.b16 %v454, %v453
  %v636 = vpack.c.b16 %v456, %v455
  %v637 = vpack.c.b16 %v458, %v457
  %v638 = vpack.c.b16 %v460, %v459
  %v639 = vpack.c.b16 %v462, %v461
  %v640 = vpack.c.b16 %v464, %v463
  %v641 = vpack.c.b16 %v466, %v465
  %v642 = vpack.c.b16 %v468, %v467
  %v643 = vpack.c.b16 %v470, %v469
  %v644 = vpack.c.b16 %v472, %v471
  %v645 = vpack.c.b16 %v474, %v473
  %v646 = vpack.c.b16 %v476, %v475
  %v647 = vpack.c.b16 %v478, %v477
  %v648 = vpack.c.b16 %v480, %v479
  %v649 = vpack.c.b16 %v482, %v481
  %v650 = vpack.c.b16 %v484, %v483
  %v651 = vpack.c.b16 %v486, %v485
  %v652 = vpack.c.b16 %v488, %v487
  %v653 = vpack.c.b16 %v490, %v489
  %v654 = vpack.c.b16 %v492, %v491
  %v655 = vpack.c.b16 %v494, %v493
  %v656 = vpack.c.b16 %v496, %v495
  %v657 = vpack.c.b16 %v498, %v497
  %v658 = vpack.c.b16 %v500, %v499
  %v659 = vpack.c.b16 %v502, %v501
  %v660 = vpack.c.b16 %v504, %v503
  %v661 = vpack.c.b16 %v506, %v505
  %v662 = vpack.c.b16 %v508, %v507
  %v663 = vpack.c.b16 %v510, %v509
  %v664 = vpack.c.b16 %v512, %v511
  %v665 = vpack.c.b16 %v514, %v513
  %v666 = vpack.c.b16 %v516, %v515
  %v667 = vpack.c.b16 %v518, %v517
  %v668 = vpack.c.b16 %v520, %v519
  %v669 = vpack.c.b16 %v522, %v521
  %v670 = vpack.c.b16 %v524, %v523
  %v671 = vpack.c.b16 %v526, %v525
  %v672 = vpack.c.b16 %v528, %v527
  %v673 = vpack.c.b16 %v530, %v529
  %v674 = vpack.c.b16 %v532, %v531
  %v675 = vpack.c.b16 %v534, %v533
  %v676 = vpack.c.b16 %v536, %v535
  %v677 = vpack.c.b16 %v538, %v537
  %v678 = vpack.c.b16 %v540, %v539
  %v679 = vpack.c.b16 %v542, %v541
  %v680 = vpack.c.b16 %v544, %v543
  %v681 = vpack.c.b16 %v546, %v545
  %v682 = vpack.c.b16 %v548, %v547
  %v683 = vpack.c.b16 %v550, %v549
  %v684 = vpack.c.b16 %v552, %v551
  %v685 = vpack.c.b16 %v554, %v553
  %v686 = vpack.c.b16 %v556, %v555
  %v687 = vpack.c.b16 %v558, %v557
  %v688 = vpack.c.b16 %v560, %v559
  %v689 = vpack.c.b16 %v562, %v561
  %v690 = vpack.c.b16 %v564, %v563
  %v691 = vpack.c.b16 %v566, %v565
  %v692 = vpack.c.b16 %v568, %v567
  %v693 = vpack.c.b16 %v570, %v569
  %v694 = vpack.c.b16 %v572, %v571
  %v695 = vpack.c.b16 %v574, %v573
  %v696 = vpack.c.b16 %v576, %v575
  %v697 = vpack.c.b16 %v578, %v577
  %v698 = vpack.c.b16 %v580, %v579
  %v699 = vpack.c.b16 %v582, %v581
  %v700 = vpack.c.b16 %v584, %v583
  %v701 = vpack.c.b16 %v586, %v585
  %v702 = vpack.c.b16 %v588, %v587
  %v703 = vpack.c.b16 %v590, %v589
  %v704 = vpack.c.b16 %v592, %v591
  %v705 = vpack.c.b16 %v594, %v593
  %v706 = vpack.c.b16 %v596, %v595
  %v707 = vpack.c.b16 %v598, %v597
  %v708 = vpack.c.b16 %v600, %v599
  %v709 = vpack.c.b16 %v602, %v601
  %v710 = vpack.c.b16 %v604, %v603
  %v711 = vpack.c.b16 %v606, %v605
  %v712 = vpack.c.b16 %v608, %v607
  %v713 = vpack.c.b16 %v610, %v609
  %v714 = vpack.c.b16 %v612, %v611
  %v715 = vpack.c.b16 %v614, %v613
  %v716 = vpack.c.b16 %v616, %v615
  %v719 = vunpack.c.l.b16 %v215
  %v720 = vunpack.c.l.b16 %v216
  %v721 = vpack.c.b16 %v720, %v719
  %vm722 = vcmask 72704
  %v724 = vsel %vm722, %v617, 0
  %v727 = vsel %vm722, %v618, 0
  %v730 = vsel %vm722, %v619, 0
  %v733 = vsel %vm722, %v620, 0
  %v736 = vsel %vm722, %v621, 0
  %v739 = vsel %vm722, %v622, 0
  %v742 = vsel %vm722, %v623, 0
  %v745 = vsel %vm722, %v624, 0
  %v748 = vsel %vm722, %v625, 0
  %v751 = vsel %vm722, %v626, 0
  %v754 = vsel %vm722, %v627, 0
  %v757 = vsel %vm722, %v628, 0
  %v760 = vsel %vm722, %v629, 0
  %v763 = vsel %vm722, %v630, 0
  %v766 = vsel %vm722, %v631, 0
  %v769 = vsel %vm722, %v632, 0
  %v772 = vsel %vm722, %v633, 0
  %v775 = vsel %vm722, %v634, 0
  %v778 = vsel %vm722, %v635, 0
  %v781 = vsel %vm722, %v636, 0
  %v784 = vsel %vm722, %v637, 0
  %v787 = vsel %vm722, %v638, 0
  %v790 = vsel %vm722, %v639, 0
  %v793 = vsel %vm722, %v640, 0
  %v796 = vsel %vm722, %v641, 0
  %v799 = vsel %vm722, %v642, 0
  %v802 = vsel %vm722, %v643, 0
  %v805 = vsel %vm722, %v644, 0
  %v808 = vsel %vm722, %v645, 0
  %v811 = vsel %vm722, %v646, 0
  %v814 = vsel %vm722, %v647, 0
  %v817 = vsel %vm722, %v648, 0
  %v820 = vsel %vm722, %v649, 0
  %v823 = vsel %vm722, %v650, 0
  %v826 = vsel %vm722, %v651, 0
  %v829 = vsel %vm722, %v652, 0
  %v832 = vsel %vm722, %v653, 0
  %v835 = vsel %vm722, %v654, 0
  %v838 = vsel %vm722, %v655, 0
  %v841 = vsel %vm722, %v656, 0
  %v844 = vsel %vm722, %v657, 0
  %v847 = vsel %vm722, %v658, 0
  %v850 = vsel %vm722, %v659, 0
  %v853 = vsel %vm722, %v660, 0
  %v856 = vsel %vm722, %v661, 0
  %v859 = vsel %vm722, %v662, 0
  %v862 = vsel %vm722, %v663, 0
  %v865 = vsel %vm722, %v664, 0
  %v868 = vsel %vm722, %v665, 0
  %v871 = vsel %vm722, %v666, 0
  %v874 = vsel %vm722, %v667, 0
  %v877 = vsel %vm722, %v668, 0
  %v880 = vsel %vm722, %v669, 0
  %v883 = vsel %vm722, %v670, 0
  %v886 = vsel %vm722, %v671, 0
  %v889 = vsel %vm722, %v672, 0
  %v892 = vsel %vm722, %v673, 0
  %v895 = vsel %vm722, %v674, 0
  %v898 = vsel %vm722, %v675, 0
  %v901 = vsel %vm722, %v676, 0
  %v904 = vsel %vm722, %v677, 0
  %v907 = vsel %vm722, %v678, 0
  %v910 = vsel %vm722, %v679, 0
  %v913 = vsel %vm722, %v680, 0
  %v916 = vsel %vm722, %v681, 0
  %v919 = vsel %vm722, %v682, 0
  %v922 = vsel %vm722, %v683, 0
  %v925 = vsel %vm722, %v684, 0
  %v928 = vsel %vm722, %v685, 0
  %v931 = vsel %vm722, %v686, 0
  %v934 = vsel %vm722, %v687, 0
  %v937 = vsel %vm722, %v688, 0
  %v940 = vsel %vm722, %v689, 0
  %v943 = vsel %vm722, %v690, 0
  %v946 = vsel %vm722, %v691, 0
  %v949 = vsel %vm722, %v692, 0
  %v952 = vsel %vm722, %v693, 0
  %v955 = vsel %vm722, %v694, 0
  %v958 = vsel %vm722, %v695, 0
  %v961 = vsel %vm722, %v696, 0
  %v964 = vsel %vm722, %v697, 0
  %v967 = vsel %vm722, %v698, 0
  %v970 = vsel %vm722, %v699, 0
  %v973 = vsel %vm722, %v700, 0
  %v976 = vsel %vm722, %v701, 0
  %v979 = vsel %vm722, %v702, 0
  %v982 = vsel %vm722, %v703, 0
  %v985 = vsel %vm722, %v704, 0
  %v988 = vsel %vm722, %v705, 0
  %v991 = vsel %vm722, %v706, 0
  %v994 = vsel %vm722, %v707, 0
  %v997 = vsel %vm722, %v708, 0
  %v1000 = vsel %vm722, %v709, 0
  %v1003 = vsel %vm722, %v710, 0
  %v1006 = vsel %vm722, %v711, 0
  %v1009 = vsel %vm722, %v712, 0
  %v1012 = vsel %vm722, %v713, 0
  %v1015 = vsel %vm722, %v714, 0
  %v1018 = vsel %vm722, %v715, 0
  %v1021 = vsel %vm722, %v716, 0
  %vm1023 = vcmask 1043456
  %vm1024 = vcmask 1044480
  %v1025 = vsel %vm1023, 4294967295, 65535
  %v1026 = vsel %vm1024, %v1025, 0
  %v1028 = vand.u32 %v721, %v1026
  %1030 = vmatpush.bf16.msra.mxu0 0
  %1031 = vmatpush.bf16.msra.mxu0 0
  %1032 = vmatpush.bf16.msra.mxu0 0
  %1033 = vmatpush.bf16.msra.mxu0 0
  %1034 = vmatpush.bf16.msra.mxu0 0
  %1035 = vmatpush.bf16.msra.mxu0 0
  %1036 = vmatpush.bf16.msra.mxu0 0
  %1037 = vmatpush.bf16.msra.mxu0 %v1028
  %1038 = vmatmul.bf16.gmra.mxu0 %v724
  %v1039 = vpop.f32.mrf.mxu0
  %v1040 = vadd.f32 0.0, %v1039
  %v1041 = vpop.f32.mrf.mxu0
  %v1042 = vadd.f32 0.0, %v1041
  %1043 = vmatmul.bf16.gmra.mxu0 %v727
  %v1044 = vpop.f32.mrf.mxu0
  %v1045 = vadd.f32 0.0, %v1044
  %v1046 = vpop.f32.mrf.mxu0
  %v1047 = vadd.f32 0.0, %v1046
  %1048 = vmatmul.bf16.gmra.mxu0 %v730
  %v1049 = vpop.f32.mrf.mxu0
  %v1050 = vadd.f32 0.0, %v1049
  %v1051 = vpop.f32.mrf.mxu0
  %v1052 = vadd.f32 0.0, %v1051
  %1053 = vmatmul.bf16.gmra.mxu0 %v733
  %v1054 = vpop.f32.mrf.mxu0
  %v1055 = vadd.f32 0.0, %v1054
  %v1056 = vpop.f32.mrf.mxu0
  %v1057 = vadd.f32 0.0, %v1056
  %1058 = vmatmul.bf16.gmra.mxu0 %v736
  %v1059 = vpop.f32.mrf.mxu0
  %v1060 = vadd.f32 0.0, %v1059
  %v1061 = vpop.f32.mrf.mxu0
  %v1062 = vadd.f32 0.0, %v1061
  %1063 = vmatmul.bf16.gmra.mxu0 %v739
  %v1064 = vpop.f32.mrf.mxu0
  %v1065 = vadd.f32 0.0, %v1064
  %v1066 = vpop.f32.mrf.mxu0
  %v1067 = vadd.f32 0.0, %v1066
  %1068 = vmatmul.bf16.gmra.mxu0 %v742
  %v1069 = vpop.f32.mrf.mxu0
  %v1070 = vadd.f32 0.0, %v1069
  %v1071 = vpop.f32.mrf.mxu0
  %v1072 = vadd.f32 0.0, %v1071
  %1073 = vmatmul.bf16.gmra.mxu0 %v745
  %v1074 = vpop.f32.mrf.mxu0
  %v1075 = vadd.f32 0.0, %v1074
  %v1076 = vpop.f32.mrf.mxu0
  %v1077 = vadd.f32 0.0, %v1076
  %1078 = vmatmul.bf16.gmra.mxu0 %v748
  %v1079 = vpop.f32.mrf.mxu0
  %v1080 = vadd.f32 0.0, %v1079
  %v1081 = vpop.f32.mrf.mxu0
  %v1082 = vadd.f32 0.0, %v1081
  %1083 = vmatmul.bf16.gmra.mxu0 %v751
  %v1084 = vpop.f32.mrf.mxu0
  %v1085 = vadd.f32 0.0, %v1084
  %v1086 = vpop.f32.mrf.mxu0
  %v1087 = vadd.f32 0.0, %v1086
  %1088 = vmatmul.bf16.gmra.mxu0 %v754
  %v1089 = vpop.f32.mrf.mxu0
  %v1090 = vadd.f32 0.0, %v1089
  %v1091 = vpop.f32.mrf.mxu0
  %v1092 = vadd.f32 0.0, %v1091
  %1093 = vmatmul.bf16.gmra.mxu0 %v757
  %v1094 = vpop.f32.mrf.mxu0
  %v1095 = vadd.f32 0.0, %v1094
  %v1096 = vpop.f32.mrf.mxu0
  %v1097 = vadd.f32 0.0, %v1096
  %1098 = vmatmul.bf16.gmra.mxu0 %v760
  %v1099 = vpop.f32.mrf.mxu0
  %v1100 = vadd.f32 0.0, %v1099
  %v1101 = vpop.f32.mrf.mxu0
  %v1102 = vadd.f32 0.0, %v1101
  %1103 = vmatmul.bf16.gmra.mxu0 %v763
  %v1104 = vpop.f32.mrf.mxu0
  %v1105 = vadd.f32 0.0, %v1104
  %v1106 = vpop.f32.mrf.mxu0
  %v1107 = vadd.f32 0.0, %v1106
  %1108 = vmatmul.bf16.gmra.mxu0 %v766
  %v1109 = vpop.f32.mrf.mxu0
  %v1110 = vadd.f32 0.0, %v1109
  %v1111 = vpop.f32.mrf.mxu0
  %v1112 = vadd.f32 0.0, %v1111
  %1113 = vmatmul.bf16.gmra.mxu0 %v769
  %v1114 = vpop.f32.mrf.mxu0
  %v1115 = vadd.f32 0.0, %v1114
  %v1116 = vpop.f32.mrf.mxu0
  %v1117 = vadd.f32 0.0, %v1116
  %1118 = vmatmul.bf16.gmra.mxu0 %v772
  %v1119 = vpop.f32.mrf.mxu0
  %v1120 = vadd.f32 0.0, %v1119
  %v1121 = vpop.f32.mrf.mxu0
  %v1122 = vadd.f32 0.0, %v1121
  %1123 = vmatmul.bf16.gmra.mxu0 %v775
  %v1124 = vpop.f32.mrf.mxu0
  %v1125 = vadd.f32 0.0, %v1124
  %v1126 = vpop.f32.mrf.mxu0
  %v1127 = vadd.f32 0.0, %v1126
  %1128 = vmatmul.bf16.gmra.mxu0 %v778
  %v1129 = vpop.f32.mrf.mxu0
  %v1130 = vadd.f32 0.0, %v1129
  %v1131 = vpop.f32.mrf.mxu0
  %v1132 = vadd.f32 0.0, %v1131
  %1133 = vmatmul.bf16.gmra.mxu0 %v781
  %v1134 = vpop.f32.mrf.mxu0
  %v1135 = vadd.f32 0.0, %v1134
  %v1136 = vpop.f32.mrf.mxu0
  %v1137 = vadd.f32 0.0, %v1136
  %1138 = vmatmul.bf16.gmra.mxu0 %v784
  %v1139 = vpop.f32.mrf.mxu0
  %v1140 = vadd.f32 0.0, %v1139
  %v1141 = vpop.f32.mrf.mxu0
  %v1142 = vadd.f32 0.0, %v1141
  %1143 = vmatmul.bf16.gmra.mxu0 %v787
  %v1144 = vpop.f32.mrf.mxu0
  %v1145 = vadd.f32 0.0, %v1144
  %v1146 = vpop.f32.mrf.mxu0
  %v1147 = vadd.f32 0.0, %v1146
  %1148 = vmatmul.bf16.gmra.mxu0 %v790
  %v1149 = vpop.f32.mrf.mxu0
  %v1150 = vadd.f32 0.0, %v1149
  %v1151 = vpop.f32.mrf.mxu0
  %v1152 = vadd.f32 0.0, %v1151
  %1153 = vmatmul.bf16.gmra.mxu0 %v793
  %v1154 = vpop.f32.mrf.mxu0
  %v1155 = vadd.f32 0.0, %v1154
  %v1156 = vpop.f32.mrf.mxu0
  %v1157 = vadd.f32 0.0, %v1156
  %1158 = vmatmul.bf16.gmra.mxu0 %v796
  %v1159 = vpop.f32.mrf.mxu0
  %v1160 = vadd.f32 0.0, %v1159
  %v1161 = vpop.f32.mrf.mxu0
  %v1162 = vadd.f32 0.0, %v1161
  %1163 = vmatmul.bf16.gmra.mxu0 %v799
  %v1164 = vpop.f32.mrf.mxu0
  %v1165 = vadd.f32 0.0, %v1164
  %v1166 = vpop.f32.mrf.mxu0
  %v1167 = vadd.f32 0.0, %v1166
  %1168 = vmatmul.bf16.gmra.mxu0 %v802
  %v1169 = vpop.f32.mrf.mxu0
  %v1170 = vadd.f32 0.0, %v1169
  %v1171 = vpop.f32.mrf.mxu0
  %v1172 = vadd.f32 0.0, %v1171
  %1173 = vmatmul.bf16.gmra.mxu0 %v805
  %v1174 = vpop.f32.mrf.mxu0
  %v1175 = vadd.f32 0.0, %v1174
  %v1176 = vpop.f32.mrf.mxu0
  %v1177 = vadd.f32 0.0, %v1176
  %1178 = vmatmul.bf16.gmra.mxu0 %v808
  %v1179 = vpop.f32.mrf.mxu0
  %v1180 = vadd.f32 0.0, %v1179
  %v1181 = vpop.f32.mrf.mxu0
  %v1182 = vadd.f32 0.0, %v1181
  %1183 = vmatmul.bf16.gmra.mxu0 %v811
  %v1184 = vpop.f32.mrf.mxu0
  %v1185 = vadd.f32 0.0, %v1184
  %v1186 = vpop.f32.mrf.mxu0
  %v1187 = vadd.f32 0.0, %v1186
  %1188 = vmatmul.bf16.gmra.mxu0 %v814
  %v1189 = vpop.f32.mrf.mxu0
  %v1190 = vadd.f32 0.0, %v1189
  %v1191 = vpop.f32.mrf.mxu0
  %v1192 = vadd.f32 0.0, %v1191
  %1193 = vmatmul.bf16.gmra.mxu0 %v817
  %v1194 = vpop.f32.mrf.mxu0
  %v1195 = vadd.f32 0.0, %v1194
  %v1196 = vpop.f32.mrf.mxu0
  %v1197 = vadd.f32 0.0, %v1196
  %1198 = vmatmul.bf16.gmra.mxu0 %v820
  %v1199 = vpop.f32.mrf.mxu0
  %v1200 = vadd.f32 0.0, %v1199
  %v1201 = vpop.f32.mrf.mxu0
  %v1202 = vadd.f32 0.0, %v1201
  %1203 = vmatmul.bf16.gmra.mxu0 %v823
  %v1204 = vpop.f32.mrf.mxu0
  %v1205 = vadd.f32 0.0, %v1204
  %v1206 = vpop.f32.mrf.mxu0
  %v1207 = vadd.f32 0.0, %v1206
  %1208 = vmatmul.bf16.gmra.mxu0 %v826
  %v1209 = vpop.f32.mrf.mxu0
  %v1210 = vadd.f32 0.0, %v1209
  %v1211 = vpop.f32.mrf.mxu0
  %v1212 = vadd.f32 0.0, %v1211
  %1213 = vmatmul.bf16.gmra.mxu0 %v829
  %v1214 = vpop.f32.mrf.mxu0
  %v1215 = vadd.f32 0.0, %v1214
  %v1216 = vpop.f32.mrf.mxu0
  %v1217 = vadd.f32 0.0, %v1216
  %1218 = vmatmul.bf16.gmra.mxu0 %v832
  %v1219 = vpop.f32.mrf.mxu0
  %v1220 = vadd.f32 0.0, %v1219
  %v1221 = vpop.f32.mrf.mxu0
  %v1222 = vadd.f32 0.0, %v1221
  %1223 = vmatmul.bf16.gmra.mxu0 %v835
  %v1224 = vpop.f32.mrf.mxu0
  %v1225 = vadd.f32 0.0, %v1224
  %v1226 = vpop.f32.mrf.mxu0
  %v1227 = vadd.f32 0.0, %v1226
  %1228 = vmatmul.bf16.gmra.mxu0 %v838
  %v1229 = vpop.f32.mrf.mxu0
  %v1230 = vadd.f32 0.0, %v1229
  %v1231 = vpop.f32.mrf.mxu0
  %v1232 = vadd.f32 0.0, %v1231
  %1233 = vmatmul.bf16.gmra.mxu0 %v841
  %v1234 = vpop.f32.mrf.mxu0
  %v1235 = vadd.f32 0.0, %v1234
  %v1236 = vpop.f32.mrf.mxu0
  %v1237 = vadd.f32 0.0, %v1236
  %1238 = vmatmul.bf16.gmra.mxu0 %v844
  %v1239 = vpop.f32.mrf.mxu0
  %v1240 = vadd.f32 0.0, %v1239
  %v1241 = vpop.f32.mrf.mxu0
  %v1242 = vadd.f32 0.0, %v1241
  %1243 = vmatmul.bf16.gmra.mxu0 %v847
  %v1244 = vpop.f32.mrf.mxu0
  %v1245 = vadd.f32 0.0, %v1244
  %v1246 = vpop.f32.mrf.mxu0
  %v1247 = vadd.f32 0.0, %v1246
  %1248 = vmatmul.bf16.gmra.mxu0 %v850
  %v1249 = vpop.f32.mrf.mxu0
  %v1250 = vadd.f32 0.0, %v1249
  %v1251 = vpop.f32.mrf.mxu0
  %v1252 = vadd.f32 0.0, %v1251
  %1253 = vmatmul.bf16.gmra.mxu0 %v853
  %v1254 = vpop.f32.mrf.mxu0
  %v1255 = vadd.f32 0.0, %v1254
  %v1256 = vpop.f32.mrf.mxu0
  %v1257 = vadd.f32 0.0, %v1256
  %1258 = vmatmul.bf16.gmra.mxu0 %v856
  %v1259 = vpop.f32.mrf.mxu0
  %v1260 = vadd.f32 0.0, %v1259
  %v1261 = vpop.f32.mrf.mxu0
  %v1262 = vadd.f32 0.0, %v1261
  %1263 = vmatmul.bf16.gmra.mxu0 %v859
  %v1264 = vpop.f32.mrf.mxu0
  %v1265 = vadd.f32 0.0, %v1264
  %v1266 = vpop.f32.mrf.mxu0
  %v1267 = vadd.f32 0.0, %v1266
  %1268 = vmatmul.bf16.gmra.mxu0 %v862
  %v1269 = vpop.f32.mrf.mxu0
  %v1270 = vadd.f32 0.0, %v1269
  %v1271 = vpop.f32.mrf.mxu0
  %v1272 = vadd.f32 0.0, %v1271
  %1273 = vmatmul.bf16.gmra.mxu0 %v865
  %v1274 = vpop.f32.mrf.mxu0
  %v1275 = vadd.f32 0.0, %v1274
  %v1276 = vpop.f32.mrf.mxu0
  %v1277 = vadd.f32 0.0, %v1276
  %1278 = vmatmul.bf16.gmra.mxu0 %v868
  %v1279 = vpop.f32.mrf.mxu0
  %v1280 = vadd.f32 0.0, %v1279
  %v1281 = vpop.f32.mrf.mxu0
  %v1282 = vadd.f32 0.0, %v1281
  %1283 = vmatmul.bf16.gmra.mxu0 %v871
  %v1284 = vpop.f32.mrf.mxu0
  %v1285 = vadd.f32 0.0, %v1284
  %v1286 = vpop.f32.mrf.mxu0
  %v1287 = vadd.f32 0.0, %v1286
  %1288 = vmatmul.bf16.gmra.mxu0 %v874
  %v1289 = vpop.f32.mrf.mxu0
  %v1290 = vadd.f32 0.0, %v1289
  %v1291 = vpop.f32.mrf.mxu0
  %v1292 = vadd.f32 0.0, %v1291
  %1293 = vmatmul.bf16.gmra.mxu0 %v877
  %v1294 = vpop.f32.mrf.mxu0
  %v1295 = vadd.f32 0.0, %v1294
  %v1296 = vpop.f32.mrf.mxu0
  %v1297 = vadd.f32 0.0, %v1296
  %1298 = vmatmul.bf16.gmra.mxu0 %v880
  %v1299 = vpop.f32.mrf.mxu0
  %v1300 = vadd.f32 0.0, %v1299
  %v1301 = vpop.f32.mrf.mxu0
  %v1302 = vadd.f32 0.0, %v1301
  %1303 = vmatmul.bf16.gmra.mxu0 %v883
  %v1304 = vpop.f32.mrf.mxu0
  %v1305 = vadd.f32 0.0, %v1304
  %v1306 = vpop.f32.mrf.mxu0
  %v1307 = vadd.f32 0.0, %v1306
  %1308 = vmatmul.bf16.gmra.mxu0 %v886
  %v1309 = vpop.f32.mrf.mxu0
  %v1310 = vadd.f32 0.0, %v1309
  %v1311 = vpop.f32.mrf.mxu0
  %v1312 = vadd.f32 0.0, %v1311
  %1313 = vmatmul.bf16.gmra.mxu0 %v889
  %v1314 = vpop.f32.mrf.mxu0
  %v1315 = vadd.f32 0.0, %v1314
  %v1316 = vpop.f32.mrf.mxu0
  %v1317 = vadd.f32 0.0, %v1316
  %1318 = vmatmul.bf16.gmra.mxu0 %v892
  %v1319 = vpop.f32.mrf.mxu0
  %v1320 = vadd.f32 0.0, %v1319
  %v1321 = vpop.f32.mrf.mxu0
  %v1322 = vadd.f32 0.0, %v1321
  %1323 = vmatmul.bf16.gmra.mxu0 %v895
  %v1324 = vpop.f32.mrf.mxu0
  %v1325 = vadd.f32 0.0, %v1324
  %v1326 = vpop.f32.mrf.mxu0
  %v1327 = vadd.f32 0.0, %v1326
  %1328 = vmatmul.bf16.gmra.mxu0 %v898
  %v1329 = vpop.f32.mrf.mxu0
  %v1330 = vadd.f32 0.0, %v1329
  %v1331 = vpop.f32.mrf.mxu0
  %v1332 = vadd.f32 0.0, %v1331
  %1333 = vmatmul.bf16.gmra.mxu0 %v901
  %v1334 = vpop.f32.mrf.mxu0
  %v1335 = vadd.f32 0.0, %v1334
  %v1336 = vpop.f32.mrf.mxu0
  %v1337 = vadd.f32 0.0, %v1336
  %1338 = vmatmul.bf16.gmra.mxu0 %v904
  %v1339 = vpop.f32.mrf.mxu0
  %v1340 = vadd.f32 0.0, %v1339
  %v1341 = vpop.f32.mrf.mxu0
  %v1342 = vadd.f32 0.0, %v1341
  %1343 = vmatmul.bf16.gmra.mxu0 %v907
  %v1344 = vpop.f32.mrf.mxu0
  %v1345 = vadd.f32 0.0, %v1344
  %v1346 = vpop.f32.mrf.mxu0
  %v1347 = vadd.f32 0.0, %v1346
  %1348 = vmatmul.bf16.gmra.mxu0 %v910
  %v1349 = vpop.f32.mrf.mxu0
  %v1350 = vadd.f32 0.0, %v1349
  %v1351 = vpop.f32.mrf.mxu0
  %v1352 = vadd.f32 0.0, %v1351
  %1353 = vmatmul.bf16.gmra.mxu0 %v913
  %v1354 = vpop.f32.mrf.mxu0
  %v1355 = vadd.f32 0.0, %v1354
  %v1356 = vpop.f32.mrf.mxu0
  %v1357 = vadd.f32 0.0, %v1356
  %1358 = vmatmul.bf16.gmra.mxu0 %v916
  %v1359 = vpop.f32.mrf.mxu0
  %v1360 = vadd.f32 0.0, %v1359
  %v1361 = vpop.f32.mrf.mxu0
  %v1362 = vadd.f32 0.0, %v1361
  %1363 = vmatmul.bf16.gmra.mxu0 %v919
  %v1364 = vpop.f32.mrf.mxu0
  %v1365 = vadd.f32 0.0, %v1364
  %v1366 = vpop.f32.mrf.mxu0
  %v1367 = vadd.f32 0.0, %v1366
  %1368 = vmatmul.bf16.gmra.mxu0 %v922
  %v1369 = vpop.f32.mrf.mxu0
  %v1370 = vadd.f32 0.0, %v1369
  %v1371 = vpop.f32.mrf.mxu0
  %v1372 = vadd.f32 0.0, %v1371
  %1373 = vmatmul.bf16.gmra.mxu0 %v925
  %v1374 = vpop.f32.mrf.mxu0
  %v1375 = vadd.f32 0.0, %v1374
  %v1376 = vpop.f32.mrf.mxu0
  %v1377 = vadd.f32 0.0, %v1376
  %1378 = vmatmul.bf16.gmra.mxu0 %v928
  %v1379 = vpop.f32.mrf.mxu0
  %v1380 = vadd.f32 0.0, %v1379
  %v1381 = vpop.f32.mrf.mxu0
  %v1382 = vadd.f32 0.0, %v1381
  %1383 = vmatmul.bf16.gmra.mxu0 %v931
  %v1384 = vpop.f32.mrf.mxu0
  %v1385 = vadd.f32 0.0, %v1384
  %v1386 = vpop.f32.mrf.mxu0
  %v1387 = vadd.f32 0.0, %v1386
  %1388 = vmatmul.bf16.gmra.mxu0 %v934
  %v1389 = vpop.f32.mrf.mxu0
  %v1390 = vadd.f32 0.0, %v1389
  %v1391 = vpop.f32.mrf.mxu0
  %v1392 = vadd.f32 0.0, %v1391
  %1393 = vmatmul.bf16.gmra.mxu0 %v937
  %v1394 = vpop.f32.mrf.mxu0
  %v1395 = vadd.f32 0.0, %v1394
  %v1396 = vpop.f32.mrf.mxu0
  %v1397 = vadd.f32 0.0, %v1396
  %1398 = vmatmul.bf16.gmra.mxu0 %v940
  %v1399 = vpop.f32.mrf.mxu0
  %v1400 = vadd.f32 0.0, %v1399
  %v1401 = vpop.f32.mrf.mxu0
  %v1402 = vadd.f32 0.0, %v1401
  %1403 = vmatmul.bf16.gmra.mxu0 %v943
  %v1404 = vpop.f32.mrf.mxu0
  %v1405 = vadd.f32 0.0, %v1404
  %v1406 = vpop.f32.mrf.mxu0
  %v1407 = vadd.f32 0.0, %v1406
  %1408 = vmatmul.bf16.gmra.mxu0 %v946
  %v1409 = vpop.f32.mrf.mxu0
  %v1410 = vadd.f32 0.0, %v1409
  %v1411 = vpop.f32.mrf.mxu0
  %v1412 = vadd.f32 0.0, %v1411
  %1413 = vmatmul.bf16.gmra.mxu0 %v949
  %v1414 = vpop.f32.mrf.mxu0
  %v1415 = vadd.f32 0.0, %v1414
  %v1416 = vpop.f32.mrf.mxu0
  %v1417 = vadd.f32 0.0, %v1416
  %1418 = vmatmul.bf16.gmra.mxu0 %v952
  %v1419 = vpop.f32.mrf.mxu0
  %v1420 = vadd.f32 0.0, %v1419
  %v1421 = vpop.f32.mrf.mxu0
  %v1422 = vadd.f32 0.0, %v1421
  %1423 = vmatmul.bf16.gmra.mxu0 %v955
  %v1424 = vpop.f32.mrf.mxu0
  %v1425 = vadd.f32 0.0, %v1424
  %v1426 = vpop.f32.mrf.mxu0
  %v1427 = vadd.f32 0.0, %v1426
  %1428 = vmatmul.bf16.gmra.mxu0 %v958
  %v1429 = vpop.f32.mrf.mxu0
  %v1430 = vadd.f32 0.0, %v1429
  %v1431 = vpop.f32.mrf.mxu0
  %v1432 = vadd.f32 0.0, %v1431
  %1433 = vmatmul.bf16.gmra.mxu0 %v961
  %v1434 = vpop.f32.mrf.mxu0
  %v1435 = vadd.f32 0.0, %v1434
  %v1436 = vpop.f32.mrf.mxu0
  %v1437 = vadd.f32 0.0, %v1436
  %1438 = vmatmul.bf16.gmra.mxu0 %v964
  %v1439 = vpop.f32.mrf.mxu0
  %v1440 = vadd.f32 0.0, %v1439
  %v1441 = vpop.f32.mrf.mxu0
  %v1442 = vadd.f32 0.0, %v1441
  %1443 = vmatmul.bf16.gmra.mxu0 %v967
  %v1444 = vpop.f32.mrf.mxu0
  %v1445 = vadd.f32 0.0, %v1444
  %v1446 = vpop.f32.mrf.mxu0
  %v1447 = vadd.f32 0.0, %v1446
  %1448 = vmatmul.bf16.gmra.mxu0 %v970
  %v1449 = vpop.f32.mrf.mxu0
  %v1450 = vadd.f32 0.0, %v1449
  %v1451 = vpop.f32.mrf.mxu0
  %v1452 = vadd.f32 0.0, %v1451
  %1453 = vmatmul.bf16.gmra.mxu0 %v973
  %v1454 = vpop.f32.mrf.mxu0
  %v1455 = vadd.f32 0.0, %v1454
  %v1456 = vpop.f32.mrf.mxu0
  %v1457 = vadd.f32 0.0, %v1456
  %1458 = vmatmul.bf16.gmra.mxu0 %v976
  %v1459 = vpop.f32.mrf.mxu0
  %v1460 = vadd.f32 0.0, %v1459
  %v1461 = vpop.f32.mrf.mxu0
  %v1462 = vadd.f32 0.0, %v1461
  %1463 = vmatmul.bf16.gmra.mxu0 %v979
  %v1464 = vpop.f32.mrf.mxu0
  %v1465 = vadd.f32 0.0, %v1464
  %v1466 = vpop.f32.mrf.mxu0
  %v1467 = vadd.f32 0.0, %v1466
  %1468 = vmatmul.bf16.gmra.mxu0 %v982
  %v1469 = vpop.f32.mrf.mxu0
  %v1470 = vadd.f32 0.0, %v1469
  %v1471 = vpop.f32.mrf.mxu0
  %v1472 = vadd.f32 0.0, %v1471
  %1473 = vmatmul.bf16.gmra.mxu0 %v985
  %v1474 = vpop.f32.mrf.mxu0
  %v1475 = vadd.f32 0.0, %v1474
  %v1476 = vpop.f32.mrf.mxu0
  %v1477 = vadd.f32 0.0, %v1476
  %1478 = vmatmul.bf16.gmra.mxu0 %v988
  %v1479 = vpop.f32.mrf.mxu0
  %v1480 = vadd.f32 0.0, %v1479
  %v1481 = vpop.f32.mrf.mxu0
  %v1482 = vadd.f32 0.0, %v1481
  %1483 = vmatmul.bf16.gmra.mxu0 %v991
  %v1484 = vpop.f32.mrf.mxu0
  %v1485 = vadd.f32 0.0, %v1484
  %v1486 = vpop.f32.mrf.mxu0
  %v1487 = vadd.f32 0.0, %v1486
  %1488 = vmatmul.bf16.gmra.mxu0 %v994
  %v1489 = vpop.f32.mrf.mxu0
  %v1490 = vadd.f32 0.0, %v1489
  %v1491 = vpop.f32.mrf.mxu0
  %v1492 = vadd.f32 0.0, %v1491
  %1493 = vmatmul.bf16.gmra.mxu0 %v997
  %v1494 = vpop.f32.mrf.mxu0
  %v1495 = vadd.f32 0.0, %v1494
  %v1496 = vpop.f32.mrf.mxu0
  %v1497 = vadd.f32 0.0, %v1496
  %1498 = vmatmul.bf16.gmra.mxu0 %v1000
  %v1499 = vpop.f32.mrf.mxu0
  %v1500 = vadd.f32 0.0, %v1499
  %v1501 = vpop.f32.mrf.mxu0
  %v1502 = vadd.f32 0.0, %v1501
  %1503 = vmatmul.bf16.gmra.mxu0 %v1003
  %v1504 = vpop.f32.mrf.mxu0
  %v1505 = vadd.f32 0.0, %v1504
  %v1506 = vpop.f32.mrf.mxu0
  %v1507 = vadd.f32 0.0, %v1506
  %1508 = vmatmul.bf16.gmra.mxu0 %v1006
  %v1509 = vpop.f32.mrf.mxu0
  %v1510 = vadd.f32 0.0, %v1509
  %v1511 = vpop.f32.mrf.mxu0
  %v1512 = vadd.f32 0.0, %v1511
  %1513 = vmatmul.bf16.gmra.mxu0 %v1009
  %v1514 = vpop.f32.mrf.mxu0
  %v1515 = vadd.f32 0.0, %v1514
  %v1516 = vpop.f32.mrf.mxu0
  %v1517 = vadd.f32 0.0, %v1516
  %1518 = vmatmul.bf16.gmra.mxu0 %v1012
  %v1519 = vpop.f32.mrf.mxu0
  %v1520 = vadd.f32 0.0, %v1519
  %v1521 = vpop.f32.mrf.mxu0
  %v1522 = vadd.f32 0.0, %v1521
  %1523 = vmatmul.bf16.gmra.mxu0 %v1015
  %v1524 = vpop.f32.mrf.mxu0
  %v1525 = vadd.f32 0.0, %v1524
  %v1526 = vpop.f32.mrf.mxu0
  %v1527 = vadd.f32 0.0, %v1526
  %1528 = vmatmul.bf16.gmra.mxu0 %v1018
  %v1529 = vpop.f32.mrf.mxu0
  %v1530 = vadd.f32 0.0, %v1529
  %v1531 = vpop.f32.mrf.mxu0
  %v1532 = vadd.f32 0.0, %v1531
  %1533 = vmatmul.bf16.gmra.mxu0 %v1021
  %v1534 = vpop.f32.mrf.mxu0
  %v1535 = vadd.f32 0.0, %v1534
  %v1536 = vpop.f32.mrf.mxu0
  %v1537 = vadd.f32 0.0, %v1536
  %1538 = vdwg.mxu0
  %v1539 = vmax.f32 %v1040, %v1165
  %v1540 = vmax.f32 %v1042, %v1167
  %v1541 = vmax.f32 %v1045, %v1170
  %v1542 = vmax.f32 %v1047, %v1172
  %v1543 = vmax.f32 %v1050, %v1175
  %v1544 = vmax.f32 %v1052, %v1177
  %v1545 = vmax.f32 %v1055, %v1180
  %v1546 = vmax.f32 %v1057, %v1182
  %v1547 = vmax.f32 %v1060, %v1185
  %v1548 = vmax.f32 %v1062, %v1187
  %v1549 = vmax.f32 %v1065, %v1190
  %v1550 = vmax.f32 %v1067, %v1192
  %v1551 = vmax.f32 %v1070, %v1195
  %v1552 = vmax.f32 %v1072, %v1197
  %v1553 = vmax.f32 %v1075, %v1200
  %v1554 = vmax.f32 %v1077, %v1202
  %v1555 = vmax.f32 %v1080, %v1205
  %v1556 = vmax.f32 %v1082, %v1207
  %v1557 = vmax.f32 %v1085, %v1210
  %v1558 = vmax.f32 %v1087, %v1212
  %v1559 = vmax.f32 %v1090, %v1215
  %v1560 = vmax.f32 %v1092, %v1217
  %v1561 = vmax.f32 %v1095, %v1220
  %v1562 = vmax.f32 %v1097, %v1222
  %v1563 = vmax.f32 %v1100, %v1225
  %v1564 = vmax.f32 %v1102, %v1227
  %v1565 = vmax.f32 %v1105, %v1230
  %v1566 = vmax.f32 %v1107, %v1232
  %v1567 = vmax.f32 %v1110, %v1235
  %v1568 = vmax.f32 %v1112, %v1237
  %v1569 = vmax.f32 %v1115, %v1240
  %v1570 = vmax.f32 %v1117, %v1242
  %v1571 = vmax.f32 %v1120, %v1245
  %v1572 = vmax.f32 %v1122, %v1247
  %v1573 = vmax.f32 %v1125, %v1250
  %v1574 = vmax.f32 %v1127, %v1252
  %v1575 = vmax.f32 %v1130, %v1255
  %v1576 = vmax.f32 %v1132, %v1257
  %v1577 = vmax.f32 %v1135, %v1260
  %v1578 = vmax.f32 %v1137, %v1262
  %v1579 = vmax.f32 %v1140, %v1265
  %v1580 = vmax.f32 %v1142, %v1267
  %v1581 = vmax.f32 %v1145, %v1270
  %v1582 = vmax.f32 %v1147, %v1272
  %v1583 = vmax.f32 %v1150, %v1275
  %v1584 = vmax.f32 %v1152, %v1277
  %v1585 = vmax.f32 %v1155, %v1280
  %v1586 = vmax.f32 %v1157, %v1282
  %v1587 = vmax.f32 %v1160, %v1285
  %v1588 = vmax.f32 %v1162, %v1287
  %v1589 = vmax.f32 %v1290, %v1415
  %v1590 = vmax.f32 %v1292, %v1417
  %v1591 = vmax.f32 %v1295, %v1420
  %v1592 = vmax.f32 %v1297, %v1422
  %v1593 = vmax.f32 %v1300, %v1425
  %v1594 = vmax.f32 %v1302, %v1427
  %v1595 = vmax.f32 %v1305, %v1430
  %v1596 = vmax.f32 %v1307, %v1432
  %v1597 = vmax.f32 %v1310, %v1435
  %v1598 = vmax.f32 %v1312, %v1437
  %v1599 = vmax.f32 %v1315, %v1440
  %v1600 = vmax.f32 %v1317, %v1442
  %v1601 = vmax.f32 %v1320, %v1445
  %v1602 = vmax.f32 %v1322, %v1447
  %v1603 = vmax.f32 %v1325, %v1450
  %v1604 = vmax.f32 %v1327, %v1452
  %v1605 = vmax.f32 %v1330, %v1455
  %v1606 = vmax.f32 %v1332, %v1457
  %v1607 = vmax.f32 %v1335, %v1460
  %v1608 = vmax.f32 %v1337, %v1462
  %v1609 = vmax.f32 %v1340, %v1465
  %v1610 = vmax.f32 %v1342, %v1467
  %v1611 = vmax.f32 %v1345, %v1470
  %v1612 = vmax.f32 %v1347, %v1472
  %v1613 = vmax.f32 %v1350, %v1475
  %v1614 = vmax.f32 %v1352, %v1477
  %v1615 = vmax.f32 %v1355, %v1480
  %v1616 = vmax.f32 %v1357, %v1482
  %v1617 = vmax.f32 %v1360, %v1485
  %v1618 = vmax.f32 %v1362, %v1487
  %v1619 = vmax.f32 %v1365, %v1490
  %v1620 = vmax.f32 %v1367, %v1492
  %v1621 = vmax.f32 %v1370, %v1495
  %v1622 = vmax.f32 %v1372, %v1497
  %v1623 = vmax.f32 %v1375, %v1500
  %v1624 = vmax.f32 %v1377, %v1502
  %v1625 = vmax.f32 %v1380, %v1505
  %v1626 = vmax.f32 %v1382, %v1507
  %v1627 = vmax.f32 %v1385, %v1510
  %v1628 = vmax.f32 %v1387, %v1512
  %v1629 = vmax.f32 %v1390, %v1515
  %v1630 = vmax.f32 %v1392, %v1517
  %v1631 = vmax.f32 %v1395, %v1520
  %v1632 = vmax.f32 %v1397, %v1522
  %v1633 = vmax.f32 %v1400, %v1525
  %v1634 = vmax.f32 %v1402, %v1527
  %v1635 = vmax.f32 %v1405, %v1530
  %v1636 = vmax.f32 %v1407, %v1532
  %v1637 = vmax.f32 %v1410, %v1535
  %v1638 = vmax.f32 %v1412, %v1537
  %v1639 = vmax.f32 %v1539, %v1589
  %v1640 = vmax.f32 %v1540, %v1590
  %v1641 = vmax.f32 %v1541, %v1591
  %v1642 = vmax.f32 %v1542, %v1592
  %v1643 = vmax.f32 %v1543, %v1593
  %v1644 = vmax.f32 %v1544, %v1594
  %v1645 = vmax.f32 %v1545, %v1595
  %v1646 = vmax.f32 %v1546, %v1596
  %v1647 = vmax.f32 %v1547, %v1597
  %v1648 = vmax.f32 %v1548, %v1598
  %v1649 = vmax.f32 %v1549, %v1599
  %v1650 = vmax.f32 %v1550, %v1600
  %v1651 = vmax.f32 %v1551, %v1601
  %v1652 = vmax.f32 %v1552, %v1602
  %v1653 = vmax.f32 %v1553, %v1603
  %v1654 = vmax.f32 %v1554, %v1604
  %v1655 = vmax.f32 %v1555, %v1605
  %v1656 = vmax.f32 %v1556, %v1606
  %v1657 = vmax.f32 %v1557, %v1607
  %v1658 = vmax.f32 %v1558, %v1608
  %v1659 = vmax.f32 %v1559, %v1609
  %v1660 = vmax.f32 %v1560, %v1610
  %v1661 = vmax.f32 %v1561, %v1611
  %v1662 = vmax.f32 %v1562, %v1612
  %v1663 = vmax.f32 %v1563, %v1613
  %v1664 = vmax.f32 %v1564, %v1614
  %v1665 = vmax.f32 %v1565, %v1615
  %v1666 = vmax.f32 %v1566, %v1616
  %v1667 = vmax.f32 %v1567, %v1617
  %v1668 = vmax.f32 %v1568, %v1618
  %v1669 = vmax.f32 %v1569, %v1619
  %v1670 = vmax.f32 %v1570, %v1620
  %v1671 = vmax.f32 %v1571, %v1621
  %v1672 = vmax.f32 %v1572, %v1622
  %v1673 = vmax.f32 %v1573, %v1623
  %v1674 = vmax.f32 %v1574, %v1624
  %v1675 = vmax.f32 %v1575, %v1625
  %v1676 = vmax.f32 %v1576, %v1626
  %v1677 = vmax.f32 %v1577, %v1627
  %v1678 = vmax.f32 %v1578, %v1628
  %v1679 = vmax.f32 %v1579, %v1629
  %v1680 = vmax.f32 %v1580, %v1630
  %v1681 = vmax.f32 %v1581, %v1631
  %v1682 = vmax.f32 %v1582, %v1632
  %v1683 = vmax.f32 %v1583, %v1633
  %v1684 = vmax.f32 %v1584, %v1634
  %v1685 = vmax.f32 %v1585, %v1635
  %v1686 = vmax.f32 %v1586, %v1636
  %v1687 = vmax.f32 %v1587, %v1637
  %v1688 = vmax.f32 %v1588, %v1638
  %v1689 = vld [vmem:[%s2] sm:$0x1]
  %v1691 = vperm.slane %v1689, 0
  %v1693 = vadd.f32 %v1639, %v1691
  %v1694 = vadd.f32 %v1640, %v1691
  %v1695 = vadd.f32 %v1641, %v1691
  %v1696 = vadd.f32 %v1642, %v1691
  %v1697 = vadd.f32 %v1643, %v1691
  %v1698 = vadd.f32 %v1644, %v1691
  %v1699 = vadd.f32 %v1645, %v1691
  %v1700 = vadd.f32 %v1646, %v1691
  %v1701 = vadd.f32 %v1647, %v1691
  %v1702 = vadd.f32 %v1648, %v1691
  %v1703 = vadd.f32 %v1649, %v1691
  %v1704 = vadd.f32 %v1650, %v1691
  %v1705 = vadd.f32 %v1651, %v1691
  %v1706 = vadd.f32 %v1652, %v1691
  %v1707 = vadd.f32 %v1653, %v1691
  %v1708 = vadd.f32 %v1654, %v1691
  %v1709 = vadd.f32 %v1655, %v1691
  %v1710 = vadd.f32 %v1656, %v1691
  %v1711 = vadd.f32 %v1657, %v1691
  %v1712 = vadd.f32 %v1658, %v1691
  %v1713 = vadd.f32 %v1659, %v1691
  %v1714 = vadd.f32 %v1660, %v1691
  %v1715 = vadd.f32 %v1661, %v1691
  %v1716 = vadd.f32 %v1662, %v1691
  %v1717 = vadd.f32 %v1663, %v1691
  %v1718 = vadd.f32 %v1664, %v1691
  %v1719 = vadd.f32 %v1665, %v1691
  %v1720 = vadd.f32 %v1666, %v1691
  %v1721 = vadd.f32 %v1667, %v1691
  %v1722 = vadd.f32 %v1668, %v1691
  %v1723 = vadd.f32 %v1669, %v1691
  %v1724 = vadd.f32 %v1670, %v1691
  %v1725 = vadd.f32 %v1671, %v1691
  %v1726 = vadd.f32 %v1672, %v1691
  %v1727 = vadd.f32 %v1673, %v1691
  %v1728 = vadd.f32 %v1674, %v1691
  %v1729 = vadd.f32 %v1675, %v1691
  %v1730 = vadd.f32 %v1676, %v1691
  %v1731 = vadd.f32 %v1677, %v1691
  %v1732 = vadd.f32 %v1678, %v1691
  %v1733 = vadd.f32 %v1679, %v1691
  %v1734 = vadd.f32 %v1680, %v1691
  %v1735 = vadd.f32 %v1681, %v1691
  %v1736 = vadd.f32 %v1682, %v1691
  %v1737 = vadd.f32 %v1683, %v1691
  %v1738 = vadd.f32 %v1684, %v1691
  %v1739 = vadd.f32 %v1685, %v1691
  %v1740 = vadd.f32 %v1686, %v1691
  %v1741 = vadd.f32 %v1687, %v1691
  %v1742 = vadd.f32 %v1688, %v1691
  %v1743 = vmax.f32 %v1693, 0.0
  %v1744 = vmax.f32 %v1694, 0.0
  %v1745 = vmax.f32 %v1695, 0.0
  %v1746 = vmax.f32 %v1696, 0.0
  %v1747 = vmax.f32 %v1697, 0.0
  %v1748 = vmax.f32 %v1698, 0.0
  %v1749 = vmax.f32 %v1699, 0.0
  %v1750 = vmax.f32 %v1700, 0.0
  %v1751 = vmax.f32 %v1701, 0.0
  %v1752 = vmax.f32 %v1702, 0.0
  %v1753 = vmax.f32 %v1703, 0.0
  %v1754 = vmax.f32 %v1704, 0.0
  %v1755 = vmax.f32 %v1705, 0.0
  %v1756 = vmax.f32 %v1706, 0.0
  %v1757 = vmax.f32 %v1707, 0.0
  %v1758 = vmax.f32 %v1708, 0.0
  %v1759 = vmax.f32 %v1709, 0.0
  %v1760 = vmax.f32 %v1710, 0.0
  %v1761 = vmax.f32 %v1711, 0.0
  %v1762 = vmax.f32 %v1712, 0.0
  %v1763 = vmax.f32 %v1713, 0.0
  %v1764 = vmax.f32 %v1714, 0.0
  %v1765 = vmax.f32 %v1715, 0.0
  %v1766 = vmax.f32 %v1716, 0.0
  %v1767 = vmax.f32 %v1717, 0.0
  %v1768 = vmax.f32 %v1718, 0.0
  %v1769 = vmax.f32 %v1719, 0.0
  %v1770 = vmax.f32 %v1720, 0.0
  %v1771 = vmax.f32 %v1721, 0.0
  %v1772 = vmax.f32 %v1722, 0.0
  %v1773 = vmax.f32 %v1723, 0.0
  %v1774 = vmax.f32 %v1724, 0.0
  %v1775 = vmax.f32 %v1725, 0.0
  %v1776 = vmax.f32 %v1726, 0.0
  %v1777 = vmax.f32 %v1727, 0.0
  %v1778 = vmax.f32 %v1728, 0.0
  %v1779 = vmax.f32 %v1729, 0.0
  %v1780 = vmax.f32 %v1730, 0.0
  %v1781 = vmax.f32 %v1731, 0.0
  %v1782 = vmax.f32 %v1732, 0.0
  %v1783 = vmax.f32 %v1733, 0.0
  %v1784 = vmax.f32 %v1734, 0.0
  %v1785 = vmax.f32 %v1735, 0.0
  %v1786 = vmax.f32 %v1736, 0.0
  %v1787 = vmax.f32 %v1737, 0.0
  %v1788 = vmax.f32 %v1738, 0.0
  %v1789 = vmax.f32 %v1739, 0.0
  %v1790 = vmax.f32 %v1740, 0.0
  %v1791 = vmax.f32 %v1741, 0.0
  %v1792 = vmax.f32 %v1742, 0.0
  %v1793 = vpack.c.bf16 %v1743, %v1743
  %v1794 = vpack.c.bf16 %v1744, %v1744
  %v1795 = vpack.c.bf16 %v1745, %v1745
  %v1796 = vpack.c.bf16 %v1746, %v1746
  %v1797 = vpack.c.bf16 %v1747, %v1747
  %v1798 = vpack.c.bf16 %v1748, %v1748
  %v1799 = vpack.c.bf16 %v1749, %v1749
  %v1800 = vpack.c.bf16 %v1750, %v1750
  %v1801 = vpack.c.bf16 %v1751, %v1751
  %v1802 = vpack.c.bf16 %v1752, %v1752
  %v1803 = vpack.c.bf16 %v1753, %v1753
  %v1804 = vpack.c.bf16 %v1754, %v1754
  %v1805 = vpack.c.bf16 %v1755, %v1755
  %v1806 = vpack.c.bf16 %v1756, %v1756
  %v1807 = vpack.c.bf16 %v1757, %v1757
  %v1808 = vpack.c.bf16 %v1758, %v1758
  %v1809 = vpack.c.bf16 %v1759, %v1759
  %v1810 = vpack.c.bf16 %v1760, %v1760
  %v1811 = vpack.c.bf16 %v1761, %v1761
  %v1812 = vpack.c.bf16 %v1762, %v1762
  %v1813 = vpack.c.bf16 %v1763, %v1763
  %v1814 = vpack.c.bf16 %v1764, %v1764
  %v1815 = vpack.c.bf16 %v1765, %v1765
  %v1816 = vpack.c.bf16 %v1766, %v1766
  %v1817 = vpack.c.bf16 %v1767, %v1767
  %v1818 = vpack.c.bf16 %v1768, %v1768
  %v1819 = vpack.c.bf16 %v1769, %v1769
  %v1820 = vpack.c.bf16 %v1770, %v1770
  %v1821 = vpack.c.bf16 %v1771, %v1771
  %v1822 = vpack.c.bf16 %v1772, %v1772
  %v1823 = vpack.c.bf16 %v1773, %v1773
  %v1824 = vpack.c.bf16 %v1774, %v1774
  %v1825 = vpack.c.bf16 %v1775, %v1775
  %v1826 = vpack.c.bf16 %v1776, %v1776
  %v1827 = vpack.c.bf16 %v1777, %v1777
  %v1828 = vpack.c.bf16 %v1778, %v1778
  %v1829 = vpack.c.bf16 %v1779, %v1779
  %v1830 = vpack.c.bf16 %v1780, %v1780
  %v1831 = vpack.c.bf16 %v1781, %v1781
  %v1832 = vpack.c.bf16 %v1782, %v1782
  %v1833 = vpack.c.bf16 %v1783, %v1783
  %v1834 = vpack.c.bf16 %v1784, %v1784
  %v1835 = vpack.c.bf16 %v1785, %v1785
  %v1836 = vpack.c.bf16 %v1786, %v1786
  %v1837 = vpack.c.bf16 %v1787, %v1787
  %v1838 = vpack.c.bf16 %v1788, %v1788
  %v1839 = vpack.c.bf16 %v1789, %v1789
  %v1840 = vpack.c.bf16 %v1790, %v1790
  %v1841 = vpack.c.bf16 %v1791, %v1791
  %v1842 = vpack.c.bf16 %v1792, %v1792
  %vm1843 = vcmask 257024
  %1844 = vst.msk [vmem:[%s3] sm:$0xf] %vm1843, %v1793
  %1845 = vst.msk [vmem:[%s3 + $0x4] sm:$0xf] %vm1843, %v1794
  %1846 = vst.msk [vmem:[%s3 + $0x8] sm:$0xf] %vm1843, %v1795
  %1847 = vst.msk [vmem:[%s3 + $0xc] sm:$0xf] %vm1843, %v1796
  %1848 = vst.msk [vmem:[%s3 + $0x10] sm:$0xf] %vm1843, %v1797
  %1849 = vst.msk [vmem:[%s3 + $0x14] sm:$0xf] %vm1843, %v1798
  %1850 = vst.msk [vmem:[%s3 + $0x18] sm:$0xf] %vm1843, %v1799
  %1851 = vst.msk [vmem:[%s3 + $0x1c] sm:$0xf] %vm1843, %v1800
  %1852 = vst.msk [vmem:[%s3 + $0x20] sm:$0xf] %vm1843, %v1801
  %1853 = vst.msk [vmem:[%s3 + $0x24] sm:$0xf] %vm1843, %v1802
  %1854 = vst.msk [vmem:[%s3 + $0x28] sm:$0xf] %vm1843, %v1803
  %1855 = vst.msk [vmem:[%s3 + $0x2c] sm:$0xf] %vm1843, %v1804
  %1856 = vst.msk [vmem:[%s3 + $0x30] sm:$0xf] %vm1843, %v1805
  %1857 = vst.msk [vmem:[%s3 + $0x34] sm:$0xf] %vm1843, %v1806
  %1858 = vst.msk [vmem:[%s3 + $0x38] sm:$0xf] %vm1843, %v1807
  %1859 = vst.msk [vmem:[%s3 + $0x3c] sm:$0xf] %vm1843, %v1808
  %1860 = vst.msk [vmem:[%s3 + $0x40] sm:$0xf] %vm1843, %v1809
  %1861 = vst.msk [vmem:[%s3 + $0x44] sm:$0xf] %vm1843, %v1810
  %1862 = vst.msk [vmem:[%s3 + $0x48] sm:$0xf] %vm1843, %v1811
  %1863 = vst.msk [vmem:[%s3 + $0x4c] sm:$0xf] %vm1843, %v1812
  %1864 = vst.msk [vmem:[%s3 + $0x50] sm:$0xf] %vm1843, %v1813
  %1865 = vst.msk [vmem:[%s3 + $0x54] sm:$0xf] %vm1843, %v1814
  %1866 = vst.msk [vmem:[%s3 + $0x58] sm:$0xf] %vm1843, %v1815
  %1867 = vst.msk [vmem:[%s3 + $0x5c] sm:$0xf] %vm1843, %v1816
  %1868 = vst.msk [vmem:[%s3 + $0x60] sm:$0xf] %vm1843, %v1817
  %1869 = vst.msk [vmem:[%s3 + $0x64] sm:$0xf] %vm1843, %v1818
  %1870 = vst.msk [vmem:[%s3 + $0x68] sm:$0xf] %vm1843, %v1819
  %1871 = vst.msk [vmem:[%s3 + $0x6c] sm:$0xf] %vm1843, %v1820
  %1872 = vst.msk [vmem:[%s3 + $0x70] sm:$0xf] %vm1843, %v1821
  %1873 = vst.msk [vmem:[%s3 + $0x74] sm:$0xf] %vm1843, %v1822
  %1874 = vst.msk [vmem:[%s3 + $0x78] sm:$0xf] %vm1843, %v1823
  %1875 = vst.msk [vmem:[%s3 + $0x7c] sm:$0xf] %vm1843, %v1824
  %1876 = vst.msk [vmem:[%s3 + $0x80] sm:$0xf] %vm1843, %v1825
  %1877 = vst.msk [vmem:[%s3 + $0x84] sm:$0xf] %vm1843, %v1826
  %1878 = vst.msk [vmem:[%s3 + $0x88] sm:$0xf] %vm1843, %v1827
  %1879 = vst.msk [vmem:[%s3 + $0x8c] sm:$0xf] %vm1843, %v1828
  %1880 = vst.msk [vmem:[%s3 + $0x90] sm:$0xf] %vm1843, %v1829
  %1881 = vst.msk [vmem:[%s3 + $0x94] sm:$0xf] %vm1843, %v1830
  %1882 = vst.msk [vmem:[%s3 + $0x98] sm:$0xf] %vm1843, %v1831
  %1883 = vst.msk [vmem:[%s3 + $0x9c] sm:$0xf] %vm1843, %v1832
  %1884 = vst.msk [vmem:[%s3 + $0xa0] sm:$0xf] %vm1843, %v1833
  %1885 = vst.msk [vmem:[%s3 + $0xa4] sm:$0xf] %vm1843, %v1834
  %1886 = vst.msk [vmem:[%s3 + $0xa8] sm:$0xf] %vm1843, %v1835
  %1887 = vst.msk [vmem:[%s3 + $0xac] sm:$0xf] %vm1843, %v1836
  %1888 = vst.msk [vmem:[%s3 + $0xb0] sm:$0xf] %vm1843, %v1837
  %1889 = vst.msk [vmem:[%s3 + $0xb4] sm:$0xf] %vm1843, %v1838
  %1890 = vst.msk [vmem:[%s3 + $0xb8] sm:$0xf] %vm1843, %v1839
  %1891 = vst.msk [vmem:[%s3 + $0xbc] sm:$0xf] %vm1843, %v1840
  %1892 = vst.msk [vmem:[%s3 + $0xc0] sm:$0xf] %vm1843, %v1841
  %1893 = vst.msk [vmem:[%s3 + $0xc4] sm:$0xf] %vm1843, %v1842
  // Predicated region
  $region14: #{cnn_forward.3} parent=0 // pred_check
    _
  $region15: #{cnn_forward.3} parent=0 // pred_check_branch
    %1895 = sbr.rel (0) target = $region17
  $region16: #{cnn_forward.3} parent=0 // pred_region
    _
  $region17: #{cnn_forward.3} parent=0 // pred_fallthru
    _
  // Predicated region
  $region18: #{cnn_forward.3} parent=0 // pred_check
    _
  $region19: #{cnn_forward.3} parent=0 // pred_check_branch
    %1897 = sbr.rel (0) target = $region21
  $region20: #{cnn_forward.3} parent=0 // pred_region
    _
  $region21: #{cnn_forward.3} parent=0 // pred_fallthru
    _

// kernel: cnn_forward.4
$region0: #{cnn_forward.4}
  #allocation0 [shape = 'u32[]', space=smem, size = 0x4, offset = 0x4, fixed_abs, tag = 'smem constant byte address 0x4 - core index']
  #allocation1 [shape = 'u32[72,128]{1,0:T(1,128)}', space=vmem, size = 0x9000, scoped, tag = 'internal scratch']
  %s0 = inlined_call_operand.vmem [shape: bf16[4,112,288], index: 0, kind: input, shape index: {}]
  %s1 = inlined_call_operand.vmem [shape: bf16[288,64], index: 1, kind: input, shape index: {}]
  %s2 = inlined_call_operand.vmem [shape: f32[1,64], index: 2, kind: input, shape index: {}]
  %s3 = inlined_call_operand.vmem [shape: bf16[112,64], index: 3, kind: output, shape index: {}]
  %s4 = sld [smem:[#allocation0]]
  $region22: #{cnn_forward.4} parent=0
    _
  %s6 = ssub.s32 1, %s4
  %s7 = scalar_select 0, %s6, %s4
  // Predicated region
  $region2: #{cnn_forward.4} parent=0 // pred_check
    _
  $region3: #{cnn_forward.4} parent=0 // pred_check_branch
    %9 = sbr.rel (0) target = $region5
  $region4: #{cnn_forward.4} parent=0 // pred_region
    _
  $region5: #{cnn_forward.4} parent=0 // pred_fallthru
    _
  // Predicated region
  $region6: #{cnn_forward.4} parent=0 // pred_check
    _
  $region7: #{cnn_forward.4} parent=0 // pred_check_branch
    %11 = sbr.rel (0) target = $region9
  $region8: #{cnn_forward.4} parent=0 // pred_region
    _
  $region9: #{cnn_forward.4} parent=0 // pred_fallthru
    _
  // Predicated region
  $region10: #{cnn_forward.4} parent=0 // pred_check
    _
  $region11: #{cnn_forward.4} parent=0 // pred_check_branch
    %13 = sbr.rel (0) target = $region13
  $region12: #{cnn_forward.4} parent=0 // pred_region
    _
  $region13: #{cnn_forward.4} parent=0 // pred_fallthru
    _
  %v15 = vld [vmem:[%s0] sm:$0xff]
  %v16 = vld [vmem:[%s0 + $0x8] sm:$0xf]
  %v17 = vld [vmem:[%s0 + $0xc] sm:$0xff]
  %v18 = vld [vmem:[%s0 + $0x14] sm:$0xf]
  %v19 = vld [vmem:[%s0 + $0x18] sm:$0xff]
  %v20 = vld [vmem:[%s0 + $0x20] sm:$0xf]
  %v21 = vld [vmem:[%s0 + $0x24] sm:$0xff]
  %v22 = vld [vmem:[%s0 + $0x2c] sm:$0xf]
  %v23 = vld [vmem:[%s0 + $0x30] sm:$0xff]
  %v24 = vld [vmem:[%s0 + $0x38] sm:$0xf]
  %v25 = vld [vmem:[%s0 + $0x3c] sm:$0xff]
  %v26 = vld [vmem:[%s0 + $0x44] sm:$0xf]
  %v27 = vld [vmem:[%s0 + $0x48] sm:$0xff]
  %v28 = vld [vmem:[%s0 + $0x50] sm:$0xf]
  %v29 = vld [vmem:[%s0 + $0x54] sm:$0xff]
  %v30 = vld [vmem:[%s0 + $0x5c] sm:$0xf]
  %v31 = vld [vmem:[%s0 + $0x60] sm:$0xff]
  %v32 = vld [vmem:[%s0 + $0x68] sm:$0xf]
  %v33 = vld [vmem:[%s0 + $0x6c] sm:$0xff]
  %v34 = vld [vmem:[%s0 + $0x74] sm:$0xf]
  %v35 = vld [vmem:[%s0 + $0x78] sm:$0xff]
  %v36 = vld [vmem:[%s0 + $0x80] sm:$0xf]
  %v37 = vld [vmem:[%s0 + $0x84] sm:$0xff]
  %v38 = vld [vmem:[%s0 + $0x8c] sm:$0xf]
  %v39 = vld [vmem:[%s0 + $0x90] sm:$0xff]
  %v40 = vld [vmem:[%s0 + $0x98] sm:$0xf]
  %v41 = vld [vmem:[%s0 + $0x9c] sm:$0xff]
  %v42 = vld [vmem:[%s0 + $0xa4] sm:$0xf]
  %v43 = vld [vmem:[%s0 + $0xa8] sm:$0xff]
  %v44 = vld [vmem:[%s0 + $0xb0] sm:$0xf]
  %v45 = vld [vmem:[%s0 + $0xb4] sm:$0xff]
  %v46 = vld [vmem:[%s0 + $0xbc] sm:$0xf]
  %v47 = vld [vmem:[%s0 + $0xc0] sm:$0xff]
  %v48 = vld [vmem:[%s0 + $0xc8] sm:$0xf]
  %v49 = vld [vmem:[%s0 + $0xcc] sm:$0xff]
  %v50 = vld [vmem:[%s0 + $0xd4] sm:$0xf]
  %v51 = vld [vmem:[%s0 + $0xd8] sm:$0xff]
  %v52 = vld [vmem:[%s0 + $0xe0] sm:$0xf]
  %v53 = vld [vmem:[%s0 + $0xe4] sm:$0xff]
  %v54 = vld [vmem:[%s0 + $0xec] sm:$0xf]
  %v55 = vld [vmem:[%s0 + $0xf0] sm:$0xff]
  %v56 = vld [vmem:[%s0 + $0xf8] sm:$0xf]
  %v57 = vld [vmem:[%s0 + $0xfc] sm:$0xff]
  %v58 = vld [vmem:[%s0 + $0x104] sm:$0xf]
  %v59 = vld [vmem:[%s0 + $0x108] sm:$0xff]
  %v60 = vld [vmem:[%s0 + $0x110] sm:$0xf]
  %v61 = vld [vmem:[%s0 + $0x114] sm:$0xff]
  %v62 = vld [vmem:[%s0 + $0x11c] sm:$0xf]
  %v63 = vld [vmem:[%s0 + $0x120] sm:$0xff]
  %v64 = vld [vmem:[%s0 + $0x128] sm:$0xf]
  %v65 = vld [vmem:[%s0 + $0x12c] sm:$0xff]
  %v66 = vld [vmem:[%s0 + $0x134] sm:$0xf]
  %v67 = vld [vmem:[%s0 + $0x138] sm:$0xff]
  %v68 = vld [vmem:[%s0 + $0x140] sm:$0xf]
  %v69 = vld [vmem:[%s0 + $0x144] sm:$0xff]
  %v70 = vld [vmem:[%s0 + $0x14c] sm:$0xf]
  %v71 = vld [vmem:[%s0 + $0x150] sm:$0xff]
  %v72 = vld [vmem:[%s0 + $0x158] sm:$0xf]
  %v73 = vld [vmem:[%s0 + $0x15c] sm:$0xff]
  %v74 = vld [vmem:[%s0 + $0x164] sm:$0xf]
  %v75 = vld [vmem:[%s0 + $0x168] sm:$0xff]
  %v76 = vld [vmem:[%s0 + $0x170] sm:$0xf]
  %v77 = vld [vmem:[%s0 + $0x174] sm:$0xff]
  %v78 = vld [vmem:[%s0 + $0x17c] sm:$0xf]
  %v79 = vld [vmem:[%s0 + $0x180] sm:$0xff]
  %v80 = vld [vmem:[%s0 + $0x188] sm:$0xf]
  %v81 = vld [vmem:[%s0 + $0x18c] sm:$0xff]
  %v82 = vld [vmem:[%s0 + $0x194] sm:$0xf]
  %v83 = vld [vmem:[%s0 + $0x198] sm:$0xff]
  %v84 = vld [vmem:[%s0 + $0x1a0] sm:$0xf]
  %v85 = vld [vmem:[%s0 + $0x1a4] sm:$0xff]
  %v86 = vld [vmem:[%s0 + $0x1ac] sm:$0xf]
  %v87 = vld [vmem:[%s0 + $0x1b0] sm:$0xff]
  %v88 = vld [vmem:[%s0 + $0x1b8] sm:$0xf]
  %v89 = vld [vmem:[%s0 + $0x1bc] sm:$0xff]
  %v90 = vld [vmem:[%s0 + $0x1c4] sm:$0xf]
  %v91 = vld [vmem:[%s0 + $0x1c8] sm:$0xff]
  %v92 = vld [vmem:[%s0 + $0x1d0] sm:$0xf]
  %v93 = vld [vmem:[%s0 + $0x1d4] sm:$0xff]
  %v94 = vld [vmem:[%s0 + $0x1dc] sm:$0xf]
  %v95 = vld [vmem:[%s0 + $0x1e0] sm:$0xff]
  %v96 = vld [vmem:[%s0 + $0x1e8] sm:$0xf]
  %v97 = vld [vmem:[%s0 + $0x1ec] sm:$0xff]
  %v98 = vld [vmem:[%s0 + $0x1f4] sm:$0xf]
  %v99 = vld [vmem:[%s0 + $0x1f8] sm:$0xff]
  %v100 = vld [vmem:[%s0 + $0x200] sm:$0xf]
  %v101 = vld [vmem:[%s0 + $0x204] sm:$0xff]
  %v102 = vld [vmem:[%s0 + $0x20c] sm:$0xf]
  %v103 = vld [vmem:[%s0 + $0x210] sm:$0xff]
  %v104 = vld [vmem:[%s0 + $0x218] sm:$0xf]
  %v105 = vld [vmem:[%s0 + $0x21c] sm:$0xff]
  %v106 = vld [vmem:[%s0 + $0x224] sm:$0xf]
  %v107 = vld [vmem:[%s0 + $0x228] sm:$0xff]
  %v108 = vld [vmem:[%s0 + $0x230] sm:$0xf]
  %v109 = vld [vmem:[%s0 + $0x234] sm:$0xff]
  %v110 = vld [vmem:[%s0 + $0x23c] sm:$0xf]
  %v111 = vld [vmem:[%s0 + $0x240] sm:$0xff]
  %v112 = vld [vmem:[%s0 + $0x248] sm:$0xf]
  %v113 = vld [vmem:[%s0 + $0x24c] sm:$0xff]
  %v114 = vld [vmem:[%s0 + $0x254] sm:$0xf]
  %v115 = vld [vmem:[%s0 + $0x258] sm:$0xff]
  %v116 = vld [vmem:[%s0 + $0x260] sm:$0xf]
  %v117 = vld [vmem:[%s0 + $0x264] sm:$0xff]
  %v118 = vld [vmem:[%s0 + $0x26c] sm:$0xf]
  %v119 = vld [vmem:[%s0 + $0x270] sm:$0xff]
  %v120 = vld [vmem:[%s0 + $0x278] sm:$0xf]
  %v121 = vld [vmem:[%s0 + $0x27c] sm:$0xff]
  %v122 = vld [vmem:[%s0 + $0x284] sm:$0xf]
  %v123 = vld [vmem:[%s0 + $0x288] sm:$0xff]
  %v124 = vld [vmem:[%s0 + $0x290] sm:$0xf]
  %v125 = vld [vmem:[%s0 + $0x294] sm:$0xff]
  %v126 = vld [vmem:[%s0 + $0x29c] sm:$0xf]
  %v127 = vld [vmem:[%s1] sm:$0xf]
  %v128 = vld [vmem:[%s1 + $0x4] sm:$0xf]
  %v129 = vld [vmem:[%s1 + $0x8] sm:$0xf]
  %v130 = vld [vmem:[%s1 + $0xc] sm:$0xf]
  %v131 = vld [vmem:[%s1 + $0x10] sm:$0xf]
  %v132 = vld [vmem:[%s1 + $0x14] sm:$0xf]
  %v133 = vld [vmem:[%s1 + $0x18] sm:$0xf]
  %v134 = vld [vmem:[%s1 + $0x1c] sm:$0xf]
  %v135 = vld [vmem:[%s1 + $0x20] sm:$0xf]
  %v136 = vld [vmem:[%s1 + $0x24] sm:$0xf]
  %v137 = vld [vmem:[%s1 + $0x28] sm:$0xf]
  %v138 = vld [vmem:[%s1 + $0x2c] sm:$0xf]
  %v139 = vld [vmem:[%s1 + $0x30] sm:$0xf]
  %v140 = vld [vmem:[%s1 + $0x34] sm:$0xf]
  %v141 = vld [vmem:[%s1 + $0x38] sm:$0xf]
  %v142 = vld [vmem:[%s1 + $0x3c] sm:$0xf]
  %v143 = vld [vmem:[%s1 + $0x40] sm:$0xf]
  %v144 = vld [vmem:[%s1 + $0x44] sm:$0xf]
  %v145 = vld [vmem:[%s1 + $0x48] sm:$0xf]
  %v146 = vld [vmem:[%s1 + $0x4c] sm:$0xf]
  %v147 = vld [vmem:[%s1 + $0x50] sm:$0xf]
  %v148 = vld [vmem:[%s1 + $0x54] sm:$0xf]
  %v149 = vld [vmem:[%s1 + $0x58] sm:$0xf]
  %v150 = vld [vmem:[%s1 + $0x5c] sm:$0xf]
  %v151 = vld [vmem:[%s1 + $0x60] sm:$0xf]
  %v152 = vld [vmem:[%s1 + $0x64] sm:$0xf]
  %v153 = vld [vmem:[%s1 + $0x68] sm:$0xf]
  %v154 = vld [vmem:[%s1 + $0x6c] sm:$0xf]
  %v155 = vld [vmem:[%s1 + $0x70] sm:$0xf]
  %v156 = vld [vmem:[%s1 + $0x74] sm:$0xf]
  %v157 = vld [vmem:[%s1 + $0x78] sm:$0xf]
  %v158 = vld [vmem:[%s1 + $0x7c] sm:$0xf]
  %v159 = vld [vmem:[%s1 + $0x80] sm:$0xf]
  %v160 = vld [vmem:[%s1 + $0x84] sm:$0xf]
  %v161 = vld [vmem:[%s1 + $0x88] sm:$0xf]
  %v162 = vld [vmem:[%s1 + $0x8c] sm:$0xf]
  %v275 = vunpack.c.l.b16 %v15
  %v276 = vunpack.c.h.b16 %v15
  %v277 = vunpack.c.l.b16 %v16
  %v278 = vunpack.c.l.b16 %v17
  %v279 = vunpack.c.h.b16 %v17
  %v280 = vunpack.c.l.b16 %v18
  %v281 = vunpack.c.l.b16 %v19
  %v282 = vunpack.c.h.b16 %v19
  %v283 = vunpack.c.l.b16 %v20
  %v284 = vunpack.c.l.b16 %v21
  %v285 = vunpack.c.h.b16 %v21
  %v286 = vunpack.c.l.b16 %v22
  %v287 = vunpack.c.l.b16 %v23
  %v288 = vunpack.c.h.b16 %v23
  %v289 = vunpack.c.l.b16 %v24
  %v290 = vunpack.c.l.b16 %v25
  %v291 = vunpack.c.h.b16 %v25
  %v292 = vunpack.c.l.b16 %v26
  %v293 = vunpack.c.l.b16 %v27
  %v294 = vunpack.c.h.b16 %v27
  %v295 = vunpack.c.l.b16 %v28
  %v296 = vunpack.c.l.b16 %v29
  %v297 = vunpack.c.h.b16 %v29
  %v298 = vunpack.c.l.b16 %v30
  %v299 = vunpack.c.l.b16 %v31
  %v300 = vunpack.c.h.b16 %v31
  %v301 = vunpack.c.l.b16 %v32
  %v302 = vunpack.c.l.b16 %v33
  %v303 = vunpack.c.h.b16 %v33
  %v304 = vunpack.c.l.b16 %v34
  %v305 = vunpack.c.l.b16 %v35
  %v306 = vunpack.c.h.b16 %v35
  %v307 = vunpack.c.l.b16 %v36
  %v308 = vunpack.c.l.b16 %v37
  %v309 = vunpack.c.h.b16 %v37
  %v310 = vunpack.c.l.b16 %v38
  %v311 = vunpack.c.l.b16 %v39
  %v312 = vunpack.c.h.b16 %v39
  %v313 = vunpack.c.l.b16 %v40
  %v314 = vunpack.c.l.b16 %v41
  %v315 = vunpack.c.h.b16 %v41
  %v316 = vunpack.c.l.b16 %v42
  %v317 = vunpack.c.l.b16 %v43
  %v318 = vunpack.c.h.b16 %v43
  %v319 = vunpack.c.l.b16 %v44
  %v320 = vunpack.c.l.b16 %v45
  %v321 = vunpack.c.h.b16 %v45
  %v322 = vunpack.c.l.b16 %v46
  %v323 = vunpack.c.l.b16 %v47
  %v324 = vunpack.c.h.b16 %v47
  %v325 = vunpack.c.l.b16 %v48
  %v326 = vunpack.c.l.b16 %v49
  %v327 = vunpack.c.h.b16 %v49
  %v328 = vunpack.c.l.b16 %v50
  %v329 = vunpack.c.l.b16 %v51
  %v330 = vunpack.c.h.b16 %v51
  %v331 = vunpack.c.l.b16 %v52
  %v332 = vunpack.c.l.b16 %v53
  %v333 = vunpack.c.h.b16 %v53
  %v334 = vunpack.c.l.b16 %v54
  %v335 = vunpack.c.l.b16 %v55
  %v336 = vunpack.c.h.b16 %v55
  %v337 = vunpack.c.l.b16 %v56
  %v338 = vunpack.c.l.b16 %v57
  %v339 = vunpack.c.h.b16 %v57
  %v340 = vunpack.c.l.b16 %v58
  %v341 = vunpack.c.l.b16 %v59
  %v342 = vunpack.c.h.b16 %v59
  %v343 = vunpack.c.l.b16 %v60
  %v344 = vunpack.c.l.b16 %v61
  %v345 = vunpack.c.h.b16 %v61
  %v346 = vunpack.c.l.b16 %v62
  %v347 = vunpack.c.l.b16 %v63
  %v348 = vunpack.c.h.b16 %v63
  %v349 = vunpack.c.l.b16 %v64
  %v350 = vunpack.c.l.b16 %v65
  %v351 = vunpack.c.h.b16 %v65
  %v352 = vunpack.c.l.b16 %v66
  %v353 = vunpack.c.l.b16 %v67
  %v354 = vunpack.c.h.b16 %v67
  %v355 = vunpack.c.l.b16 %v68
  %v356 = vunpack.c.l.b16 %v69
  %v357 = vunpack.c.h.b16 %v69
  %v358 = vunpack.c.l.b16 %v70
  %v359 = vunpack.c.l.b16 %v71
  %v360 = vunpack.c.h.b16 %v71
  %v361 = vunpack.c.l.b16 %v72
  %v362 = vunpack.c.l.b16 %v73
  %v363 = vunpack.c.h.b16 %v73
  %v364 = vunpack.c.l.b16 %v74
  %v365 = vunpack.c.l.b16 %v75
  %v366 = vunpack.c.h.b16 %v75
  %v367 = vunpack.c.l.b16 %v76
  %v368 = vunpack.c.l.b16 %v77
  %v369 = vunpack.c.h.b16 %v77
  %v370 = vunpack.c.l.b16 %v78
  %v371 = vunpack.c.l.b16 %v79
  %v372 = vunpack.c.h.b16 %v79
  %v373 = vunpack.c.l.b16 %v80
  %v374 = vunpack.c.l.b16 %v81
  %v375 = vunpack.c.h.b16 %v81
  %v376 = vunpack.c.l.b16 %v82
  %v377 = vunpack.c.l.b16 %v83
  %v378 = vunpack.c.h.b16 %v83
  %v379 = vunpack.c.l.b16 %v84
  %v380 = vunpack.c.l.b16 %v85
  %v381 = vunpack.c.h.b16 %v85
  %v382 = vunpack.c.l.b16 %v86
  %v383 = vunpack.c.l.b16 %v87
  %v384 = vunpack.c.h.b16 %v87
  %v385 = vunpack.c.l.b16 %v88
  %v386 = vunpack.c.l.b16 %v89
  %v387 = vunpack.c.h.b16 %v89
  %v388 = vunpack.c.l.b16 %v90
  %v389 = vunpack.c.l.b16 %v91
  %v390 = vunpack.c.h.b16 %v91
  %v391 = vunpack.c.l.b16 %v92
  %v392 = vunpack.c.l.b16 %v93
  %v393 = vunpack.c.h.b16 %v93
  %v394 = vunpack.c.l.b16 %v94
  %v395 = vunpack.c.l.b16 %v95
  %v396 = vunpack.c.h.b16 %v95
  %v397 = vunpack.c.l.b16 %v96
  %v398 = vunpack.c.l.b16 %v97
  %v399 = vunpack.c.h.b16 %v97
  %v400 = vunpack.c.l.b16 %v98
  %v401 = vunpack.c.l.b16 %v99
  %v402 = vunpack.c.h.b16 %v99
  %v403 = vunpack.c.l.b16 %v100
  %v404 = vunpack.c.l.b16 %v101
  %v405 = vunpack.c.h.b16 %v101
  %v406 = vunpack.c.l.b16 %v102
  %v407 = vunpack.c.l.b16 %v103
  %v408 = vunpack.c.h.b16 %v103
  %v409 = vunpack.c.l.b16 %v104
  %v410 = vunpack.c.l.b16 %v105
  %v411 = vunpack.c.h.b16 %v105
  %v412 = vunpack.c.l.b16 %v106
  %v413 = vunpack.c.l.b16 %v107
  %v414 = vunpack.c.h.b16 %v107
  %v415 = vunpack.c.l.b16 %v108
  %v416 = vunpack.c.l.b16 %v109
  %v417 = vunpack.c.h.b16 %v109
  %v418 = vunpack.c.l.b16 %v110
  %v419 = vunpack.c.l.b16 %v111
  %v420 = vunpack.c.h.b16 %v111
  %v421 = vunpack.c.l.b16 %v112
  %v422 = vunpack.c.l.b16 %v113
  %v423 = vunpack.c.h.b16 %v113
  %v424 = vunpack.c.l.b16 %v114
  %v425 = vunpack.c.l.b16 %v115
  %v426 = vunpack.c.h.b16 %v115
  %v427 = vunpack.c.l.b16 %v116
  %v428 = vunpack.c.l.b16 %v117
  %v429 = vunpack.c.h.b16 %v117
  %v430 = vunpack.c.l.b16 %v118
  %v431 = vunpack.c.l.b16 %v119
  %v432 = vunpack.c.h.b16 %v119
  %v433 = vunpack.c.l.b16 %v120
  %v434 = vunpack.c.l.b16 %v121
  %v435 = vunpack.c.h.b16 %v121
  %v436 = vunpack.c.l.b16 %v122
  %v437 = vunpack.c.l.b16 %v123
  %v438 = vunpack.c.h.b16 %v123
  %v439 = vunpack.c.l.b16 %v124
  %v440 = vunpack.c.l.b16 %v125
  %v441 = vunpack.c.h.b16 %v125
  %v442 = vunpack.c.l.b16 %v126
  %v443 = vpack.c.b16 %v278, %v275
  %v444 = vpack.c.b16 %v279, %v276
  %v445 = vpack.c.b16 %v280, %v277
  %v446 = vpack.c.b16 %v284, %v281
  %v447 = vpack.c.b16 %v285, %v282
  %v448 = vpack.c.b16 %v286, %v283
  %v449 = vpack.c.b16 %v290, %v287
  %v450 = vpack.c.b16 %v291, %v288
  %v451 = vpack.c.b16 %v292, %v289
  %v452 = vpack.c.b16 %v296, %v293
  %v453 = vpack.c.b16 %v297, %v294
  %v454 = vpack.c.b16 %v298, %v295
  %v455 = vpack.c.b16 %v302, %v299
  %v456 = vpack.c.b16 %v303, %v300
  %v457 = vpack.c.b16 %v304, %v301
  %v458 = vpack.c.b16 %v308, %v305
  %v459 = vpack.c.b16 %v309, %v306
  %v460 = vpack.c.b16 %v310, %v307
  %v461 = vpack.c.b16 %v314, %v311
  %v462 = vpack.c.b16 %v315, %v312
  %v463 = vpack.c.b16 %v316, %v313
  %v464 = vpack.c.b16 %v320, %v317
  %v465 = vpack.c.b16 %v321, %v318
  %v466 = vpack.c.b16 %v322, %v319
  %v467 = vpack.c.b16 %v326, %v323
  %v468 = vpack.c.b16 %v327, %v324
  %v469 = vpack.c.b16 %v328, %v325
  %v470 = vpack.c.b16 %v332, %v329
  %v471 = vpack.c.b16 %v333, %v330
  %v472 = vpack.c.b16 %v334, %v331
  %v473 = vpack.c.b16 %v338, %v335
  %v474 = vpack.c.b16 %v339, %v336
  %v475 = vpack.c.b16 %v340, %v337
  %v476 = vpack.c.b16 %v344, %v341
  %v477 = vpack.c.b16 %v345, %v342
  %v478 = vpack.c.b16 %v346, %v343
  %v479 = vpack.c.b16 %v350, %v347
  %v480 = vpack.c.b16 %v351, %v348
  %v481 = vpack.c.b16 %v352, %v349
  %v482 = vpack.c.b16 %v356, %v353
  %v483 = vpack.c.b16 %v357, %v354
  %v484 = vpack.c.b16 %v358, %v355
  %v485 = vpack.c.b16 %v362, %v359
  %v486 = vpack.c.b16 %v363, %v360
  %v487 = vpack.c.b16 %v364, %v361
  %v488 = vpack.c.b16 %v368, %v365
  %v489 = vpack.c.b16 %v369, %v366
  %v490 = vpack.c.b16 %v370, %v367
  %v491 = vpack.c.b16 %v374, %v371
  %v492 = vpack.c.b16 %v375, %v372
  %v493 = vpack.c.b16 %v376, %v373
  %v494 = vpack.c.b16 %v380, %v377
  %v495 = vpack.c.b16 %v381, %v378
  %v496 = vpack.c.b16 %v382, %v379
  %v497 = vpack.c.b16 %v386, %v383
  %v498 = vpack.c.b16 %v387, %v384
  %v499 = vpack.c.b16 %v388, %v385
  %v500 = vpack.c.b16 %v392, %v389
  %v501 = vpack.c.b16 %v393, %v390
  %v502 = vpack.c.b16 %v394, %v391
  %v503 = vpack.c.b16 %v398, %v395
  %v504 = vpack.c.b16 %v399, %v396
  %v505 = vpack.c.b16 %v400, %v397
  %v506 = vpack.c.b16 %v404, %v401
  %v507 = vpack.c.b16 %v405, %v402
  %v508 = vpack.c.b16 %v406, %v403
  %v509 = vpack.c.b16 %v410, %v407
  %v510 = vpack.c.b16 %v411, %v408
  %v511 = vpack.c.b16 %v412, %v409
  %v512 = vpack.c.b16 %v416, %v413
  %v513 = vpack.c.b16 %v417, %v414
  %v514 = vpack.c.b16 %v418, %v415
  %v515 = vpack.c.b16 %v422, %v419
  %v516 = vpack.c.b16 %v423, %v420
  %v517 = vpack.c.b16 %v424, %v421
  %v518 = vpack.c.b16 %v428, %v425
  %v519 = vpack.c.b16 %v429, %v426
  %v520 = vpack.c.b16 %v430, %v427
  %v521 = vpack.c.b16 %v434, %v431
  %v522 = vpack.c.b16 %v435, %v432
  %v523 = vpack.c.b16 %v436, %v433
  %v524 = vpack.c.b16 %v440, %v437
  %v525 = vpack.c.b16 %v441, %v438
  %v526 = vpack.c.b16 %v442, %v439
  %v619 = vunpack.c.l.b16 %v127
  %v620 = vunpack.c.l.b16 %v128
  %v621 = vunpack.c.l.b16 %v129
  %v622 = vunpack.c.l.b16 %v130
  %v623 = vunpack.c.l.b16 %v131
  %v624 = vunpack.c.l.b16 %v132
  %v625 = vunpack.c.l.b16 %v133
  %v626 = vunpack.c.l.b16 %v134
  %v627 = vunpack.c.l.b16 %v135
  %v628 = vunpack.c.l.b16 %v136
  %v629 = vunpack.c.l.b16 %v137
  %v630 = vunpack.c.l.b16 %v138
  %v631 = vunpack.c.l.b16 %v139
  %v632 = vunpack.c.l.b16 %v140
  %v633 = vunpack.c.l.b16 %v141
  %v634 = vunpack.c.l.b16 %v142
  %v635 = vunpack.c.l.b16 %v143
  %v636 = vunpack.c.l.b16 %v144
  %v637 = vunpack.c.l.b16 %v145
  %v638 = vunpack.c.l.b16 %v146
  %v639 = vunpack.c.l.b16 %v147
  %v640 = vunpack.c.l.b16 %v148
  %v641 = vunpack.c.l.b16 %v149
  %v642 = vunpack.c.l.b16 %v150
  %v643 = vunpack.c.l.b16 %v151
  %v644 = vunpack.c.l.b16 %v152
  %v645 = vunpack.c.l.b16 %v153
  %v646 = vunpack.c.l.b16 %v154
  %v647 = vunpack.c.l.b16 %v155
  %v648 = vunpack.c.l.b16 %v156
  %v649 = vunpack.c.l.b16 %v157
  %v650 = vunpack.c.l.b16 %v158
  %v651 = vunpack.c.l.b16 %v159
  %v652 = vunpack.c.l.b16 %v160
  %v653 = vunpack.c.l.b16 %v161
  %v654 = vunpack.c.l.b16 %v162
  %v655 = vpack.c.b16 %v620, %v619
  %v656 = vpack.c.b16 %v622, %v621
  %v657 = vpack.c.b16 %v624, %v623
  %v658 = vpack.c.b16 %v626, %v625
  %v659 = vpack.c.b16 %v628, %v627
  %v660 = vpack.c.b16 %v630, %v629
  %v661 = vpack.c.b16 %v632, %v631
  %v662 = vpack.c.b16 %v634, %v633
  %v663 = vpack.c.b16 %v636, %v635
  %v664 = vpack.c.b16 %v638, %v637
  %v665 = vpack.c.b16 %v640, %v639
  %v666 = vpack.c.b16 %v642, %v641
  %v667 = vpack.c.b16 %v644, %v643
  %v668 = vpack.c.b16 %v646, %v645
  %v669 = vpack.c.b16 %v648, %v647
  %v670 = vpack.c.b16 %v650, %v649
  %v671 = vpack.c.b16 %v652, %v651
  %v672 = vpack.c.b16 %v654, %v653
  %vm691 = vcmask 261120
  %v693 = vsel %vm691, %v445, 0
  %v696 = vsel %vm691, %v448, 0
  %v699 = vsel %vm691, %v451, 0
  %v702 = vsel %vm691, %v454, 0
  %v705 = vsel %vm691, %v457, 0
  %v708 = vsel %vm691, %v460, 0
  %v711 = vsel %vm691, %v463, 0
  %v714 = vsel %vm691, %v466, 0
  %v717 = vsel %vm691, %v469, 0
  %v720 = vsel %vm691, %v472, 0
  %v723 = vsel %vm691, %v475, 0
  %v726 = vsel %vm691, %v478, 0
  %v729 = vsel %vm691, %v481, 0
  %v732 = vsel %vm691, %v484, 0
  %v735 = vsel %vm691, %v487, 0
  %v738 = vsel %vm691, %v490, 0
  %v741 = vsel %vm691, %v493, 0
  %v744 = vsel %vm691, %v496, 0
  %v747 = vsel %vm691, %v499, 0
  %v750 = vsel %vm691, %v502, 0
  %v753 = vsel %vm691, %v505, 0
  %v756 = vsel %vm691, %v508, 0
  %v759 = vsel %vm691, %v511, 0
  %v762 = vsel %vm691, %v514, 0
  %v765 = vsel %vm691, %v517, 0
  %v768 = vsel %vm691, %v520, 0
  %v771 = vsel %vm691, %v523, 0
  %v774 = vsel %vm691, %v526, 0
  %776 = vmatpush.bf16.msra.mxu0 %v662
  %777 = vmatpush.bf16.msra.mxu0 %v661
  %778 = vmatpush.bf16.msra.mxu0 %v660
  %779 = vmatpush.bf16.msra.mxu0 %v659
  %780 = vmatpush.bf16.msra.mxu0 %v658
  %781 = vmatpush.bf16.msra.mxu0 %v657
  %782 = vmatpush.bf16.msra.mxu0 %v656
  %783 = vmatpush.bf16.msra.mxu0 %v655
  %784 = vmatmul.bf16.gmra.mxu0 %v443
  %v785 = vpop.f32.mrf.mxu0
  %v786 = vadd.f32 0.0, %v785
  %v787 = vpop.f32.mrf.mxu0
  %v788 = vadd.f32 0.0, %v787
  %789 = vmatmul.bf16.gmra.mxu0 %v446
  %v790 = vpop.f32.mrf.mxu0
  %v791 = vadd.f32 0.0, %v790
  %v792 = vpop.f32.mrf.mxu0
  %v793 = vadd.f32 0.0, %v792
  %794 = vmatmul.bf16.gmra.mxu0 %v449
  %v795 = vpop.f32.mrf.mxu0
  %v796 = vadd.f32 0.0, %v795
  %v797 = vpop.f32.mrf.mxu0
  %v798 = vadd.f32 0.0, %v797
  %799 = vmatmul.bf16.gmra.mxu0 %v452
  %v800 = vpop.f32.mrf.mxu0
  %v801 = vadd.f32 0.0, %v800
  %v802 = vpop.f32.mrf.mxu0
  %v803 = vadd.f32 0.0, %v802
  %804 = vmatmul.bf16.gmra.mxu0 %v455
  %v805 = vpop.f32.mrf.mxu0
  %v806 = vadd.f32 0.0, %v805
  %v807 = vpop.f32.mrf.mxu0
  %v808 = vadd.f32 0.0, %v807
  %809 = vmatmul.bf16.gmra.mxu0 %v458
  %v810 = vpop.f32.mrf.mxu0
  %v811 = vadd.f32 0.0, %v810
  %v812 = vpop.f32.mrf.mxu0
  %v813 = vadd.f32 0.0, %v812
  %814 = vmatmul.bf16.gmra.mxu0 %v461
  %v815 = vpop.f32.mrf.mxu0
  %v816 = vadd.f32 0.0, %v815
  %v817 = vpop.f32.mrf.mxu0
  %v818 = vadd.f32 0.0, %v817
  %819 = vmatmul.bf16.gmra.mxu0 %v464
  %v820 = vpop.f32.mrf.mxu0
  %v821 = vadd.f32 0.0, %v820
  %v822 = vpop.f32.mrf.mxu0
  %v823 = vadd.f32 0.0, %v822
  %824 = vmatmul.bf16.gmra.mxu0 %v467
  %v825 = vpop.f32.mrf.mxu0
  %v826 = vadd.f32 0.0, %v825
  %v827 = vpop.f32.mrf.mxu0
  %v828 = vadd.f32 0.0, %v827
  %829 = vmatmul.bf16.gmra.mxu0 %v470
  %v830 = vpop.f32.mrf.mxu0
  %v831 = vadd.f32 0.0, %v830
  %v832 = vpop.f32.mrf.mxu0
  %v833 = vadd.f32 0.0, %v832
  %834 = vmatmul.bf16.gmra.mxu0 %v473
  %v835 = vpop.f32.mrf.mxu0
  %v836 = vadd.f32 0.0, %v835
  %v837 = vpop.f32.mrf.mxu0
  %v838 = vadd.f32 0.0, %v837
  %839 = vmatmul.bf16.gmra.mxu0 %v476
  %v840 = vpop.f32.mrf.mxu0
  %v841 = vadd.f32 0.0, %v840
  %v842 = vpop.f32.mrf.mxu0
  %v843 = vadd.f32 0.0, %v842
  %844 = vmatmul.bf16.gmra.mxu0 %v479
  %v845 = vpop.f32.mrf.mxu0
  %v846 = vadd.f32 0.0, %v845
  %v847 = vpop.f32.mrf.mxu0
  %v848 = vadd.f32 0.0, %v847
  %849 = vmatmul.bf16.gmra.mxu0 %v482
  %v850 = vpop.f32.mrf.mxu0
  %v851 = vadd.f32 0.0, %v850
  %v852 = vpop.f32.mrf.mxu0
  %v853 = vadd.f32 0.0, %v852
  %854 = vmatmul.bf16.gmra.mxu0 %v485
  %v855 = vpop.f32.mrf.mxu0
  %v856 = vadd.f32 0.0, %v855
  %v857 = vpop.f32.mrf.mxu0
  %v858 = vadd.f32 0.0, %v857
  %859 = vmatmul.bf16.gmra.mxu0 %v488
  %v860 = vpop.f32.mrf.mxu0
  %v861 = vadd.f32 0.0, %v860
  %v862 = vpop.f32.mrf.mxu0
  %v863 = vadd.f32 0.0, %v862
  %864 = vmatmul.bf16.gmra.mxu0 %v491
  %v865 = vpop.f32.mrf.mxu0
  %v866 = vadd.f32 0.0, %v865
  %v867 = vpop.f32.mrf.mxu0
  %v868 = vadd.f32 0.0, %v867
  %869 = vmatmul.bf16.gmra.mxu0 %v494
  %v870 = vpop.f32.mrf.mxu0
  %v871 = vadd.f32 0.0, %v870
  %v872 = vpop.f32.mrf.mxu0
  %v873 = vadd.f32 0.0, %v872
  %874 = vmatmul.bf16.gmra.mxu0 %v497
  %v875 = vpop.f32.mrf.mxu0
  %v876 = vadd.f32 0.0, %v875
  %v877 = vpop.f32.mrf.mxu0
  %v878 = vadd.f32 0.0, %v877
  %879 = vmatmul.bf16.gmra.mxu0 %v500
  %v880 = vpop.f32.mrf.mxu0
  %v881 = vadd.f32 0.0, %v880
  %v882 = vpop.f32.mrf.mxu0
  %v883 = vadd.f32 0.0, %v882
  %884 = vmatmul.bf16.gmra.mxu0 %v503
  %v885 = vpop.f32.mrf.mxu0
  %v886 = vadd.f32 0.0, %v885
  %v887 = vpop.f32.mrf.mxu0
  %v888 = vadd.f32 0.0, %v887
  %889 = vmatmul.bf16.gmra.mxu0 %v506
  %v890 = vpop.f32.mrf.mxu0
  %v891 = vadd.f32 0.0, %v890
  %v892 = vpop.f32.mrf.mxu0
  %v893 = vadd.f32 0.0, %v892
  %894 = vmatmul.bf16.gmra.mxu0 %v509
  %v895 = vpop.f32.mrf.mxu0
  %v896 = vadd.f32 0.0, %v895
  %v897 = vpop.f32.mrf.mxu0
  %v898 = vadd.f32 0.0, %v897
  %899 = vmatmul.bf16.gmra.mxu0 %v512
  %v900 = vpop.f32.mrf.mxu0
  %v901 = vadd.f32 0.0, %v900
  %v902 = vpop.f32.mrf.mxu0
  %v903 = vadd.f32 0.0, %v902
  %904 = vmatmul.bf16.gmra.mxu0 %v515
  %v905 = vpop.f32.mrf.mxu0
  %v906 = vadd.f32 0.0, %v905
  %v907 = vpop.f32.mrf.mxu0
  %v908 = vadd.f32 0.0, %v907
  %909 = vmatmul.bf16.gmra.mxu0 %v518
  %v910 = vpop.f32.mrf.mxu0
  %v911 = vadd.f32 0.0, %v910
  %v912 = vpop.f32.mrf.mxu0
  %v913 = vadd.f32 0.0, %v912
  %914 = vmatmul.bf16.gmra.mxu0 %v521
  %v915 = vpop.f32.mrf.mxu0
  %v916 = vadd.f32 0.0, %v915
  %v917 = vpop.f32.mrf.mxu0
  %v918 = vadd.f32 0.0, %v917
  %919 = vmatmul.bf16.gmra.mxu0 %v524
  %v920 = vpop.f32.mrf.mxu0
  %v921 = vadd.f32 0.0, %v920
  %v922 = vpop.f32.mrf.mxu0
  %v923 = vadd.f32 0.0, %v922
  %924 = vdwg.mxu0
  %925 = vmatpush.bf16.msra.mxu0 %v670
  %926 = vmatpush.bf16.msra.mxu0 %v669
  %927 = vmatpush.bf16.msra.mxu0 %v668
  %928 = vmatpush.bf16.msra.mxu0 %v667
  %929 = vmatpush.bf16.msra.mxu0 %v666
  %930 = vmatpush.bf16.msra.mxu0 %v665
  %931 = vmatpush.bf16.msra.mxu0 %v664
  %932 = vmatpush.bf16.msra.mxu0 %v663
  %933 = vmatmul.bf16.gmra.mxu0 %v444
  %v934 = vpop.f32.mrf.mxu0
  %v935 = vadd.f32 %v786, %v934
  %v936 = vpop.f32.mrf.mxu0
  %v937 = vadd.f32 %v788, %v936
  %938 = vmatmul.bf16.gmra.mxu0 %v447
  %v939 = vpop.f32.mrf.mxu0
  %v940 = vadd.f32 %v791, %v939
  %v941 = vpop.f32.mrf.mxu0
  %v942 = vadd.f32 %v793, %v941
  %943 = vmatmul.bf16.gmra.mxu0 %v450
  %v944 = vpop.f32.mrf.mxu0
  %v945 = vadd.f32 %v796, %v944
  %v946 = vpop.f32.mrf.mxu0
  %v947 = vadd.f32 %v798, %v946
  %948 = vmatmul.bf16.gmra.mxu0 %v453
  %v949 = vpop.f32.mrf.mxu0
  %v950 = vadd.f32 %v801, %v949
  %v951 = vpop.f32.mrf.mxu0
  %v952 = vadd.f32 %v803, %v951
  %953 = vmatmul.bf16.gmra.mxu0 %v456
  %v954 = vpop.f32.mrf.mxu0
  %v955 = vadd.f32 %v806, %v954
  %v956 = vpop.f32.mrf.mxu0
  %v957 = vadd.f32 %v808, %v956
  %958 = vmatmul.bf16.gmra.mxu0 %v459
  %v959 = vpop.f32.mrf.mxu0
  %v960 = vadd.f32 %v811, %v959
  %v961 = vpop.f32.mrf.mxu0
  %v962 = vadd.f32 %v813, %v961
  %963 = vmatmul.bf16.gmra.mxu0 %v462
  %v964 = vpop.f32.mrf.mxu0
  %v965 = vadd.f32 %v816, %v964
  %v966 = vpop.f32.mrf.mxu0
  %v967 = vadd.f32 %v818, %v966
  %968 = vmatmul.bf16.gmra.mxu0 %v465
  %v969 = vpop.f32.mrf.mxu0
  %v970 = vadd.f32 %v821, %v969
  %v971 = vpop.f32.mrf.mxu0
  %v972 = vadd.f32 %v823, %v971
  %973 = vmatmul.bf16.gmra.mxu0 %v468
  %v974 = vpop.f32.mrf.mxu0
  %v975 = vadd.f32 %v826, %v974
  %v976 = vpop.f32.mrf.mxu0
  %v977 = vadd.f32 %v828, %v976
  %978 = vmatmul.bf16.gmra.mxu0 %v471
  %v979 = vpop.f32.mrf.mxu0
  %v980 = vadd.f32 %v831, %v979
  %v981 = vpop.f32.mrf.mxu0
  %v982 = vadd.f32 %v833, %v981
  %983 = vmatmul.bf16.gmra.mxu0 %v474
  %v984 = vpop.f32.mrf.mxu0
  %v985 = vadd.f32 %v836, %v984
  %v986 = vpop.f32.mrf.mxu0
  %v987 = vadd.f32 %v838, %v986
  %988 = vmatmul.bf16.gmra.mxu0 %v477
  %v989 = vpop.f32.mrf.mxu0
  %v990 = vadd.f32 %v841, %v989
  %v991 = vpop.f32.mrf.mxu0
  %v992 = vadd.f32 %v843, %v991
  %993 = vmatmul.bf16.gmra.mxu0 %v480
  %v994 = vpop.f32.mrf.mxu0
  %v995 = vadd.f32 %v846, %v994
  %v996 = vpop.f32.mrf.mxu0
  %v997 = vadd.f32 %v848, %v996
  %998 = vmatmul.bf16.gmra.mxu0 %v483
  %v999 = vpop.f32.mrf.mxu0
  %v1000 = vadd.f32 %v851, %v999
  %v1001 = vpop.f32.mrf.mxu0
  %v1002 = vadd.f32 %v853, %v1001
  %1003 = vmatmul.bf16.gmra.mxu0 %v486
  %v1004 = vpop.f32.mrf.mxu0
  %v1005 = vadd.f32 %v856, %v1004
  %v1006 = vpop.f32.mrf.mxu0
  %v1007 = vadd.f32 %v858, %v1006
  %1008 = vmatmul.bf16.gmra.mxu0 %v489
  %v1009 = vpop.f32.mrf.mxu0
  %v1010 = vadd.f32 %v861, %v1009
  %v1011 = vpop.f32.mrf.mxu0
  %v1012 = vadd.f32 %v863, %v1011
  %1013 = vmatmul.bf16.gmra.mxu0 %v492
  %v1014 = vpop.f32.mrf.mxu0
  %v1015 = vadd.f32 %v866, %v1014
  %v1016 = vpop.f32.mrf.mxu0
  %v1017 = vadd.f32 %v868, %v1016
  %1018 = vmatmul.bf16.gmra.mxu0 %v495
  %v1019 = vpop.f32.mrf.mxu0
  %v1020 = vadd.f32 %v871, %v1019
  %v1021 = vpop.f32.mrf.mxu0
  %v1022 = vadd.f32 %v873, %v1021
  %1023 = vmatmul.bf16.gmra.mxu0 %v498
  %v1024 = vpop.f32.mrf.mxu0
  %v1025 = vadd.f32 %v876, %v1024
  %v1026 = vpop.f32.mrf.mxu0
  %v1027 = vadd.f32 %v878, %v1026
  %1028 = vmatmul.bf16.gmra.mxu0 %v501
  %v1029 = vpop.f32.mrf.mxu0
  %v1030 = vadd.f32 %v881, %v1029
  %v1031 = vpop.f32.mrf.mxu0
  %v1032 = vadd.f32 %v883, %v1031
  %1033 = vmatmul.bf16.gmra.mxu0 %v504
  %v1034 = vpop.f32.mrf.mxu0
  %v1035 = vadd.f32 %v886, %v1034
  %v1036 = vpop.f32.mrf.mxu0
  %v1037 = vadd.f32 %v888, %v1036
  %1038 = vmatmul.bf16.gmra.mxu0 %v507
  %v1039 = vpop.f32.mrf.mxu0
  %v1040 = vadd.f32 %v891, %v1039
  %v1041 = vpop.f32.mrf.mxu0
  %v1042 = vadd.f32 %v893, %v1041
  %1043 = vmatmul.bf16.gmra.mxu0 %v510
  %v1044 = vpop.f32.mrf.mxu0
  %v1045 = vadd.f32 %v896, %v1044
  %v1046 = vpop.f32.mrf.mxu0
  %v1047 = vadd.f32 %v898, %v1046
  %1048 = vmatmul.bf16.gmra.mxu0 %v513
  %v1049 = vpop.f32.mrf.mxu0
  %v1050 = vadd.f32 %v901, %v1049
  %v1051 = vpop.f32.mrf.mxu0
  %v1052 = vadd.f32 %v903, %v1051
  %1053 = vmatmul.bf16.gmra.mxu0 %v516
  %v1054 = vpop.f32.mrf.mxu0
  %v1055 = vadd.f32 %v906, %v1054
  %v1056 = vpop.f32.mrf.mxu0
  %v1057 = vadd.f32 %v908, %v1056
  %1058 = vmatmul.bf16.gmra.mxu0 %v519
  %v1059 = vpop.f32.mrf.mxu0
  %v1060 = vadd.f32 %v911, %v1059
  %v1061 = vpop.f32.mrf.mxu0
  %v1062 = vadd.f32 %v913, %v1061
  %1063 = vmatmul.bf16.gmra.mxu0 %v522
  %v1064 = vpop.f32.mrf.mxu0
  %v1065 = vadd.f32 %v916, %v1064
  %v1066 = vpop.f32.mrf.mxu0
  %v1067 = vadd.f32 %v918, %v1066
  %1068 = vmatmul.bf16.gmra.mxu0 %v525
  %v1069 = vpop.f32.mrf.mxu0
  %v1070 = vadd.f32 %v921, %v1069
  %v1071 = vpop.f32.mrf.mxu0
  %v1072 = vadd.f32 %v923, %v1071
  %1073 = vdwg.mxu0
  %1074 = vmatpush.bf16.msra.mxu0 0
  %1075 = vmatpush.bf16.msra.mxu0 0
  %1076 = vmatpush.bf16.msra.mxu0 0
  %1077 = vmatpush.bf16.msra.mxu0 0
  %1078 = vmatpush.bf16.msra.mxu0 0
  %1079 = vmatpush.bf16.msra.mxu0 0
  %1080 = vmatpush.bf16.msra.mxu0 %v672
  %1081 = vmatpush.bf16.msra.mxu0 %v671
  %1082 = vmatmul.bf16.gmra.mxu0 %v693
  %v1083 = vpop.f32.mrf.mxu0
  %v1084 = vadd.f32 %v935, %v1083
  %v1085 = vpop.f32.mrf.mxu0
  %v1086 = vadd.f32 %v937, %v1085
  %1087 = vmatmul.bf16.gmra.mxu0 %v696
  %v1088 = vpop.f32.mrf.mxu0
  %v1089 = vadd.f32 %v940, %v1088
  %v1090 = vpop.f32.mrf.mxu0
  %v1091 = vadd.f32 %v942, %v1090
  %1092 = vmatmul.bf16.gmra.mxu0 %v699
  %v1093 = vpop.f32.mrf.mxu0
  %v1094 = vadd.f32 %v945, %v1093
  %v1095 = vpop.f32.mrf.mxu0
  %v1096 = vadd.f32 %v947, %v1095
  %1097 = vmatmul.bf16.gmra.mxu0 %v702
  %v1098 = vpop.f32.mrf.mxu0
  %v1099 = vadd.f32 %v950, %v1098
  %v1100 = vpop.f32.mrf.mxu0
  %v1101 = vadd.f32 %v952, %v1100
  %1102 = vmatmul.bf16.gmra.mxu0 %v705
  %v1103 = vpop.f32.mrf.mxu0
  %v1104 = vadd.f32 %v955, %v1103
  %v1105 = vpop.f32.mrf.mxu0
  %v1106 = vadd.f32 %v957, %v1105
  %1107 = vmatmul.bf16.gmra.mxu0 %v708
  %v1108 = vpop.f32.mrf.mxu0
  %v1109 = vadd.f32 %v960, %v1108
  %v1110 = vpop.f32.mrf.mxu0
  %v1111 = vadd.f32 %v962, %v1110
  %1112 = vmatmul.bf16.gmra.mxu0 %v711
  %v1113 = vpop.f32.mrf.mxu0
  %v1114 = vadd.f32 %v965, %v1113
  %v1115 = vpop.f32.mrf.mxu0
  %v1116 = vadd.f32 %v967, %v1115
  %1117 = vmatmul.bf16.gmra.mxu0 %v714
  %v1118 = vpop.f32.mrf.mxu0
  %v1119 = vadd.f32 %v970, %v1118
  %v1120 = vpop.f32.mrf.mxu0
  %v1121 = vadd.f32 %v972, %v1120
  %1122 = vmatmul.bf16.gmra.mxu0 %v717
  %v1123 = vpop.f32.mrf.mxu0
  %v1124 = vadd.f32 %v975, %v1123
  %v1125 = vpop.f32.mrf.mxu0
  %v1126 = vadd.f32 %v977, %v1125
  %1127 = vmatmul.bf16.gmra.mxu0 %v720
  %v1128 = vpop.f32.mrf.mxu0
  %v1129 = vadd.f32 %v980, %v1128
  %v1130 = vpop.f32.mrf.mxu0
  %v1131 = vadd.f32 %v982, %v1130
  %1132 = vmatmul.bf16.gmra.mxu0 %v723
  %v1133 = vpop.f32.mrf.mxu0
  %v1134 = vadd.f32 %v985, %v1133
  %v1135 = vpop.f32.mrf.mxu0
  %v1136 = vadd.f32 %v987, %v1135
  %1137 = vmatmul.bf16.gmra.mxu0 %v726
  %v1138 = vpop.f32.mrf.mxu0
  %v1139 = vadd.f32 %v990, %v1138
  %v1140 = vpop.f32.mrf.mxu0
  %v1141 = vadd.f32 %v992, %v1140
  %1142 = vmatmul.bf16.gmra.mxu0 %v729
  %v1143 = vpop.f32.mrf.mxu0
  %v1144 = vadd.f32 %v995, %v1143
  %v1145 = vpop.f32.mrf.mxu0
  %v1146 = vadd.f32 %v997, %v1145
  %1147 = vmatmul.bf16.gmra.mxu0 %v732
  %v1148 = vpop.f32.mrf.mxu0
  %v1149 = vadd.f32 %v1000, %v1148
  %v1150 = vpop.f32.mrf.mxu0
  %v1151 = vadd.f32 %v1002, %v1150
  %1152 = vmatmul.bf16.gmra.mxu0 %v735
  %v1153 = vpop.f32.mrf.mxu0
  %v1154 = vadd.f32 %v1005, %v1153
  %v1155 = vpop.f32.mrf.mxu0
  %v1156 = vadd.f32 %v1007, %v1155
  %1157 = vmatmul.bf16.gmra.mxu0 %v738
  %v1158 = vpop.f32.mrf.mxu0
  %v1159 = vadd.f32 %v1010, %v1158
  %v1160 = vpop.f32.mrf.mxu0
  %v1161 = vadd.f32 %v1012, %v1160
  %1162 = vmatmul.bf16.gmra.mxu0 %v741
  %v1163 = vpop.f32.mrf.mxu0
  %v1164 = vadd.f32 %v1015, %v1163
  %v1165 = vpop.f32.mrf.mxu0
  %v1166 = vadd.f32 %v1017, %v1165
  %1167 = vmatmul.bf16.gmra.mxu0 %v744
  %v1168 = vpop.f32.mrf.mxu0
  %v1169 = vadd.f32 %v1020, %v1168
  %v1170 = vpop.f32.mrf.mxu0
  %v1171 = vadd.f32 %v1022, %v1170
  %1172 = vmatmul.bf16.gmra.mxu0 %v747
  %v1173 = vpop.f32.mrf.mxu0
  %v1174 = vadd.f32 %v1025, %v1173
  %v1175 = vpop.f32.mrf.mxu0
  %v1176 = vadd.f32 %v1027, %v1175
  %1177 = vmatmul.bf16.gmra.mxu0 %v750
  %v1178 = vpop.f32.mrf.mxu0
  %v1179 = vadd.f32 %v1030, %v1178
  %v1180 = vpop.f32.mrf.mxu0
  %v1181 = vadd.f32 %v1032, %v1180
  %1182 = vmatmul.bf16.gmra.mxu0 %v753
  %v1183 = vpop.f32.mrf.mxu0
  %v1184 = vadd.f32 %v1035, %v1183
  %v1185 = vpop.f32.mrf.mxu0
  %v1186 = vadd.f32 %v1037, %v1185
  %1187 = vmatmul.bf16.gmra.mxu0 %v756
  %v1188 = vpop.f32.mrf.mxu0
  %v1189 = vadd.f32 %v1040, %v1188
  %v1190 = vpop.f32.mrf.mxu0
  %v1191 = vadd.f32 %v1042, %v1190
  %1192 = vmatmul.bf16.gmra.mxu0 %v759
  %v1193 = vpop.f32.mrf.mxu0
  %v1194 = vadd.f32 %v1045, %v1193
  %v1195 = vpop.f32.mrf.mxu0
  %v1196 = vadd.f32 %v1047, %v1195
  %1197 = vmatmul.bf16.gmra.mxu0 %v762
  %v1198 = vpop.f32.mrf.mxu0
  %v1199 = vadd.f32 %v1050, %v1198
  %v1200 = vpop.f32.mrf.mxu0
  %v1201 = vadd.f32 %v1052, %v1200
  %1202 = vmatmul.bf16.gmra.mxu0 %v765
  %v1203 = vpop.f32.mrf.mxu0
  %v1204 = vadd.f32 %v1055, %v1203
  %v1205 = vpop.f32.mrf.mxu0
  %v1206 = vadd.f32 %v1057, %v1205
  %1207 = vmatmul.bf16.gmra.mxu0 %v768
  %v1208 = vpop.f32.mrf.mxu0
  %v1209 = vadd.f32 %v1060, %v1208
  %v1210 = vpop.f32.mrf.mxu0
  %v1211 = vadd.f32 %v1062, %v1210
  %1212 = vmatmul.bf16.gmra.mxu0 %v771
  %v1213 = vpop.f32.mrf.mxu0
  %v1214 = vadd.f32 %v1065, %v1213
  %v1215 = vpop.f32.mrf.mxu0
  %v1216 = vadd.f32 %v1067, %v1215
  %1217 = vmatmul.bf16.gmra.mxu0 %v774
  %v1218 = vpop.f32.mrf.mxu0
  %v1219 = vadd.f32 %v1070, %v1218
  %v1220 = vpop.f32.mrf.mxu0
  %v1221 = vadd.f32 %v1072, %v1220
  %1222 = vdwg.mxu0
  %v1223 = vmax.f32 %v1084, %v1119
  %v1224 = vmax.f32 %v1086, %v1121
  %v1225 = vmax.f32 %v1089, %v1124
  %v1226 = vmax.f32 %v1091, %v1126
  %v1227 = vmax.f32 %v1094, %v1129
  %v1228 = vmax.f32 %v1096, %v1131
  %v1229 = vmax.f32 %v1099, %v1134
  %v1230 = vmax.f32 %v1101, %v1136
  %v1231 = vmax.f32 %v1104, %v1139
  %v1232 = vmax.f32 %v1106, %v1141
  %v1233 = vmax.f32 %v1109, %v1144
  %v1234 = vmax.f32 %v1111, %v1146
  %v1235 = vmax.f32 %v1114, %v1149
  %v1236 = vmax.f32 %v1116, %v1151
  %v1237 = vmax.f32 %v1154, %v1189
  %v1238 = vmax.f32 %v1156, %v1191
  %v1239 = vmax.f32 %v1159, %v1194
  %v1240 = vmax.f32 %v1161, %v1196
  %v1241 = vmax.f32 %v1164, %v1199
  %v1242 = vmax.f32 %v1166, %v1201
  %v1243 = vmax.f32 %v1169, %v1204
  %v1244 = vmax.f32 %v1171, %v1206
  %v1245 = vmax.f32 %v1174, %v1209
  %v1246 = vmax.f32 %v1176, %v1211
  %v1247 = vmax.f32 %v1179, %v1214
  %v1248 = vmax.f32 %v1181, %v1216
  %v1249 = vmax.f32 %v1184, %v1219
  %v1250 = vmax.f32 %v1186, %v1221
  %v1251 = vmax.f32 %v1223, %v1237
  %v1252 = vmax.f32 %v1224, %v1238
  %v1253 = vmax.f32 %v1225, %v1239
  %v1254 = vmax.f32 %v1226, %v1240
  %v1255 = vmax.f32 %v1227, %v1241
  %v1256 = vmax.f32 %v1228, %v1242
  %v1257 = vmax.f32 %v1229, %v1243
  %v1258 = vmax.f32 %v1230, %v1244
  %v1259 = vmax.f32 %v1231, %v1245
  %v1260 = vmax.f32 %v1232, %v1246
  %v1261 = vmax.f32 %v1233, %v1247
  %v1262 = vmax.f32 %v1234, %v1248
  %v1263 = vmax.f32 %v1235, %v1249
  %v1264 = vmax.f32 %v1236, %v1250
  %v1265 = vld [vmem:[%s2] sm:$0x1]
  %v1267 = vperm.slane %v1265, 0
  %v1269 = vadd.f32 %v1251, %v1267
  %v1270 = vadd.f32 %v1252, %v1267
  %v1271 = vadd.f32 %v1253, %v1267
  %v1272 = vadd.f32 %v1254, %v1267
  %v1273 = vadd.f32 %v1255, %v1267
  %v1274 = vadd.f32 %v1256, %v1267
  %v1275 = vadd.f32 %v1257, %v1267
  %v1276 = vadd.f32 %v1258, %v1267
  %v1277 = vadd.f32 %v1259, %v1267
  %v1278 = vadd.f32 %v1260, %v1267
  %v1279 = vadd.f32 %v1261, %v1267
  %v1280 = vadd.f32 %v1262, %v1267
  %v1281 = vadd.f32 %v1263, %v1267
  %v1282 = vadd.f32 %v1264, %v1267
  %v1283 = vmax.f32 %v1269, 0.0
  %v1284 = vmax.f32 %v1270, 0.0
  %v1285 = vmax.f32 %v1271, 0.0
  %v1286 = vmax.f32 %v1272, 0.0
  %v1287 = vmax.f32 %v1273, 0.0
  %v1288 = vmax.f32 %v1274, 0.0
  %v1289 = vmax.f32 %v1275, 0.0
  %v1290 = vmax.f32 %v1276, 0.0
  %v1291 = vmax.f32 %v1277, 0.0
  %v1292 = vmax.f32 %v1278, 0.0
  %v1293 = vmax.f32 %v1279, 0.0
  %v1294 = vmax.f32 %v1280, 0.0
  %v1295 = vmax.f32 %v1281, 0.0
  %v1296 = vmax.f32 %v1282, 0.0
  %v1297 = vpack.c.bf16 %v1283, %v1283
  %v1298 = vpack.c.bf16 %v1284, %v1284
  %v1299 = vpack.c.bf16 %v1285, %v1285
  %v1300 = vpack.c.bf16 %v1286, %v1286
  %v1301 = vpack.c.bf16 %v1287, %v1287
  %v1302 = vpack.c.bf16 %v1288, %v1288
  %v1303 = vpack.c.bf16 %v1289, %v1289
  %v1304 = vpack.c.bf16 %v1290, %v1290
  %v1305 = vpack.c.bf16 %v1291, %v1291
  %v1306 = vpack.c.bf16 %v1292, %v1292
  %v1307 = vpack.c.bf16 %v1293, %v1293
  %v1308 = vpack.c.bf16 %v1294, %v1294
  %v1309 = vpack.c.bf16 %v1295, %v1295
  %v1310 = vpack.c.bf16 %v1296, %v1296
  %vm1311 = vcmask 519168
  %1312 = vst.msk [vmem:[%s3] sm:$0xf] %vm1311, %v1297
  %1313 = vst.msk [vmem:[%s3 + $0x4] sm:$0xf] %vm1311, %v1298
  %1314 = vst.msk [vmem:[%s3 + $0x8] sm:$0xf] %vm1311, %v1299
  %1315 = vst.msk [vmem:[%s3 + $0xc] sm:$0xf] %vm1311, %v1300
  %1316 = vst.msk [vmem:[%s3 + $0x10] sm:$0xf] %vm1311, %v1301
  %1317 = vst.msk [vmem:[%s3 + $0x14] sm:$0xf] %vm1311, %v1302
  %1318 = vst.msk [vmem:[%s3 + $0x18] sm:$0xf] %vm1311, %v1303
  %1319 = vst.msk [vmem:[%s3 + $0x1c] sm:$0xf] %vm1311, %v1304
  %1320 = vst.msk [vmem:[%s3 + $0x20] sm:$0xf] %vm1311, %v1305
  %1321 = vst.msk [vmem:[%s3 + $0x24] sm:$0xf] %vm1311, %v1306
  %1322 = vst.msk [vmem:[%s3 + $0x28] sm:$0xf] %vm1311, %v1307
  %1323 = vst.msk [vmem:[%s3 + $0x2c] sm:$0xf] %vm1311, %v1308
  %1324 = vst.msk [vmem:[%s3 + $0x30] sm:$0xf] %vm1311, %v1309
  %1325 = vst.msk [vmem:[%s3 + $0x34] sm:$0xf] %vm1311, %v1310
  // Predicated region
  $region14: #{cnn_forward.4} parent=0 // pred_check
    _
  $region15: #{cnn_forward.4} parent=0 // pred_check_branch
    %1327 = sbr.rel (0) target = $region17
  $region16: #{cnn_forward.4} parent=0 // pred_region
    _
  $region17: #{cnn_forward.4} parent=0 // pred_fallthru
    _
  // Predicated region
  $region18: #{cnn_forward.4} parent=0 // pred_check
    _
  $region19: #{cnn_forward.4} parent=0 // pred_check_branch
    %1329 = sbr.rel (0) target = $region21
  $region20: #{cnn_forward.4} parent=0 // pred_region
    _
  $region21: #{cnn_forward.4} parent=0 // pred_fallthru
    _

// kernel: cnn_forward.5
$region0: #{cnn_forward.5}
  #allocation0 [shape = 'u32[]', space=smem, size = 0x4, offset = 0x4, fixed_abs, tag = 'smem constant byte address 0x4 - core index']
  #allocation1 [shape = 'u32[72,128]{1,0:T(1,128)}', space=vmem, size = 0x9000, scoped, tag = 'internal scratch']
  %s0 = inlined_call_operand.vmem [shape: bf16[2,3136], index: 0, kind: input, shape index: {}]
  %s1 = inlined_call_operand.vmem [shape: bf16[3136,128], index: 1, kind: input, shape index: {}]
  %s2 = inlined_call_operand.vmem [shape: f32[1,128], index: 2, kind: input, shape index: {}]
  %s3 = inlined_call_operand.vmem [shape: bf16[128,10], index: 3, kind: input, shape index: {}]
  %s4 = inlined_call_operand.vmem [shape: f32[1,10], index: 4, kind: input, shape index: {}]
  %s5 = inlined_call_operand.hbm [shape: f32[2,10], index: 5, kind: output, shape index: {}]
  %s6 = sld [smem:[#allocation0]]
  $region30: #{cnn_forward.5} parent=0
    _
  %s8 = ssub.s32 1, %s6
  %s9 = scalar_select 0, %s8, %s6
  $region1: #{cnn_forward.5} parent=0
    #allocation2 [shape = 'u8[1024]{0}', space=vmem, size = 0x400, scoped, tag = 'output window, operand 0, single buffered']
    #allocation3 [shape = 's32[1]{0}', space=sflag, size = 0x4, scoped, tag = 'scoped memory for cnn_forward.5']
    %10 = vsyncpa [#allocation3], 0
    // Predicated region
    $region2: #{cnn_forward.5} parent=1 // pred_check
      _
    $region3: #{cnn_forward.5} parent=1 // pred_check_branch
      %12 = sbr.rel (0) target = $region5
    $region4: #{cnn_forward.5} parent=1 // pred_region
      _
    $region5: #{cnn_forward.5} parent=1 // pred_fallthru
      _
    // Predicated region
    $region6: #{cnn_forward.5} parent=1 // pred_check
      _
    $region7: #{cnn_forward.5} parent=1 // pred_check_branch
      %14 = sbr.rel (0) target = $region9
    $region8: #{cnn_forward.5} parent=1 // pred_region
      _
    $region9: #{cnn_forward.5} parent=1 // pred_fallthru
      _
    // Predicated region
    $region10: #{cnn_forward.5} parent=1 // pred_check
      _
    $region11: #{cnn_forward.5} parent=1 // pred_check_branch
      %16 = sbr.rel (0) target = $region13
    $region12: #{cnn_forward.5} parent=1 // pred_region
      _
    $region13: #{cnn_forward.5} parent=1 // pred_fallthru
      _
    // Predicated region
    $region14: #{cnn_forward.5} parent=1 // pred_check
      _
    $region15: #{cnn_forward.5} parent=1 // pred_check_branch
      %18 = sbr.rel (0) target = $region17
    $region16: #{cnn_forward.5} parent=1 // pred_region
      _
    $region17: #{cnn_forward.5} parent=1 // pred_fallthru
      _
    // Predicated region
    $region18: #{cnn_forward.5} parent=1 // pred_check
      _
    $region19: #{cnn_forward.5} parent=1 // pred_check_branch
      %20 = sbr.rel (0) target = $region21
    $region20: #{cnn_forward.5} parent=1 // pred_region
      _
    $region21: #{cnn_forward.5} parent=1 // pred_fallthru
      _
    %v22 = vld [vmem:[%s0] sm:$0xff]
    %v23 = vld [vmem:[%s0 + $0x8] sm:$0xff]
    %v24 = vld [vmem:[%s0 + $0x10] sm:$0xff]
    %v25 = vld [vmem:[%s0 + $0x18] sm:$0x1]
    %v26 = vld [vmem:[%s1] sm:$0xf]
    %v27 = vld [vmem:[%s1 + $0x4] sm:$0xf]
    %v28 = vld [vmem:[%s1 + $0x8] sm:$0xf]
    %v29 = vld [vmem:[%s1 + $0xc] sm:$0xf]
    %v30 = vld [vmem:[%s1 + $0x10] sm:$0xf]
    %v31 = vld [vmem:[%s1 + $0x14] sm:$0xf]
    %v32 = vld [vmem:[%s1 + $0x18] sm:$0xf]
    %v33 = vld [vmem:[%s1 + $0x1c] sm:$0xf]
    %v34 = vld [vmem:[%s1 + $0x20] sm:$0xf]
    %v35 = vld [vmem:[%s1 + $0x24] sm:$0xf]
    %v36 = vld [vmem:[%s1 + $0x28] sm:$0xf]
    %v37 = vld [vmem:[%s1 + $0x2c] sm:$0xf]
    %v38 = vld [vmem:[%s1 + $0x30] sm:$0xf]
    %v39 = vld [vmem:[%s1 + $0x34] sm:$0xf]
    %v40 = vld [vmem:[%s1 + $0x38] sm:$0xf]
    %v41 = vld [vmem:[%s1 + $0x3c] sm:$0xf]
    %v42 = vld [vmem:[%s1 + $0x40] sm:$0xf]
    %v43 = vld [vmem:[%s1 + $0x44] sm:$0xf]
    %v44 = vld [vmem:[%s1 + $0x48] sm:$0xf]
    %v45 = vld [vmem:[%s1 + $0x4c] sm:$0xf]
    %v46 = vld [vmem:[%s1 + $0x50] sm:$0xf]
    %v47 = vld [vmem:[%s1 + $0x54] sm:$0xf]
    %v48 = vld [vmem:[%s1 + $0x58] sm:$0xf]
    %v49 = vld [vmem:[%s1 + $0x5c] sm:$0xf]
    %v50 = vld [vmem:[%s1 + $0x60] sm:$0xf]
    %v51 = vld [vmem:[%s1 + $0x64] sm:$0xf]
    %v52 = vld [vmem:[%s1 + $0x68] sm:$0xf]
    %v53 = vld [vmem:[%s1 + $0x6c] sm:$0xf]
    %v54 = vld [vmem:[%s1 + $0x70] sm:$0xf]
    %v55 = vld [vmem:[%s1 + $0x74] sm:$0xf]
    %v56 = vld [vmem:[%s1 + $0x78] sm:$0xf]
    %v57 = vld [vmem:[%s1 + $0x7c] sm:$0xf]
    %v58 = vld [vmem:[%s1 + $0x80] sm:$0xf]
    %v59 = vld [vmem:[%s1 + $0x84] sm:$0xf]
    %v60 = vld [vmem:[%s1 + $0x88] sm:$0xf]
    %v61 = vld [vmem:[%s1 + $0x8c] sm:$0xf]
    %v62 = vld [vmem:[%s1 + $0x90] sm:$0xf]
    %v63 = vld [vmem:[%s1 + $0x94] sm:$0xf]
    %v64 = vld [vmem:[%s1 + $0x98] sm:$0xf]
    %v65 = vld [vmem:[%s1 + $0x9c] sm:$0xf]
    %v66 = vld [vmem:[%s1 + $0xa0] sm:$0xf]
    %v67 = vld [vmem:[%s1 + $0xa4] sm:$0xf]
    %v68 = vld [vmem:[%s1 + $0xa8] sm:$0xf]
    %v69 = vld [vmem:[%s1 + $0xac] sm:$0xf]
    %v70 = vld [vmem:[%s1 + $0xb0] sm:$0xf]
    %v71 = vld [vmem:[%s1 + $0xb4] sm:$0xf]
    %v72 = vld [vmem:[%s1 + $0xb8] sm:$0xf]
    %v73 = vld [vmem:[%s1 + $0xbc] sm:$0xf]
    %v74 = vld [vmem:[%s1 + $0xc0] sm:$0xf]
    %v75 = vld [vmem:[%s1 + $0xc4] sm:$0xf]
    %v76 = vld [vmem:[%s1 + $0xc8] sm:$0xf]
    %v77 = vld [vmem:[%s1 + $0xcc] sm:$0xf]
    %v78 = vld [vmem:[%s1 + $0xd0] sm:$0xf]
    %v79 = vld [vmem:[%s1 + $0xd4] sm:$0xf]
    %v80 = vld [vmem:[%s1 + $0xd8] sm:$0xf]
    %v81 = vld [vmem:[%s1 + $0xdc] sm:$0xf]
    %v82 = vld [vmem:[%s1 + $0xe0] sm:$0xf]
    %v83 = vld [vmem:[%s1 + $0xe4] sm:$0xf]
    %v84 = vld [vmem:[%s1 + $0xe8] sm:$0xf]
    %v85 = vld [vmem:[%s1 + $0xec] sm:$0xf]
    %v86 = vld [vmem:[%s1 + $0xf0] sm:$0xf]
    %v87 = vld [vmem:[%s1 + $0xf4] sm:$0xf]
    %v88 = vld [vmem:[%s1 + $0xf8] sm:$0xf]
    %v89 = vld [vmem:[%s1 + $0xfc] sm:$0xf]
    %v90 = vld [vmem:[%s1 + $0x100] sm:$0xf]
    %v91 = vld [vmem:[%s1 + $0x104] sm:$0xf]
    %v92 = vld [vmem:[%s1 + $0x108] sm:$0xf]
    %v93 = vld [vmem:[%s1 + $0x10c] sm:$0xf]
    %v94 = vld [vmem:[%s1 + $0x110] sm:$0xf]
    %v95 = vld [vmem:[%s1 + $0x114] sm:$0xf]
    %v96 = vld [vmem:[%s1 + $0x118] sm:$0xf]
    %v97 = vld [vmem:[%s1 + $0x11c] sm:$0xf]
    %v98 = vld [vmem:[%s1 + $0x120] sm:$0xf]
    %v99 = vld [vmem:[%s1 + $0x124] sm:$0xf]
    %v100 = vld [vmem:[%s1 + $0x128] sm:$0xf]
    %v101 = vld [vmem:[%s1 + $0x12c] sm:$0xf]
    %v102 = vld [vmem:[%s1 + $0x130] sm:$0xf]
    %v103 = vld [vmem:[%s1 + $0x134] sm:$0xf]
    %v104 = vld [vmem:[%s1 + $0x138] sm:$0xf]
    %v105 = vld [vmem:[%s1 + $0x13c] sm:$0xf]
    %v106 = vld [vmem:[%s1 + $0x140] sm:$0xf]
    %v107 = vld [vmem:[%s1 + $0x144] sm:$0xf]
    %v108 = vld [vmem:[%s1 + $0x148] sm:$0xf]
    %v109 = vld [vmem:[%s1 + $0x14c] sm:$0xf]
    %v110 = vld [vmem:[%s1 + $0x150] sm:$0xf]
    %v111 = vld [vmem:[%s1 + $0x154] sm:$0xf]
    %v112 = vld [vmem:[%s1 + $0x158] sm:$0xf]
    %v113 = vld [vmem:[%s1 + $0x15c] sm:$0xf]
    %v114 = vld [vmem:[%s1 + $0x160] sm:$0xf]
    %v115 = vld [vmem:[%s1 + $0x164] sm:$0xf]
    %v116 = vld [vmem:[%s1 + $0x168] sm:$0xf]
    %v117 = vld [vmem:[%s1 + $0x16c] sm:$0xf]
    %v118 = vld [vmem:[%s1 + $0x170] sm:$0xf]
    %v119 = vld [vmem:[%s1 + $0x174] sm:$0xf]
    %v120 = vld [vmem:[%s1 + $0x178] sm:$0xf]
    %v121 = vld [vmem:[%s1 + $0x17c] sm:$0xf]
    %v122 = vld [vmem:[%s1 + $0x180] sm:$0xf]
    %v123 = vld [vmem:[%s1 + $0x184] sm:$0xf]
    %v124 = vld [vmem:[%s1 + $0x188] sm:$0xf]
    %v125 = vld [vmem:[%s1 + $0x18c] sm:$0xf]
    %v126 = vld [vmem:[%s1 + $0x190] sm:$0xf]
    %v127 = vld [vmem:[%s1 + $0x194] sm:$0xf]
    %v128 = vld [vmem:[%s1 + $0x198] sm:$0xf]
    %v129 = vld [vmem:[%s1 + $0x19c] sm:$0xf]
    %v130 = vld [vmem:[%s1 + $0x1a0] sm:$0xf]
    %v131 = vld [vmem:[%s1 + $0x1a4] sm:$0xf]
    %v132 = vld [vmem:[%s1 + $0x1a8] sm:$0xf]
    %v133 = vld [vmem:[%s1 + $0x1ac] sm:$0xf]
    %v134 = vld [vmem:[%s1 + $0x1b0] sm:$0xf]
    %v135 = vld [vmem:[%s1 + $0x1b4] sm:$0xf]
    %v136 = vld [vmem:[%s1 + $0x1b8] sm:$0xf]
    %v137 = vld [vmem:[%s1 + $0x1bc] sm:$0xf]
    %v138 = vld [vmem:[%s1 + $0x1c0] sm:$0xf]
    %v139 = vld [vmem:[%s1 + $0x1c4] sm:$0xf]
    %v140 = vld [vmem:[%s1 + $0x1c8] sm:$0xf]
    %v141 = vld [vmem:[%s1 + $0x1cc] sm:$0xf]
    %v142 = vld [vmem:[%s1 + $0x1d0] sm:$0xf]
    %v143 = vld [vmem:[%s1 + $0x1d4] sm:$0xf]
    %v144 = vld [vmem:[%s1 + $0x1d8] sm:$0xf]
    %v145 = vld [vmem:[%s1 + $0x1dc] sm:$0xf]
    %v146 = vld [vmem:[%s1 + $0x1e0] sm:$0xf]
    %v147 = vld [vmem:[%s1 + $0x1e4] sm:$0xf]
    %v148 = vld [vmem:[%s1 + $0x1e8] sm:$0xf]
    %v149 = vld [vmem:[%s1 + $0x1ec] sm:$0xf]
    %v150 = vld [vmem:[%s1 + $0x1f0] sm:$0xf]
    %v151 = vld [vmem:[%s1 + $0x1f4] sm:$0xf]
    %v152 = vld [vmem:[%s1 + $0x1f8] sm:$0xf]
    %v153 = vld [vmem:[%s1 + $0x1fc] sm:$0xf]
    %v154 = vld [vmem:[%s1 + $0x200] sm:$0xf]
    %v155 = vld [vmem:[%s1 + $0x204] sm:$0xf]
    %v156 = vld [vmem:[%s1 + $0x208] sm:$0xf]
    %v157 = vld [vmem:[%s1 + $0x20c] sm:$0xf]
    %v158 = vld [vmem:[%s1 + $0x210] sm:$0xf]
    %v159 = vld [vmem:[%s1 + $0x214] sm:$0xf]
    %v160 = vld [vmem:[%s1 + $0x218] sm:$0xf]
    %v161 = vld [vmem:[%s1 + $0x21c] sm:$0xf]
    %v162 = vld [vmem:[%s1 + $0x220] sm:$0xf]
    %v163 = vld [vmem:[%s1 + $0x224] sm:$0xf]
    %v164 = vld [vmem:[%s1 + $0x228] sm:$0xf]
    %v165 = vld [vmem:[%s1 + $0x22c] sm:$0xf]
    %v166 = vld [vmem:[%s1 + $0x230] sm:$0xf]
    %v167 = vld [vmem:[%s1 + $0x234] sm:$0xf]
    %v168 = vld [vmem:[%s1 + $0x238] sm:$0xf]
    %v169 = vld [vmem:[%s1 + $0x23c] sm:$0xf]
    %v170 = vld [vmem:[%s1 + $0x240] sm:$0xf]
    %v171 = vld [vmem:[%s1 + $0x244] sm:$0xf]
    %v172 = vld [vmem:[%s1 + $0x248] sm:$0xf]
    %v173 = vld [vmem:[%s1 + $0x24c] sm:$0xf]
    %v174 = vld [vmem:[%s1 + $0x250] sm:$0xf]
    %v175 = vld [vmem:[%s1 + $0x254] sm:$0xf]
    %v176 = vld [vmem:[%s1 + $0x258] sm:$0xf]
    %v177 = vld [vmem:[%s1 + $0x25c] sm:$0xf]
    %v178 = vld [vmem:[%s1 + $0x260] sm:$0xf]
    %v179 = vld [vmem:[%s1 + $0x264] sm:$0xf]
    %v180 = vld [vmem:[%s1 + $0x268] sm:$0xf]
    %v181 = vld [vmem:[%s1 + $0x26c] sm:$0xf]
    %v182 = vld [vmem:[%s1 + $0x270] sm:$0xf]
    %v183 = vld [vmem:[%s1 + $0x274] sm:$0xf]
    %v184 = vld [vmem:[%s1 + $0x278] sm:$0xf]
    %v185 = vld [vmem:[%s1 + $0x27c] sm:$0xf]
    %v186 = vld [vmem:[%s1 + $0x280] sm:$0xf]
    %v187 = vld [vmem:[%s1 + $0x284] sm:$0xf]
    %v188 = vld [vmem:[%s1 + $0x288] sm:$0xf]
    %v189 = vld [vmem:[%s1 + $0x28c] sm:$0xf]
    %v190 = vld [vmem:[%s1 + $0x290] sm:$0xf]
    %v191 = vld [vmem:[%s1 + $0x294] sm:$0xf]
    %v192 = vld [vmem:[%s1 + $0x298] sm:$0xf]
    %v193 = vld [vmem:[%s1 + $0x29c] sm:$0xf]
    %v194 = vld [vmem:[%s1 + $0x2a0] sm:$0xf]
    %v195 = vld [vmem:[%s1 + $0x2a4] sm:$0xf]
    %v196 = vld [vmem:[%s1 + $0x2a8] sm:$0xf]
    %v197 = vld [vmem:[%s1 + $0x2ac] sm:$0xf]
    %v198 = vld [vmem:[%s1 + $0x2b0] sm:$0xf]
    %v199 = vld [vmem:[%s1 + $0x2b4] sm:$0xf]
    %v200 = vld [vmem:[%s1 + $0x2b8] sm:$0xf]
    %v201 = vld [vmem:[%s1 + $0x2bc] sm:$0xf]
    %v202 = vld [vmem:[%s1 + $0x2c0] sm:$0xf]
    %v203 = vld [vmem:[%s1 + $0x2c4] sm:$0xf]
    %v204 = vld [vmem:[%s1 + $0x2c8] sm:$0xf]
    %v205 = vld [vmem:[%s1 + $0x2cc] sm:$0xf]
    %v206 = vld [vmem:[%s1 + $0x2d0] sm:$0xf]
    %v207 = vld [vmem:[%s1 + $0x2d4] sm:$0xf]
    %v208 = vld [vmem:[%s1 + $0x2d8] sm:$0xf]
    %v209 = vld [vmem:[%s1 + $0x2dc] sm:$0xf]
    %v210 = vld [vmem:[%s1 + $0x2e0] sm:$0xf]
    %v211 = vld [vmem:[%s1 + $0x2e4] sm:$0xf]
    %v212 = vld [vmem:[%s1 + $0x2e8] sm:$0xf]
    %v213 = vld [vmem:[%s1 + $0x2ec] sm:$0xf]
    %v214 = vld [vmem:[%s1 + $0x2f0] sm:$0xf]
    %v215 = vld [vmem:[%s1 + $0x2f4] sm:$0xf]
    %v216 = vld [vmem:[%s1 + $0x2f8] sm:$0xf]
    %v217 = vld [vmem:[%s1 + $0x2fc] sm:$0xf]
    %v218 = vld [vmem:[%s1 + $0x300] sm:$0xf]
    %v219 = vld [vmem:[%s1 + $0x304] sm:$0xf]
    %v220 = vld [vmem:[%s1 + $0x308] sm:$0xf]
    %v221 = vld [vmem:[%s1 + $0x30c] sm:$0xf]
    %v222 = vld [vmem:[%s1 + $0x310] sm:$0xf]
    %v223 = vld [vmem:[%s1 + $0x314] sm:$0xf]
    %v224 = vld [vmem:[%s1 + $0x318] sm:$0xf]
    %v225 = vld [vmem:[%s1 + $0x31c] sm:$0xf]
    %v226 = vld [vmem:[%s1 + $0x320] sm:$0xf]
    %v227 = vld [vmem:[%s1 + $0x324] sm:$0xf]
    %v228 = vld [vmem:[%s1 + $0x328] sm:$0xf]
    %v229 = vld [vmem:[%s1 + $0x32c] sm:$0xf]
    %v230 = vld [vmem:[%s1 + $0x330] sm:$0xf]
    %v231 = vld [vmem:[%s1 + $0x334] sm:$0xf]
    %v232 = vld [vmem:[%s1 + $0x338] sm:$0xf]
    %v233 = vld [vmem:[%s1 + $0x33c] sm:$0xf]
    %v234 = vld [vmem:[%s1 + $0x340] sm:$0xf]
    %v235 = vld [vmem:[%s1 + $0x344] sm:$0xf]
    %v236 = vld [vmem:[%s1 + $0x348] sm:$0xf]
    %v237 = vld [vmem:[%s1 + $0x34c] sm:$0xf]
    %v238 = vld [vmem:[%s1 + $0x350] sm:$0xf]
    %v239 = vld [vmem:[%s1 + $0x354] sm:$0xf]
    %v240 = vld [vmem:[%s1 + $0x358] sm:$0xf]
    %v241 = vld [vmem:[%s1 + $0x35c] sm:$0xf]
    %v242 = vld [vmem:[%s1 + $0x360] sm:$0xf]
    %v243 = vld [vmem:[%s1 + $0x364] sm:$0xf]
    %v244 = vld [vmem:[%s1 + $0x368] sm:$0xf]
    %v245 = vld [vmem:[%s1 + $0x36c] sm:$0xf]
    %v246 = vld [vmem:[%s1 + $0x370] sm:$0xf]
    %v247 = vld [vmem:[%s1 + $0x374] sm:$0xf]
    %v248 = vld [vmem:[%s1 + $0x378] sm:$0xf]
    %v249 = vld [vmem:[%s1 + $0x37c] sm:$0xf]
    %v250 = vld [vmem:[%s1 + $0x380] sm:$0xf]
    %v251 = vld [vmem:[%s1 + $0x384] sm:$0xf]
    %v252 = vld [vmem:[%s1 + $0x388] sm:$0xf]
    %v253 = vld [vmem:[%s1 + $0x38c] sm:$0xf]
    %v254 = vld [vmem:[%s1 + $0x390] sm:$0xf]
    %v255 = vld [vmem:[%s1 + $0x394] sm:$0xf]
    %v256 = vld [vmem:[%s1 + $0x398] sm:$0xf]
    %v257 = vld [vmem:[%s1 + $0x39c] sm:$0xf]
    %v258 = vld [vmem:[%s1 + $0x3a0] sm:$0xf]
    %v259 = vld [vmem:[%s1 + $0x3a4] sm:$0xf]
    %v260 = vld [vmem:[%s1 + $0x3a8] sm:$0xf]
    %v261 = vld [vmem:[%s1 + $0x3ac] sm:$0xf]
    %v262 = vld [vmem:[%s1 + $0x3b0] sm:$0xf]
    %v263 = vld [vmem:[%s1 + $0x3b4] sm:$0xf]
    %v264 = vld [vmem:[%s1 + $0x3b8] sm:$0xf]
    %v265 = vld [vmem:[%s1 + $0x3bc] sm:$0xf]
    %v266 = vld [vmem:[%s1 + $0x3c0] sm:$0xf]
    %v267 = vld [vmem:[%s1 + $0x3c4] sm:$0xf]
    %v268 = vld [vmem:[%s1 + $0x3c8] sm:$0xf]
    %v269 = vld [vmem:[%s1 + $0x3cc] sm:$0xf]
    %v270 = vld [vmem:[%s1 + $0x3d0] sm:$0xf]
    %v271 = vld [vmem:[%s1 + $0x3d4] sm:$0xf]
    %v272 = vld [vmem:[%s1 + $0x3d8] sm:$0xf]
    %v273 = vld [vmem:[%s1 + $0x3dc] sm:$0xf]
    %v274 = vld [vmem:[%s1 + $0x3e0] sm:$0xf]
    %v275 = vld [vmem:[%s1 + $0x3e4] sm:$0xf]
    %v276 = vld [vmem:[%s1 + $0x3e8] sm:$0xf]
    %v277 = vld [vmem:[%s1 + $0x3ec] sm:$0xf]
    %v278 = vld [vmem:[%s1 + $0x3f0] sm:$0xf]
    %v279 = vld [vmem:[%s1 + $0x3f4] sm:$0xf]
    %v280 = vld [vmem:[%s1 + $0x3f8] sm:$0xf]
    %v281 = vld [vmem:[%s1 + $0x3fc] sm:$0xf]
    %v282 = vld [vmem:[%s1 + $0x400] sm:$0xf]
    %v283 = vld [vmem:[%s1 + $0x404] sm:$0xf]
    %v284 = vld [vmem:[%s1 + $0x408] sm:$0xf]
    %v285 = vld [vmem:[%s1 + $0x40c] sm:$0xf]
    %v286 = vld [vmem:[%s1 + $0x410] sm:$0xf]
    %v287 = vld [vmem:[%s1 + $0x414] sm:$0xf]
    %v288 = vld [vmem:[%s1 + $0x418] sm:$0xf]
    %v289 = vld [vmem:[%s1 + $0x41c] sm:$0xf]
    %v290 = vld [vmem:[%s1 + $0x420] sm:$0xf]
    %v291 = vld [vmem:[%s1 + $0x424] sm:$0xf]
    %v292 = vld [vmem:[%s1 + $0x428] sm:$0xf]
    %v293 = vld [vmem:[%s1 + $0x42c] sm:$0xf]
    %v294 = vld [vmem:[%s1 + $0x430] sm:$0xf]
    %v295 = vld [vmem:[%s1 + $0x434] sm:$0xf]
    %v296 = vld [vmem:[%s1 + $0x438] sm:$0xf]
    %v297 = vld [vmem:[%s1 + $0x43c] sm:$0xf]
    %v298 = vld [vmem:[%s1 + $0x440] sm:$0xf]
    %v299 = vld [vmem:[%s1 + $0x444] sm:$0xf]
    %v300 = vld [vmem:[%s1 + $0x448] sm:$0xf]
    %v301 = vld [vmem:[%s1 + $0x44c] sm:$0xf]
    %v302 = vld [vmem:[%s1 + $0x450] sm:$0xf]
    %v303 = vld [vmem:[%s1 + $0x454] sm:$0xf]
    %v304 = vld [vmem:[%s1 + $0x458] sm:$0xf]
    %v305 = vld [vmem:[%s1 + $0x45c] sm:$0xf]
    %v306 = vld [vmem:[%s1 + $0x460] sm:$0xf]
    %v307 = vld [vmem:[%s1 + $0x464] sm:$0xf]
    %v308 = vld [vmem:[%s1 + $0x468] sm:$0xf]
    %v309 = vld [vmem:[%s1 + $0x46c] sm:$0xf]
    %v310 = vld [vmem:[%s1 + $0x470] sm:$0xf]
    %v311 = vld [vmem:[%s1 + $0x474] sm:$0xf]
    %v312 = vld [vmem:[%s1 + $0x478] sm:$0xf]
    %v313 = vld [vmem:[%s1 + $0x47c] sm:$0xf]
    %v314 = vld [vmem:[%s1 + $0x480] sm:$0xf]
    %v315 = vld [vmem:[%s1 + $0x484] sm:$0xf]
    %v316 = vld [vmem:[%s1 + $0x488] sm:$0xf]
    %v317 = vld [vmem:[%s1 + $0x48c] sm:$0xf]
    %v318 = vld [vmem:[%s1 + $0x490] sm:$0xf]
    %v319 = vld [vmem:[%s1 + $0x494] sm:$0xf]
    %v320 = vld [vmem:[%s1 + $0x498] sm:$0xf]
    %v321 = vld [vmem:[%s1 + $0x49c] sm:$0xf]
    %v322 = vld [vmem:[%s1 + $0x4a0] sm:$0xf]
    %v323 = vld [vmem:[%s1 + $0x4a4] sm:$0xf]
    %v324 = vld [vmem:[%s1 + $0x4a8] sm:$0xf]
    %v325 = vld [vmem:[%s1 + $0x4ac] sm:$0xf]
    %v326 = vld [vmem:[%s1 + $0x4b0] sm:$0xf]
    %v327 = vld [vmem:[%s1 + $0x4b4] sm:$0xf]
    %v328 = vld [vmem:[%s1 + $0x4b8] sm:$0xf]
    %v329 = vld [vmem:[%s1 + $0x4bc] sm:$0xf]
    %v330 = vld [vmem:[%s1 + $0x4c0] sm:$0xf]
    %v331 = vld [vmem:[%s1 + $0x4c4] sm:$0xf]
    %v332 = vld [vmem:[%s1 + $0x4c8] sm:$0xf]
    %v333 = vld [vmem:[%s1 + $0x4cc] sm:$0xf]
    %v334 = vld [vmem:[%s1 + $0x4d0] sm:$0xf]
    %v335 = vld [vmem:[%s1 + $0x4d4] sm:$0xf]
    %v336 = vld [vmem:[%s1 + $0x4d8] sm:$0xf]
    %v337 = vld [vmem:[%s1 + $0x4dc] sm:$0xf]
    %v338 = vld [vmem:[%s1 + $0x4e0] sm:$0xf]
    %v339 = vld [vmem:[%s1 + $0x4e4] sm:$0xf]
    %v340 = vld [vmem:[%s1 + $0x4e8] sm:$0xf]
    %v341 = vld [vmem:[%s1 + $0x4ec] sm:$0xf]
    %v342 = vld [vmem:[%s1 + $0x4f0] sm:$0xf]
    %v343 = vld [vmem:[%s1 + $0x4f4] sm:$0xf]
    %v344 = vld [vmem:[%s1 + $0x4f8] sm:$0xf]
    %v345 = vld [vmem:[%s1 + $0x4fc] sm:$0xf]
    %v346 = vld [vmem:[%s1 + $0x500] sm:$0xf]
    %v347 = vld [vmem:[%s1 + $0x504] sm:$0xf]
    %v348 = vld [vmem:[%s1 + $0x508] sm:$0xf]
    %v349 = vld [vmem:[%s1 + $0x50c] sm:$0xf]
    %v350 = vld [vmem:[%s1 + $0x510] sm:$0xf]
    %v351 = vld [vmem:[%s1 + $0x514] sm:$0xf]
    %v352 = vld [vmem:[%s1 + $0x518] sm:$0xf]
    %v353 = vld [vmem:[%s1 + $0x51c] sm:$0xf]
    %v354 = vld [vmem:[%s1 + $0x520] sm:$0xf]
    %v355 = vld [vmem:[%s1 + $0x524] sm:$0xf]
    %v356 = vld [vmem:[%s1 + $0x528] sm:$0xf]
    %v357 = vld [vmem:[%s1 + $0x52c] sm:$0xf]
    %v358 = vld [vmem:[%s1 + $0x530] sm:$0xf]
    %v359 = vld [vmem:[%s1 + $0x534] sm:$0xf]
    %v360 = vld [vmem:[%s1 + $0x538] sm:$0xf]
    %v361 = vld [vmem:[%s1 + $0x53c] sm:$0xf]
    %v362 = vld [vmem:[%s1 + $0x540] sm:$0xf]
    %v363 = vld [vmem:[%s1 + $0x544] sm:$0xf]
    %v364 = vld [vmem:[%s1 + $0x548] sm:$0xf]
    %v365 = vld [vmem:[%s1 + $0x54c] sm:$0xf]
    %v366 = vld [vmem:[%s1 + $0x550] sm:$0xf]
    %v367 = vld [vmem:[%s1 + $0x554] sm:$0xf]
    %v368 = vld [vmem:[%s1 + $0x558] sm:$0xf]
    %v369 = vld [vmem:[%s1 + $0x55c] sm:$0xf]
    %v370 = vld [vmem:[%s1 + $0x560] sm:$0xf]
    %v371 = vld [vmem:[%s1 + $0x564] sm:$0xf]
    %v372 = vld [vmem:[%s1 + $0x568] sm:$0xf]
    %v373 = vld [vmem:[%s1 + $0x56c] sm:$0xf]
    %v374 = vld [vmem:[%s1 + $0x570] sm:$0xf]
    %v375 = vld [vmem:[%s1 + $0x574] sm:$0xf]
    %v376 = vld [vmem:[%s1 + $0x578] sm:$0xf]
    %v377 = vld [vmem:[%s1 + $0x57c] sm:$0xf]
    %v378 = vld [vmem:[%s1 + $0x580] sm:$0xf]
    %v379 = vld [vmem:[%s1 + $0x584] sm:$0xf]
    %v380 = vld [vmem:[%s1 + $0x588] sm:$0xf]
    %v381 = vld [vmem:[%s1 + $0x58c] sm:$0xf]
    %v382 = vld [vmem:[%s1 + $0x590] sm:$0xf]
    %v383 = vld [vmem:[%s1 + $0x594] sm:$0xf]
    %v384 = vld [vmem:[%s1 + $0x598] sm:$0xf]
    %v385 = vld [vmem:[%s1 + $0x59c] sm:$0xf]
    %v386 = vld [vmem:[%s1 + $0x5a0] sm:$0xf]
    %v387 = vld [vmem:[%s1 + $0x5a4] sm:$0xf]
    %v388 = vld [vmem:[%s1 + $0x5a8] sm:$0xf]
    %v389 = vld [vmem:[%s1 + $0x5ac] sm:$0xf]
    %v390 = vld [vmem:[%s1 + $0x5b0] sm:$0xf]
    %v391 = vld [vmem:[%s1 + $0x5b4] sm:$0xf]
    %v392 = vld [vmem:[%s1 + $0x5b8] sm:$0xf]
    %v393 = vld [vmem:[%s1 + $0x5bc] sm:$0xf]
    %v394 = vld [vmem:[%s1 + $0x5c0] sm:$0xf]
    %v395 = vld [vmem:[%s1 + $0x5c4] sm:$0xf]
    %v396 = vld [vmem:[%s1 + $0x5c8] sm:$0xf]
    %v397 = vld [vmem:[%s1 + $0x5cc] sm:$0xf]
    %v398 = vld [vmem:[%s1 + $0x5d0] sm:$0xf]
    %v399 = vld [vmem:[%s1 + $0x5d4] sm:$0xf]
    %v400 = vld [vmem:[%s1 + $0x5d8] sm:$0xf]
    %v401 = vld [vmem:[%s1 + $0x5dc] sm:$0xf]
    %v402 = vld [vmem:[%s1 + $0x5e0] sm:$0xf]
    %v403 = vld [vmem:[%s1 + $0x5e4] sm:$0xf]
    %v404 = vld [vmem:[%s1 + $0x5e8] sm:$0xf]
    %v405 = vld [vmem:[%s1 + $0x5ec] sm:$0xf]
    %v406 = vld [vmem:[%s1 + $0x5f0] sm:$0xf]
    %v407 = vld [vmem:[%s1 + $0x5f4] sm:$0xf]
    %v408 = vld [vmem:[%s1 + $0x5f8] sm:$0xf]
    %v409 = vld [vmem:[%s1 + $0x5fc] sm:$0xf]
    %v410 = vld [vmem:[%s1 + $0x600] sm:$0xf]
    %v411 = vld [vmem:[%s1 + $0x604] sm:$0xf]
    %v412 = vld [vmem:[%s1 + $0x608] sm:$0xf]
    %v413 = vld [vmem:[%s1 + $0x60c] sm:$0xf]
    %v414 = vld [vmem:[%s1 + $0x610] sm:$0xf]
    %v415 = vld [vmem:[%s1 + $0x614] sm:$0xf]
    %v416 = vld [vmem:[%s1 + $0x618] sm:$0xf]
    %v417 = vld [vmem:[%s1 + $0x61c] sm:$0xf]
    %v418 = vld [vmem:[%s2] sm:$0x1]
    %v420 = vperm.slane %v418, 0
    %423 = vst [vmem:[#allocation1] ss:$9 sm:$0xff] %v22
    %v424 = vld [vmem:[#allocation1] sm:$0xff]
    %v425 = vld [vmem:[#allocation1 + $0x9] sm:$0xff]
    %v426 = vld [vmem:[#allocation1 + $0x12] sm:$0xff]
    %v427 = vld [vmem:[#allocation1 + $0x1b] sm:$0xff]
    %v428 = vld [vmem:[#allocation1 + $0x24] sm:$0xff]
    %v429 = vld [vmem:[#allocation1 + $0x2d] sm:$0xff]
    %v430 = vld [vmem:[#allocation1 + $0x36] sm:$0xff]
    %v431 = vld [vmem:[#allocation1 + $0x3f] sm:$0xff]
    %433 = vst [vmem:[#allocation1] ss:$9 sm:$0xff] %v23
    %v434 = vld [vmem:[#allocation1] sm:$0xff]
    %v435 = vld [vmem:[#allocation1 + $0x9] sm:$0xff]
    %v436 = vld [vmem:[#allocation1 + $0x12] sm:$0xff]
    %v437 = vld [vmem:[#allocation1 + $0x1b] sm:$0xff]
    %v438 = vld [vmem:[#allocation1 + $0x24] sm:$0xff]
    %v439 = vld [vmem:[#allocation1 + $0x2d] sm:$0xff]
    %v440 = vld [vmem:[#allocation1 + $0x36] sm:$0xff]
    %v441 = vld [vmem:[#allocation1 + $0x3f] sm:$0xff]
    %443 = vst [vmem:[#allocation1] ss:$9 sm:$0xff] %v24
    %v444 = vld [vmem:[#allocation1] sm:$0xff]
    %v445 = vld [vmem:[#allocation1 + $0x9] sm:$0xff]
    %v446 = vld [vmem:[#allocation1 + $0x12] sm:$0xff]
    %v447 = vld [vmem:[#allocation1 + $0x1b] sm:$0xff]
    %v448 = vld [vmem:[#allocation1 + $0x24] sm:$0xff]
    %v449 = vld [vmem:[#allocation1 + $0x2d] sm:$0xff]
    %v450 = vld [vmem:[#allocation1 + $0x36] sm:$0xff]
    %v451 = vld [vmem:[#allocation1 + $0x3f] sm:$0xff]
    %453 = vst [vmem:[#allocation1] ss:$9 sm:$0xff] %v25
    %v454 = vld [vmem:[#allocation1] sm:$0xff]
    %v871 = vunpack.c.l.b16 %v26
    %v872 = vunpack.c.l.b16 %v27
    %v873 = vunpack.c.l.b16 %v28
    %v874 = vunpack.c.l.b16 %v29
    %v875 = vunpack.c.l.b16 %v30
    %v876 = vunpack.c.l.b16 %v31
    %v877 = vunpack.c.l.b16 %v32
    %v878 = vunpack.c.l.b16 %v33
    %v879 = vunpack.c.l.b16 %v34
    %v880 = vunpack.c.l.b16 %v35
    %v881 = vunpack.c.l.b16 %v36
    %v882 = vunpack.c.l.b16 %v37
    %v883 = vunpack.c.l.b16 %v38
    %v884 = vunpack.c.l.b16 %v39
    %v885 = vunpack.c.l.b16 %v40
    %v886 = vunpack.c.l.b16 %v41
    %v887 = vunpack.c.l.b16 %v42
    %v888 = vunpack.c.l.b16 %v43
    %v889 = vunpack.c.l.b16 %v44
    %v890 = vunpack.c.l.b16 %v45
    %v891 = vunpack.c.l.b16 %v46
    %v892 = vunpack.c.l.b16 %v47
    %v893 = vunpack.c.l.b16 %v48
    %v894 = vunpack.c.l.b16 %v49
    %v895 = vunpack.c.l.b16 %v50
    %v896 = vunpack.c.l.b16 %v51
    %v897 = vunpack.c.l.b16 %v52
    %v898 = vunpack.c.l.b16 %v53
    %v899 = vunpack.c.l.b16 %v54
    %v900 = vunpack.c.l.b16 %v55
    %v901 = vunpack.c.l.b16 %v56
    %v902 = vunpack.c.l.b16 %v57
    %v903 = vunpack.c.l.b16 %v58
    %v904 = vunpack.c.l.b16 %v59
    %v905 = vunpack.c.l.b16 %v60
    %v906 = vunpack.c.l.b16 %v61
    %v907 = vunpack.c.l.b16 %v62
    %v908 = vunpack.c.l.b16 %v63
    %v909 = vunpack.c.l.b16 %v64
    %v910 = vunpack.c.l.b16 %v65
    %v911 = vunpack.c.l.b16 %v66
    %v912 = vunpack.c.l.b16 %v67
    %v913 = vunpack.c.l.b16 %v68
    %v914 = vunpack.c.l.b16 %v69
    %v915 = vunpack.c.l.b16 %v70
    %v916 = vunpack.c.l.b16 %v71
    %v917 = vunpack.c.l.b16 %v72
    %v918 = vunpack.c.l.b16 %v73
    %v919 = vunpack.c.l.b16 %v74
    %v920 = vunpack.c.l.b16 %v75
    %v921 = vunpack.c.l.b16 %v76
    %v922 = vunpack.c.l.b16 %v77
    %v923 = vunpack.c.l.b16 %v78
    %v924 = vunpack.c.l.b16 %v79
    %v925 = vunpack.c.l.b16 %v80
    %v926 = vunpack.c.l.b16 %v81
    %v927 = vunpack.c.l.b16 %v82
    %v928 = vunpack.c.l.b16 %v83
    %v929 = vunpack.c.l.b16 %v84
    %v930 = vunpack.c.l.b16 %v85
    %v931 = vunpack.c.l.b16 %v86
    %v932 = vunpack.c.l.b16 %v87
    %v933 = vunpack.c.l.b16 %v88
    %v934 = vunpack.c.l.b16 %v89
    %v935 = vunpack.c.l.b16 %v90
    %v936 = vunpack.c.l.b16 %v91
    %v937 = vunpack.c.l.b16 %v92
    %v938 = vunpack.c.l.b16 %v93
    %v939 = vunpack.c.l.b16 %v94
    %v940 = vunpack.c.l.b16 %v95
    %v941 = vunpack.c.l.b16 %v96
    %v942 = vunpack.c.l.b16 %v97
    %v943 = vunpack.c.l.b16 %v98
    %v944 = vunpack.c.l.b16 %v99
    %v945 = vunpack.c.l.b16 %v100
    %v946 = vunpack.c.l.b16 %v101
    %v947 = vunpack.c.l.b16 %v102
    %v948 = vunpack.c.l.b16 %v103
    %v949 = vunpack.c.l.b16 %v104
    %v950 = vunpack.c.l.b16 %v105
    %v951 = vunpack.c.l.b16 %v106
    %v952 = vunpack.c.l.b16 %v107
    %v953 = vunpack.c.l.b16 %v108
    %v954 = vunpack.c.l.b16 %v109
    %v955 = vunpack.c.l.b16 %v110
    %v956 = vunpack.c.l.b16 %v111
    %v957 = vunpack.c.l.b16 %v112
    %v958 = vunpack.c.l.b16 %v113
    %v959 = vunpack.c.l.b16 %v114
    %v960 = vunpack.c.l.b16 %v115
    %v961 = vunpack.c.l.b16 %v116
    %v962 = vunpack.c.l.b16 %v117
    %v963 = vunpack.c.l.b16 %v118
    %v964 = vunpack.c.l.b16 %v119
    %v965 = vunpack.c.l.b16 %v120
    %v966 = vunpack.c.l.b16 %v121
    %v967 = vunpack.c.l.b16 %v122
    %v968 = vunpack.c.l.b16 %v123
    %v969 = vunpack.c.l.b16 %v124
    %v970 = vunpack.c.l.b16 %v125
    %v971 = vunpack.c.l.b16 %v126
    %v972 = vunpack.c.l.b16 %v127
    %v973 = vunpack.c.l.b16 %v128
    %v974 = vunpack.c.l.b16 %v129
    %v975 = vunpack.c.l.b16 %v130
    %v976 = vunpack.c.l.b16 %v131
    %v977 = vunpack.c.l.b16 %v132
    %v978 = vunpack.c.l.b16 %v133
    %v979 = vunpack.c.l.b16 %v134
    %v980 = vunpack.c.l.b16 %v135
    %v981 = vunpack.c.l.b16 %v136
    %v982 = vunpack.c.l.b16 %v137
    %v983 = vunpack.c.l.b16 %v138
    %v984 = vunpack.c.l.b16 %v139
    %v985 = vunpack.c.l.b16 %v140
    %v986 = vunpack.c.l.b16 %v141
    %v987 = vunpack.c.l.b16 %v142
    %v988 = vunpack.c.l.b16 %v143
    %v989 = vunpack.c.l.b16 %v144
    %v990 = vunpack.c.l.b16 %v145
    %v991 = vunpack.c.l.b16 %v146
    %v992 = vunpack.c.l.b16 %v147
    %v993 = vunpack.c.l.b16 %v148
    %v994 = vunpack.c.l.b16 %v149
    %v995 = vunpack.c.l.b16 %v150
    %v996 = vunpack.c.l.b16 %v151
    %v997 = vunpack.c.l.b16 %v152
    %v998 = vunpack.c.l.b16 %v153
    %v999 = vunpack.c.l.b16 %v154
    %v1000 = vunpack.c.l.b16 %v155
    %v1001 = vunpack.c.l.b16 %v156
    %v1002 = vunpack.c.l.b16 %v157
    %v1003 = vunpack.c.l.b16 %v158
    %v1004 = vunpack.c.l.b16 %v159
    %v1005 = vunpack.c.l.b16 %v160
    %v1006 = vunpack.c.l.b16 %v161
    %v1007 = vunpack.c.l.b16 %v162
    %v1008 = vunpack.c.l.b16 %v163
    %v1009 = vunpack.c.l.b16 %v164
    %v1010 = vunpack.c.l.b16 %v165
    %v1011 = vunpack.c.l.b16 %v166
    %v1012 = vunpack.c.l.b16 %v167
    %v1013 = vunpack.c.l.b16 %v168
    %v1014 = vunpack.c.l.b16 %v169
    %v1015 = vunpack.c.l.b16 %v170
    %v1016 = vunpack.c.l.b16 %v171
    %v1017 = vunpack.c.l.b16 %v172
    %v1018 = vunpack.c.l.b16 %v173
    %v1019 = vunpack.c.l.b16 %v174
    %v1020 = vunpack.c.l.b16 %v175
    %v1021 = vunpack.c.l.b16 %v176
    %v1022 = vunpack.c.l.b16 %v177
    %v1023 = vunpack.c.l.b16 %v178
    %v1024 = vunpack.c.l.b16 %v179
    %v1025 = vunpack.c.l.b16 %v180
    %v1026 = vunpack.c.l.b16 %v181
    %v1027 = vunpack.c.l.b16 %v182
    %v1028 = vunpack.c.l.b16 %v183
    %v1029 = vunpack.c.l.b16 %v184
    %v1030 = vunpack.c.l.b16 %v185
    %v1031 = vunpack.c.l.b16 %v186
    %v1032 = vunpack.c.l.b16 %v187
    %v1033 = vunpack.c.l.b16 %v188
    %v1034 = vunpack.c.l.b16 %v189
    %v1035 = vunpack.c.l.b16 %v190
    %v1036 = vunpack.c.l.b16 %v191
    %v1037 = vunpack.c.l.b16 %v192
    %v1038 = vunpack.c.l.b16 %v193
    %v1039 = vunpack.c.l.b16 %v194
    %v1040 = vunpack.c.l.b16 %v195
    %v1041 = vunpack.c.l.b16 %v196
    %v1042 = vunpack.c.l.b16 %v197
    %v1043 = vunpack.c.l.b16 %v198
    %v1044 = vunpack.c.l.b16 %v199
    %v1045 = vunpack.c.l.b16 %v200
    %v1046 = vunpack.c.l.b16 %v201
    %v1047 = vunpack.c.l.b16 %v202
    %v1048 = vunpack.c.l.b16 %v203
    %v1049 = vunpack.c.l.b16 %v204
    %v1050 = vunpack.c.l.b16 %v205
    %v1051 = vunpack.c.l.b16 %v206
    %v1052 = vunpack.c.l.b16 %v207
    %v1053 = vunpack.c.l.b16 %v208
    %v1054 = vunpack.c.l.b16 %v209
    %v1055 = vunpack.c.l.b16 %v210
    %v1056 = vunpack.c.l.b16 %v211
    %v1057 = vunpack.c.l.b16 %v212
    %v1058 = vunpack.c.l.b16 %v213
    %v1059 = vunpack.c.l.b16 %v214
    %v1060 = vunpack.c.l.b16 %v215
    %v1061 = vunpack.c.l.b16 %v216
    %v1062 = vunpack.c.l.b16 %v217
    %v1063 = vunpack.c.l.b16 %v218
    %v1064 = vunpack.c.l.b16 %v219
    %v1065 = vunpack.c.l.b16 %v220
    %v1066 = vunpack.c.l.b16 %v221
    %v1067 = vunpack.c.l.b16 %v222
    %v1068 = vunpack.c.l.b16 %v223
    %v1069 = vunpack.c.l.b16 %v224
    %v1070 = vunpack.c.l.b16 %v225
    %v1071 = vunpack.c.l.b16 %v226
    %v1072 = vunpack.c.l.b16 %v227
    %v1073 = vunpack.c.l.b16 %v228
    %v1074 = vunpack.c.l.b16 %v229
    %v1075 = vunpack.c.l.b16 %v230
    %v1076 = vunpack.c.l.b16 %v231
    %v1077 = vunpack.c.l.b16 %v232
    %v1078 = vunpack.c.l.b16 %v233
    %v1079 = vunpack.c.l.b16 %v234
    %v1080 = vunpack.c.l.b16 %v235
    %v1081 = vunpack.c.l.b16 %v236
    %v1082 = vunpack.c.l.b16 %v237
    %v1083 = vunpack.c.l.b16 %v238
    %v1084 = vunpack.c.l.b16 %v239
    %v1085 = vunpack.c.l.b16 %v240
    %v1086 = vunpack.c.l.b16 %v241
    %v1087 = vunpack.c.l.b16 %v242
    %v1088 = vunpack.c.l.b16 %v243
    %v1089 = vunpack.c.l.b16 %v244
    %v1090 = vunpack.c.l.b16 %v245
    %v1091 = vunpack.c.l.b16 %v246
    %v1092 = vunpack.c.l.b16 %v247
    %v1093 = vunpack.c.l.b16 %v248
    %v1094 = vunpack.c.l.b16 %v249
    %v1095 = vunpack.c.l.b16 %v250
    %v1096 = vunpack.c.l.b16 %v251
    %v1097 = vunpack.c.l.b16 %v252
    %v1098 = vunpack.c.l.b16 %v253
    %v1099 = vunpack.c.l.b16 %v254
    %v1100 = vunpack.c.l.b16 %v255
    %v1101 = vunpack.c.l.b16 %v256
    %v1102 = vunpack.c.l.b16 %v257
    %v1103 = vunpack.c.l.b16 %v258
    %v1104 = vunpack.c.l.b16 %v259
    %v1105 = vunpack.c.l.b16 %v260
    %v1106 = vunpack.c.l.b16 %v261
    %v1107 = vunpack.c.l.b16 %v262
    %v1108 = vunpack.c.l.b16 %v263
    %v1109 = vunpack.c.l.b16 %v264
    %v1110 = vunpack.c.l.b16 %v265
    %v1111 = vunpack.c.l.b16 %v266
    %v1112 = vunpack.c.l.b16 %v267
    %v1113 = vunpack.c.l.b16 %v268
    %v1114 = vunpack.c.l.b16 %v269
    %v1115 = vunpack.c.l.b16 %v270
    %v1116 = vunpack.c.l.b16 %v271
    %v1117 = vunpack.c.l.b16 %v272
    %v1118 = vunpack.c.l.b16 %v273
    %v1119 = vunpack.c.l.b16 %v274
    %v1120 = vunpack.c.l.b16 %v275
    %v1121 = vunpack.c.l.b16 %v276
    %v1122 = vunpack.c.l.b16 %v277
    %v1123 = vunpack.c.l.b16 %v278
    %v1124 = vunpack.c.l.b16 %v279
    %v1125 = vunpack.c.l.b16 %v280
    %v1126 = vunpack.c.l.b16 %v281
    %v1127 = vunpack.c.l.b16 %v282
    %v1128 = vunpack.c.l.b16 %v283
    %v1129 = vunpack.c.l.b16 %v284
    %v1130 = vunpack.c.l.b16 %v285
    %v1131 = vunpack.c.l.b16 %v286
    %v1132 = vunpack.c.l.b16 %v287
    %v1133 = vunpack.c.l.b16 %v288
    %v1134 = vunpack.c.l.b16 %v289
    %v1135 = vunpack.c.l.b16 %v290
    %v1136 = vunpack.c.l.b16 %v291
    %v1137 = vunpack.c.l.b16 %v292
    %v1138 = vunpack.c.l.b16 %v293
    %v1139 = vunpack.c.l.b16 %v294
    %v1140 = vunpack.c.l.b16 %v295
    %v1141 = vunpack.c.l.b16 %v296
    %v1142 = vunpack.c.l.b16 %v297
    %v1143 = vunpack.c.l.b16 %v298
    %v1144 = vunpack.c.l.b16 %v299
    %v1145 = vunpack.c.l.b16 %v300
    %v1146 = vunpack.c.l.b16 %v301
    %v1147 = vunpack.c.l.b16 %v302
    %v1148 = vunpack.c.l.b16 %v303
    %v1149 = vunpack.c.l.b16 %v304
    %v1150 = vunpack.c.l.b16 %v305
    %v1151 = vunpack.c.l.b16 %v306
    %v1152 = vunpack.c.l.b16 %v307
    %v1153 = vunpack.c.l.b16 %v308
    %v1154 = vunpack.c.l.b16 %v309
    %v1155 = vunpack.c.l.b16 %v310
    %v1156 = vunpack.c.l.b16 %v311
    %v1157 = vunpack.c.l.b16 %v312
    %v1158 = vunpack.c.l.b16 %v313
    %v1159 = vunpack.c.l.b16 %v314
    %v1160 = vunpack.c.l.b16 %v315
    %v1161 = vunpack.c.l.b16 %v316
    %v1162 = vunpack.c.l.b16 %v317
    %v1163 = vunpack.c.l.b16 %v318
    %v1164 = vunpack.c.l.b16 %v319
    %v1165 = vunpack.c.l.b16 %v320
    %v1166 = vunpack.c.l.b16 %v321
    %v1167 = vunpack.c.l.b16 %v322
    %v1168 = vunpack.c.l.b16 %v323
    %v1169 = vunpack.c.l.b16 %v324
    %v1170 = vunpack.c.l.b16 %v325
    %v1171 = vunpack.c.l.b16 %v326
    %v1172 = vunpack.c.l.b16 %v327
    %v1173 = vunpack.c.l.b16 %v328
    %v1174 = vunpack.c.l.b16 %v329
    %v1175 = vunpack.c.l.b16 %v330
    %v1176 = vunpack.c.l.b16 %v331
    %v1177 = vunpack.c.l.b16 %v332
    %v1178 = vunpack.c.l.b16 %v333
    %v1179 = vunpack.c.l.b16 %v334
    %v1180 = vunpack.c.l.b16 %v335
    %v1181 = vunpack.c.l.b16 %v336
    %v1182 = vunpack.c.l.b16 %v337
    %v1183 = vunpack.c.l.b16 %v338
    %v1184 = vunpack.c.l.b16 %v339
    %v1185 = vunpack.c.l.b16 %v340
    %v1186 = vunpack.c.l.b16 %v341
    %v1187 = vunpack.c.l.b16 %v342
    %v1188 = vunpack.c.l.b16 %v343
    %v1189 = vunpack.c.l.b16 %v344
    %v1190 = vunpack.c.l.b16 %v345
    %v1191 = vunpack.c.l.b16 %v346
    %v1192 = vunpack.c.l.b16 %v347
    %v1193 = vunpack.c.l.b16 %v348
    %v1194 = vunpack.c.l.b16 %v349
    %v1195 = vunpack.c.l.b16 %v350
    %v1196 = vunpack.c.l.b16 %v351
    %v1197 = vunpack.c.l.b16 %v352
    %v1198 = vunpack.c.l.b16 %v353
    %v1199 = vunpack.c.l.b16 %v354
    %v1200 = vunpack.c.l.b16 %v355
    %v1201 = vunpack.c.l.b16 %v356
    %v1202 = vunpack.c.l.b16 %v357
    %v1203 = vunpack.c.l.b16 %v358
    %v1204 = vunpack.c.l.b16 %v359
    %v1205 = vunpack.c.l.b16 %v360
    %v1206 = vunpack.c.l.b16 %v361
    %v1207 = vunpack.c.l.b16 %v362
    %v1208 = vunpack.c.l.b16 %v363
    %v1209 = vunpack.c.l.b16 %v364
    %v1210 = vunpack.c.l.b16 %v365
    %v1211 = vunpack.c.l.b16 %v366
    %v1212 = vunpack.c.l.b16 %v367
    %v1213 = vunpack.c.l.b16 %v368
    %v1214 = vunpack.c.l.b16 %v369
    %v1215 = vunpack.c.l.b16 %v370
    %v1216 = vunpack.c.l.b16 %v371
    %v1217 = vunpack.c.l.b16 %v372
    %v1218 = vunpack.c.l.b16 %v373
    %v1219 = vunpack.c.l.b16 %v374
    %v1220 = vunpack.c.l.b16 %v375
    %v1221 = vunpack.c.l.b16 %v376
    %v1222 = vunpack.c.l.b16 %v377
    %v1223 = vunpack.c.l.b16 %v378
    %v1224 = vunpack.c.l.b16 %v379
    %v1225 = vunpack.c.l.b16 %v380
    %v1226 = vunpack.c.l.b16 %v381
    %v1227 = vunpack.c.l.b16 %v382
    %v1228 = vunpack.c.l.b16 %v383
    %v1229 = vunpack.c.l.b16 %v384
    %v1230 = vunpack.c.l.b16 %v385
    %v1231 = vunpack.c.l.b16 %v386
    %v1232 = vunpack.c.l.b16 %v387
    %v1233 = vunpack.c.l.b16 %v388
    %v1234 = vunpack.c.l.b16 %v389
    %v1235 = vunpack.c.l.b16 %v390
    %v1236 = vunpack.c.l.b16 %v391
    %v1237 = vunpack.c.l.b16 %v392
    %v1238 = vunpack.c.l.b16 %v393
    %v1239 = vunpack.c.l.b16 %v394
    %v1240 = vunpack.c.l.b16 %v395
    %v1241 = vunpack.c.l.b16 %v396
    %v1242 = vunpack.c.l.b16 %v397
    %v1243 = vunpack.c.l.b16 %v398
    %v1244 = vunpack.c.l.b16 %v399
    %v1245 = vunpack.c.l.b16 %v400
    %v1246 = vunpack.c.l.b16 %v401
    %v1247 = vunpack.c.l.b16 %v402
    %v1248 = vunpack.c.l.b16 %v403
    %v1249 = vunpack.c.l.b16 %v404
    %v1250 = vunpack.c.l.b16 %v405
    %v1251 = vunpack.c.l.b16 %v406
    %v1252 = vunpack.c.l.b16 %v407
    %v1253 = vunpack.c.l.b16 %v408
    %v1254 = vunpack.c.l.b16 %v409
    %v1255 = vunpack.c.l.b16 %v410
    %v1256 = vunpack.c.l.b16 %v411
    %v1257 = vunpack.c.l.b16 %v412
    %v1258 = vunpack.c.l.b16 %v413
    %v1259 = vunpack.c.l.b16 %v414
    %v1260 = vunpack.c.l.b16 %v415
    %v1261 = vunpack.c.l.b16 %v416
    %v1262 = vunpack.c.l.b16 %v417
    %v1263 = vpack.c.b16 %v872, %v871
    %v1264 = vpack.c.b16 %v874, %v873
    %v1265 = vpack.c.b16 %v876, %v875
    %v1266 = vpack.c.b16 %v878, %v877
    %v1267 = vpack.c.b16 %v880, %v879
    %v1268 = vpack.c.b16 %v882, %v881
    %v1269 = vpack.c.b16 %v884, %v883
    %v1270 = vpack.c.b16 %v886, %v885
    %v1271 = vpack.c.b16 %v888, %v887
    %v1272 = vpack.c.b16 %v890, %v889
    %v1273 = vpack.c.b16 %v892, %v891
    %v1274 = vpack.c.b16 %v894, %v893
    %v1275 = vpack.c.b16 %v896, %v895
    %v1276 = vpack.c.b16 %v898, %v897
    %v1277 = vpack.c.b16 %v900, %v899
    %v1278 = vpack.c.b16 %v902, %v901
    %v1279 = vpack.c.b16 %v904, %v903
    %v1280 = vpack.c.b16 %v906, %v905
    %v1281 = vpack.c.b16 %v908, %v907
    %v1282 = vpack.c.b16 %v910, %v909
    %v1283 = vpack.c.b16 %v912, %v911
    %v1284 = vpack.c.b16 %v914, %v913
    %v1285 = vpack.c.b16 %v916, %v915
    %v1286 = vpack.c.b16 %v918, %v917
    %v1287 = vpack.c.b16 %v920, %v919
    %v1288 = vpack.c.b16 %v922, %v921
    %v1289 = vpack.c.b16 %v924, %v923
    %v1290 = vpack.c.b16 %v926, %v925
    %v1291 = vpack.c.b16 %v928, %v927
    %v1292 = vpack.c.b16 %v930, %v929
    %v1293 = vpack.c.b16 %v932, %v931
    %v1294 = vpack.c.b16 %v934, %v933
    %v1295 = vpack.c.b16 %v936, %v935
    %v1296 = vpack.c.b16 %v938, %v937
    %v1297 = vpack.c.b16 %v940, %v939
    %v1298 = vpack.c.b16 %v942, %v941
    %v1299 = vpack.c.b16 %v944, %v943
    %v1300 = vpack.c.b16 %v946, %v945
    %v1301 = vpack.c.b16 %v948, %v947
    %v1302 = vpack.c.b16 %v950, %v949
    %v1303 = vpack.c.b16 %v952, %v951
    %v1304 = vpack.c.b16 %v954, %v953
    %v1305 = vpack.c.b16 %v956, %v955
    %v1306 = vpack.c.b16 %v958, %v957
    %v1307 = vpack.c.b16 %v960, %v959
    %v1308 = vpack.c.b16 %v962, %v961
    %v1309 = vpack.c.b16 %v964, %v963
    %v1310 = vpack.c.b16 %v966, %v965
    %v1311 = vpack.c.b16 %v968, %v967
    %v1312 = vpack.c.b16 %v970, %v969
    %v1313 = vpack.c.b16 %v972, %v971
    %v1314 = vpack.c.b16 %v974, %v973
    %v1315 = vpack.c.b16 %v976, %v975
    %v1316 = vpack.c.b16 %v978, %v977
    %v1317 = vpack.c.b16 %v980, %v979
    %v1318 = vpack.c.b16 %v982, %v981
    %v1319 = vpack.c.b16 %v984, %v983
    %v1320 = vpack.c.b16 %v986, %v985
    %v1321 = vpack.c.b16 %v988, %v987
    %v1322 = vpack.c.b16 %v990, %v989
    %v1323 = vpack.c.b16 %v992, %v991
    %v1324 = vpack.c.b16 %v994, %v993
    %v1325 = vpack.c.b16 %v996, %v995
    %v1326 = vpack.c.b16 %v998, %v997
    %v1327 = vpack.c.b16 %v1000, %v999
    %v1328 = vpack.c.b16 %v1002, %v1001
    %v1329 = vpack.c.b16 %v1004, %v1003
    %v1330 = vpack.c.b16 %v1006, %v1005
    %v1331 = vpack.c.b16 %v1008, %v1007
    %v1332 = vpack.c.b16 %v1010, %v1009
    %v1333 = vpack.c.b16 %v1012, %v1011
    %v1334 = vpack.c.b16 %v1014, %v1013
    %v1335 = vpack.c.b16 %v1016, %v1015
    %v1336 = vpack.c.b16 %v1018, %v1017
    %v1337 = vpack.c.b16 %v1020, %v1019
    %v1338 = vpack.c.b16 %v1022, %v1021
    %v1339 = vpack.c.b16 %v1024, %v1023
    %v1340 = vpack.c.b16 %v1026, %v1025
    %v1341 = vpack.c.b16 %v1028, %v1027
    %v1342 = vpack.c.b16 %v1030, %v1029
    %v1343 = vpack.c.b16 %v1032, %v1031
    %v1344 = vpack.c.b16 %v1034, %v1033
    %v1345 = vpack.c.b16 %v1036, %v1035
    %v1346 = vpack.c.b16 %v1038, %v1037
    %v1347 = vpack.c.b16 %v1040, %v1039
    %v1348 = vpack.c.b16 %v1042, %v1041
    %v1349 = vpack.c.b16 %v1044, %v1043
    %v1350 = vpack.c.b16 %v1046, %v1045
    %v1351 = vpack.c.b16 %v1048, %v1047
    %v1352 = vpack.c.b16 %v1050, %v1049
    %v1353 = vpack.c.b16 %v1052, %v1051
    %v1354 = vpack.c.b16 %v1054, %v1053
    %v1355 = vpack.c.b16 %v1056, %v1055
    %v1356 = vpack.c.b16 %v1058, %v1057
    %v1357 = vpack.c.b16 %v1060, %v1059
    %v1358 = vpack.c.b16 %v1062, %v1061
    %v1359 = vpack.c.b16 %v1064, %v1063
    %v1360 = vpack.c.b16 %v1066, %v1065
    %v1361 = vpack.c.b16 %v1068, %v1067
    %v1362 = vpack.c.b16 %v1070, %v1069
    %v1363 = vpack.c.b16 %v1072, %v1071
    %v1364 = vpack.c.b16 %v1074, %v1073
    %v1365 = vpack.c.b16 %v1076, %v1075
    %v1366 = vpack.c.b16 %v1078, %v1077
    %v1367 = vpack.c.b16 %v1080, %v1079
    %v1368 = vpack.c.b16 %v1082, %v1081
    %v1369 = vpack.c.b16 %v1084, %v1083
    %v1370 = vpack.c.b16 %v1086, %v1085
    %v1371 = vpack.c.b16 %v1088, %v1087
    %v1372 = vpack.c.b16 %v1090, %v1089
    %v1373 = vpack.c.b16 %v1092, %v1091
    %v1374 = vpack.c.b16 %v1094, %v1093
    %v1375 = vpack.c.b16 %v1096, %v1095
    %v1376 = vpack.c.b16 %v1098, %v1097
    %v1377 = vpack.c.b16 %v1100, %v1099
    %v1378 = vpack.c.b16 %v1102, %v1101
    %v1379 = vpack.c.b16 %v1104, %v1103
    %v1380 = vpack.c.b16 %v1106, %v1105
    %v1381 = vpack.c.b16 %v1108, %v1107
    %v1382 = vpack.c.b16 %v1110, %v1109
    %v1383 = vpack.c.b16 %v1112, %v1111
    %v1384 = vpack.c.b16 %v1114, %v1113
    %v1385 = vpack.c.b16 %v1116, %v1115
    %v1386 = vpack.c.b16 %v1118, %v1117
    %v1387 = vpack.c.b16 %v1120, %v1119
    %v1388 = vpack.c.b16 %v1122, %v1121
    %v1389 = vpack.c.b16 %v1124, %v1123
    %v1390 = vpack.c.b16 %v1126, %v1125
    %v1391 = vpack.c.b16 %v1128, %v1127
    %v1392 = vpack.c.b16 %v1130, %v1129
    %v1393 = vpack.c.b16 %v1132, %v1131
    %v1394 = vpack.c.b16 %v1134, %v1133
    %v1395 = vpack.c.b16 %v1136, %v1135
    %v1396 = vpack.c.b16 %v1138, %v1137
    %v1397 = vpack.c.b16 %v1140, %v1139
    %v1398 = vpack.c.b16 %v1142, %v1141
    %v1399 = vpack.c.b16 %v1144, %v1143
    %v1400 = vpack.c.b16 %v1146, %v1145
    %v1401 = vpack.c.b16 %v1148, %v1147
    %v1402 = vpack.c.b16 %v1150, %v1149
    %v1403 = vpack.c.b16 %v1152, %v1151
    %v1404 = vpack.c.b16 %v1154, %v1153
    %v1405 = vpack.c.b16 %v1156, %v1155
    %v1406 = vpack.c.b16 %v1158, %v1157
    %v1407 = vpack.c.b16 %v1160, %v1159
    %v1408 = vpack.c.b16 %v1162, %v1161
    %v1409 = vpack.c.b16 %v1164, %v1163
    %v1410 = vpack.c.b16 %v1166, %v1165
    %v1411 = vpack.c.b16 %v1168, %v1167
    %v1412 = vpack.c.b16 %v1170, %v1169
    %v1413 = vpack.c.b16 %v1172, %v1171
    %v1414 = vpack.c.b16 %v1174, %v1173
    %v1415 = vpack.c.b16 %v1176, %v1175
    %v1416 = vpack.c.b16 %v1178, %v1177
    %v1417 = vpack.c.b16 %v1180, %v1179
    %v1418 = vpack.c.b16 %v1182, %v1181
    %v1419 = vpack.c.b16 %v1184, %v1183
    %v1420 = vpack.c.b16 %v1186, %v1185
    %v1421 = vpack.c.b16 %v1188, %v1187
    %v1422 = vpack.c.b16 %v1190, %v1189
    %v1423 = vpack.c.b16 %v1192, %v1191
    %v1424 = vpack.c.b16 %v1194, %v1193
    %v1425 = vpack.c.b16 %v1196, %v1195
    %v1426 = vpack.c.b16 %v1198, %v1197
    %v1427 = vpack.c.b16 %v1200, %v1199
    %v1428 = vpack.c.b16 %v1202, %v1201
    %v1429 = vpack.c.b16 %v1204, %v1203
    %v1430 = vpack.c.b16 %v1206, %v1205
    %v1431 = vpack.c.b16 %v1208, %v1207
    %v1432 = vpack.c.b16 %v1210, %v1209
    %v1433 = vpack.c.b16 %v1212, %v1211
    %v1434 = vpack.c.b16 %v1214, %v1213
    %v1435 = vpack.c.b16 %v1216, %v1215
    %v1436 = vpack.c.b16 %v1218, %v1217
    %v1437 = vpack.c.b16 %v1220, %v1219
    %v1438 = vpack.c.b16 %v1222, %v1221
    %v1439 = vpack.c.b16 %v1224, %v1223
    %v1440 = vpack.c.b16 %v1226, %v1225
    %v1441 = vpack.c.b16 %v1228, %v1227
    %v1442 = vpack.c.b16 %v1230, %v1229
    %v1443 = vpack.c.b16 %v1232, %v1231
    %v1444 = vpack.c.b16 %v1234, %v1233
    %v1445 = vpack.c.b16 %v1236, %v1235
    %v1446 = vpack.c.b16 %v1238, %v1237
    %v1447 = vpack.c.b16 %v1240, %v1239
    %v1448 = vpack.c.b16 %v1242, %v1241
    %v1449 = vpack.c.b16 %v1244, %v1243
    %v1450 = vpack.c.b16 %v1246, %v1245
    %v1451 = vpack.c.b16 %v1248, %v1247
    %v1452 = vpack.c.b16 %v1250, %v1249
    %v1453 = vpack.c.b16 %v1252, %v1251
    %v1454 = vpack.c.b16 %v1254, %v1253
    %v1455 = vpack.c.b16 %v1256, %v1255
    %v1456 = vpack.c.b16 %v1258, %v1257
    %v1457 = vpack.c.b16 %v1260, %v1259
    %v1458 = vpack.c.b16 %v1262, %v1261
    %vm1655 = vcmask 523264
    %v1656 = vsel %vm1655, %v454, 0
    %1658 = vmatpush.bf16.msra.mxu0 %v1270
    %1659 = vmatpush.bf16.msra.mxu0 %v1269
    %1660 = vmatpush.bf16.msra.mxu0 %v1268
    %1661 = vmatpush.bf16.msra.mxu0 %v1267
    %1662 = vmatpush.bf16.msra.mxu0 %v1266
    %1663 = vmatpush.bf16.msra.mxu0 %v1265
    %1664 = vmatpush.bf16.msra.mxu0 %v1264
    %1665 = vmatpush.bf16.msra.mxu0 %v1263
    %1666 = vmatmul.bf16.gmra.mxu0 %v424
    %v1667 = vpop.f32.mrf.mxu0
    %v1668 = vadd.f32 %v420, %v1667
    %v1669 = vpop.f32.mrf.mxu0
    %1670 = vdwg.mxu0
    %1671 = vmatpush.bf16.msra.mxu0 %v1278
    %1672 = vmatpush.bf16.msra.mxu0 %v1277
    %1673 = vmatpush.bf16.msra.mxu0 %v1276
    %1674 = vmatpush.bf16.msra.mxu0 %v1275
    %1675 = vmatpush.bf16.msra.mxu0 %v1274
    %1676 = vmatpush.bf16.msra.mxu0 %v1273
    %1677 = vmatpush.bf16.msra.mxu0 %v1272
    %1678 = vmatpush.bf16.msra.mxu0 %v1271
    %1679 = vmatmul.bf16.gmra.mxu0 %v425
    %v1680 = vpop.f32.mrf.mxu0
    %v1681 = vadd.f32 %v1668, %v1680
    %v1682 = vpop.f32.mrf.mxu0
    %1683 = vdwg.mxu0
    %1684 = vmatpush.bf16.msra.mxu0 %v1286
    %1685 = vmatpush.bf16.msra.mxu0 %v1285
    %1686 = vmatpush.bf16.msra.mxu0 %v1284
    %1687 = vmatpush.bf16.msra.mxu0 %v1283
    %1688 = vmatpush.bf16.msra.mxu0 %v1282
    %1689 = vmatpush.bf16.msra.mxu0 %v1281
    %1690 = vmatpush.bf16.msra.mxu0 %v1280
    %1691 = vmatpush.bf16.msra.mxu0 %v1279
    %1692 = vmatmul.bf16.gmra.mxu0 %v426
    %v1693 = vpop.f32.mrf.mxu0
    %v1694 = vadd.f32 %v1681, %v1693
    %v1695 = vpop.f32.mrf.mxu0
    %1696 = vdwg.mxu0
    %1697 = vmatpush.bf16.msra.mxu0 %v1294
    %1698 = vmatpush.bf16.msra.mxu0 %v1293
    %1699 = vmatpush.bf16.msra.mxu0 %v1292
    %1700 = vmatpush.bf16.msra.mxu0 %v1291
    %1701 = vmatpush.bf16.msra.mxu0 %v1290
    %1702 = vmatpush.bf16.msra.mxu0 %v1289
    %1703 = vmatpush.bf16.msra.mxu0 %v1288
    %1704 = vmatpush.bf16.msra.mxu0 %v1287
    %1705 = vmatmul.bf16.gmra.mxu0 %v427
    %v1706 = vpop.f32.mrf.mxu0
    %v1707 = vadd.f32 %v1694, %v1706
    %v1708 = vpop.f32.mrf.mxu0
    %1709 = vdwg.mxu0
    %1710 = vmatpush.bf16.msra.mxu0 %v1302
    %1711 = vmatpush.bf16.msra.mxu0 %v1301
    %1712 = vmatpush.bf16.msra.mxu0 %v1300
    %1713 = vmatpush.bf16.msra.mxu0 %v1299
    %1714 = vmatpush.bf16.msra.mxu0 %v1298
    %1715 = vmatpush.bf16.msra.mxu0 %v1297
    %1716 = vmatpush.bf16.msra.mxu0 %v1296
    %1717 = vmatpush.bf16.msra.mxu0 %v1295
    %1718 = vmatmul.bf16.gmra.mxu0 %v428
    %v1719 = vpop.f32.mrf.mxu0
    %v1720 = vadd.f32 %v1707, %v1719
    %v1721 = vpop.f32.mrf.mxu0
    %1722 = vdwg.mxu0
    %1723 = vmatpush.bf16.msra.mxu0 %v1310
    %1724 = vmatpush.bf16.msra.mxu0 %v1309
    %1725 = vmatpush.bf16.msra.mxu0 %v1308
    %1726 = vmatpush.bf16.msra.mxu0 %v1307
    %1727 = vmatpush.bf16.msra.mxu0 %v1306
    %1728 = vmatpush.bf16.msra.mxu0 %v1305
    %1729 = vmatpush.bf16.msra.mxu0 %v1304
    %1730 = vmatpush.bf16.msra.mxu0 %v1303
    %1731 = vmatmul.bf16.gmra.mxu0 %v429
    %v1732 = vpop.f32.mrf.mxu0
    %v1733 = vadd.f32 %v1720, %v1732
    %v1734 = vpop.f32.mrf.mxu0
    %1735 = vdwg.mxu0
    %1736 = vmatpush.bf16.msra.mxu0 %v1318
    %1737 = vmatpush.bf16.msra.mxu0 %v1317
    %1738 = vmatpush.bf16.msra.mxu0 %v1316
    %1739 = vmatpush.bf16.msra.mxu0 %v1315
    %1740 = vmatpush.bf16.msra.mxu0 %v1314
    %1741 = vmatpush.bf16.msra.mxu0 %v1313
    %1742 = vmatpush.bf16.msra.mxu0 %v1312
    %1743 = vmatpush.bf16.msra.mxu0 %v1311
    %1744 = vmatmul.bf16.gmra.mxu0 %v430
    %v1745 = vpop.f32.mrf.mxu0
    %v1746 = vadd.f32 %v1733, %v1745
    %v1747 = vpop.f32.mrf.mxu0
    %1748 = vdwg.mxu0
    %1749 = vmatpush.bf16.msra.mxu0 %v1326
    %1750 = vmatpush.bf16.msra.mxu0 %v1325
    %1751 = vmatpush.bf16.msra.mxu0 %v1324
    %1752 = vmatpush.bf16.msra.mxu0 %v1323
    %1753 = vmatpush.bf16.msra.mxu0 %v1322
    %1754 = vmatpush.bf16.msra.mxu0 %v1321
    %1755 = vmatpush.bf16.msra.mxu0 %v1320
    %1756 = vmatpush.bf16.msra.mxu0 %v1319
    %1757 = vmatmul.bf16.gmra.mxu0 %v431
    %v1758 = vpop.f32.mrf.mxu0
    %v1759 = vadd.f32 %v1746, %v1758
    %v1760 = vpop.f32.mrf.mxu0
    %1761 = vdwg.mxu0
    %1762 = vmatpush.bf16.msra.mxu0 %v1334
    %1763 = vmatpush.bf16.msra.mxu0 %v1333
    %1764 = vmatpush.bf16.msra.mxu0 %v1332
    %1765 = vmatpush.bf16.msra.mxu0 %v1331
    %1766 = vmatpush.bf16.msra.mxu0 %v1330
    %1767 = vmatpush.bf16.msra.mxu0 %v1329
    %1768 = vmatpush.bf16.msra.mxu0 %v1328
    %1769 = vmatpush.bf16.msra.mxu0 %v1327
    %1770 = vmatmul.bf16.gmra.mxu0 %v434
    %v1771 = vpop.f32.mrf.mxu0
    %v1772 = vadd.f32 %v1759, %v1771
    %v1773 = vpop.f32.mrf.mxu0
    %1774 = vdwg.mxu0
    %1775 = vmatpush.bf16.msra.mxu0 %v1342
    %1776 = vmatpush.bf16.msra.mxu0 %v1341
    %1777 = vmatpush.bf16.msra.mxu0 %v1340
    %1778 = vmatpush.bf16.msra.mxu0 %v1339
    %1779 = vmatpush.bf16.msra.mxu0 %v1338
    %1780 = vmatpush.bf16.msra.mxu0 %v1337
    %1781 = vmatpush.bf16.msra.mxu0 %v1336
    %1782 = vmatpush.bf16.msra.mxu0 %v1335
    %1783 = vmatmul.bf16.gmra.mxu0 %v435
    %v1784 = vpop.f32.mrf.mxu0
    %v1785 = vadd.f32 %v1772, %v1784
    %v1786 = vpop.f32.mrf.mxu0
    %1787 = vdwg.mxu0
    %1788 = vmatpush.bf16.msra.mxu0 %v1350
    %1789 = vmatpush.bf16.msra.mxu0 %v1349
    %1790 = vmatpush.bf16.msra.mxu0 %v1348
    %1791 = vmatpush.bf16.msra.mxu0 %v1347
    %1792 = vmatpush.bf16.msra.mxu0 %v1346
    %1793 = vmatpush.bf16.msra.mxu0 %v1345
    %1794 = vmatpush.bf16.msra.mxu0 %v1344
    %1795 = vmatpush.bf16.msra.mxu0 %v1343
    %1796 = vmatmul.bf16.gmra.mxu0 %v436
    %v1797 = vpop.f32.mrf.mxu0
    %v1798 = vadd.f32 %v1785, %v1797
    %v1799 = vpop.f32.mrf.mxu0
    %1800 = vdwg.mxu0
    %1801 = vmatpush.bf16.msra.mxu0 %v1358
    %1802 = vmatpush.bf16.msra.mxu0 %v1357
    %1803 = vmatpush.bf16.msra.mxu0 %v1356
    %1804 = vmatpush.bf16.msra.mxu0 %v1355
    %1805 = vmatpush.bf16.msra.mxu0 %v1354
    %1806 = vmatpush.bf16.msra.mxu0 %v1353
    %1807 = vmatpush.bf16.msra.mxu0 %v1352
    %1808 = vmatpush.bf16.msra.mxu0 %v1351
    %1809 = vmatmul.bf16.gmra.mxu0 %v437
    %v1810 = vpop.f32.mrf.mxu0
    %v1811 = vadd.f32 %v1798, %v1810
    %v1812 = vpop.f32.mrf.mxu0
    %1813 = vdwg.mxu0
    %1814 = vmatpush.bf16.msra.mxu0 %v1366
    %1815 = vmatpush.bf16.msra.mxu0 %v1365
    %1816 = vmatpush.bf16.msra.mxu0 %v1364
    %1817 = vmatpush.bf16.msra.mxu0 %v1363
    %1818 = vmatpush.bf16.msra.mxu0 %v1362
    %1819 = vmatpush.bf16.msra.mxu0 %v1361
    %1820 = vmatpush.bf16.msra.mxu0 %v1360
    %1821 = vmatpush.bf16.msra.mxu0 %v1359
    %1822 = vmatmul.bf16.gmra.mxu0 %v438
    %v1823 = vpop.f32.mrf.mxu0
    %v1824 = vadd.f32 %v1811, %v1823
    %v1825 = vpop.f32.mrf.mxu0
    %1826 = vdwg.mxu0
    %1827 = vmatpush.bf16.msra.mxu0 %v1374
    %1828 = vmatpush.bf16.msra.mxu0 %v1373
    %1829 = vmatpush.bf16.msra.mxu0 %v1372
    %1830 = vmatpush.bf16.msra.mxu0 %v1371
    %1831 = vmatpush.bf16.msra.mxu0 %v1370
    %1832 = vmatpush.bf16.msra.mxu0 %v1369
    %1833 = vmatpush.bf16.msra.mxu0 %v1368
    %1834 = vmatpush.bf16.msra.mxu0 %v1367
    %1835 = vmatmul.bf16.gmra.mxu0 %v439
    %v1836 = vpop.f32.mrf.mxu0
    %v1837 = vadd.f32 %v1824, %v1836
    %v1838 = vpop.f32.mrf.mxu0
    %1839 = vdwg.mxu0
    %1840 = vmatpush.bf16.msra.mxu0 %v1382
    %1841 = vmatpush.bf16.msra.mxu0 %v1381
    %1842 = vmatpush.bf16.msra.mxu0 %v1380
    %1843 = vmatpush.bf16.msra.mxu0 %v1379
    %1844 = vmatpush.bf16.msra.mxu0 %v1378
    %1845 = vmatpush.bf16.msra.mxu0 %v1377
    %1846 = vmatpush.bf16.msra.mxu0 %v1376
    %1847 = vmatpush.bf16.msra.mxu0 %v1375
    %1848 = vmatmul.bf16.gmra.mxu0 %v440
    %v1849 = vpop.f32.mrf.mxu0
    %v1850 = vadd.f32 %v1837, %v1849
    %v1851 = vpop.f32.mrf.mxu0
    %1852 = vdwg.mxu0
    %1853 = vmatpush.bf16.msra.mxu0 %v1390
    %1854 = vmatpush.bf16.msra.mxu0 %v1389
    %1855 = vmatpush.bf16.msra.mxu0 %v1388
    %1856 = vmatpush.bf16.msra.mxu0 %v1387
    %1857 = vmatpush.bf16.msra.mxu0 %v1386
    %1858 = vmatpush.bf16.msra.mxu0 %v1385
    %1859 = vmatpush.bf16.msra.mxu0 %v1384
    %1860 = vmatpush.bf16.msra.mxu0 %v1383
    %1861 = vmatmul.bf16.gmra.mxu0 %v441
    %v1862 = vpop.f32.mrf.mxu0
    %v1863 = vadd.f32 %v1850, %v1862
    %v1864 = vpop.f32.mrf.mxu0
    %1865 = vdwg.mxu0
    %1866 = vmatpush.bf16.msra.mxu0 %v1398
    %1867 = vmatpush.bf16.msra.mxu0 %v1397
    %1868 = vmatpush.bf16.msra.mxu0 %v1396
    %1869 = vmatpush.bf16.msra.mxu0 %v1395
    %1870 = vmatpush.bf16.msra.mxu0 %v1394
    %1871 = vmatpush.bf16.msra.mxu0 %v1393
    %1872 = vmatpush.bf16.msra.mxu0 %v1392
    %1873 = vmatpush.bf16.msra.mxu0 %v1391
    %1874 = vmatmul.bf16.gmra.mxu0 %v444
    %v1875 = vpop.f32.mrf.mxu0
    %v1876 = vadd.f32 %v1863, %v1875
    %v1877 = vpop.f32.mrf.mxu0
    %1878 = vdwg.mxu0
    %1879 = vmatpush.bf16.msra.mxu0 %v1406
    %1880 = vmatpush.bf16.msra.mxu0 %v1405
    %1881 = vmatpush.bf16.msra.mxu0 %v1404
    %1882 = vmatpush.bf16.msra.mxu0 %v1403
    %1883 = vmatpush.bf16.msra.mxu0 %v1402
    %1884 = vmatpush.bf16.msra.mxu0 %v1401
    %1885 = vmatpush.bf16.msra.mxu0 %v1400
    %1886 = vmatpush.bf16.msra.mxu0 %v1399
    %1887 = vmatmul.bf16.gmra.mxu0 %v445
    %v1888 = vpop.f32.mrf.mxu0
    %v1889 = vadd.f32 %v1876, %v1888
    %v1890 = vpop.f32.mrf.mxu0
    %1891 = vdwg.mxu0
    %1892 = vmatpush.bf16.msra.mxu0 %v1414
    %1893 = vmatpush.bf16.msra.mxu0 %v1413
    %1894 = vmatpush.bf16.msra.mxu0 %v1412
    %1895 = vmatpush.bf16.msra.mxu0 %v1411
    %1896 = vmatpush.bf16.msra.mxu0 %v1410
    %1897 = vmatpush.bf16.msra.mxu0 %v1409
    %1898 = vmatpush.bf16.msra.mxu0 %v1408
    %1899 = vmatpush.bf16.msra.mxu0 %v1407
    %1900 = vmatmul.bf16.gmra.mxu0 %v446
    %v1901 = vpop.f32.mrf.mxu0
    %v1902 = vadd.f32 %v1889, %v1901
    %v1903 = vpop.f32.mrf.mxu0
    %1904 = vdwg.mxu0
    %1905 = vmatpush.bf16.msra.mxu0 %v1422
    %1906 = vmatpush.bf16.msra.mxu0 %v1421
    %1907 = vmatpush.bf16.msra.mxu0 %v1420
    %1908 = vmatpush.bf16.msra.mxu0 %v1419
    %1909 = vmatpush.bf16.msra.mxu0 %v1418
    %1910 = vmatpush.bf16.msra.mxu0 %v1417
    %1911 = vmatpush.bf16.msra.mxu0 %v1416
    %1912 = vmatpush.bf16.msra.mxu0 %v1415
    %1913 = vmatmul.bf16.gmra.mxu0 %v447
    %v1914 = vpop.f32.mrf.mxu0
    %v1915 = vadd.f32 %v1902, %v1914
    %v1916 = vpop.f32.mrf.mxu0
    %1917 = vdwg.mxu0
    %1918 = vmatpush.bf16.msra.mxu0 %v1430
    %1919 = vmatpush.bf16.msra.mxu0 %v1429
    %1920 = vmatpush.bf16.msra.mxu0 %v1428
    %1921 = vmatpush.bf16.msra.mxu0 %v1427
    %1922 = vmatpush.bf16.msra.mxu0 %v1426
    %1923 = vmatpush.bf16.msra.mxu0 %v1425
    %1924 = vmatpush.bf16.msra.mxu0 %v1424
    %1925 = vmatpush.bf16.msra.mxu0 %v1423
    %1926 = vmatmul.bf16.gmra.mxu0 %v448
    %v1927 = vpop.f32.mrf.mxu0
    %v1928 = vadd.f32 %v1915, %v1927
    %v1929 = vpop.f32.mrf.mxu0
    %1930 = vdwg.mxu0
    %1931 = vmatpush.bf16.msra.mxu0 %v1438
    %1932 = vmatpush.bf16.msra.mxu0 %v1437
    %1933 = vmatpush.bf16.msra.mxu0 %v1436
    %1934 = vmatpush.bf16.msra.mxu0 %v1435
    %1935 = vmatpush.bf16.msra.mxu0 %v1434
    %1936 = vmatpush.bf16.msra.mxu0 %v1433
    %1937 = vmatpush.bf16.msra.mxu0 %v1432
    %1938 = vmatpush.bf16.msra.mxu0 %v1431
    %1939 = vmatmul.bf16.gmra.mxu0 %v449
    %v1940 = vpop.f32.mrf.mxu0
    %v1941 = vadd.f32 %v1928, %v1940
    %v1942 = vpop.f32.mrf.mxu0
    %1943 = vdwg.mxu0
    %1944 = vmatpush.bf16.msra.mxu0 %v1446
    %1945 = vmatpush.bf16.msra.mxu0 %v1445
    %1946 = vmatpush.bf16.msra.mxu0 %v1444
    %1947 = vmatpush.bf16.msra.mxu0 %v1443
    %1948 = vmatpush.bf16.msra.mxu0 %v1442
    %1949 = vmatpush.bf16.msra.mxu0 %v1441
    %1950 = vmatpush.bf16.msra.mxu0 %v1440
    %1951 = vmatpush.bf16.msra.mxu0 %v1439
    %1952 = vmatmul.bf16.gmra.mxu0 %v450
    %v1953 = vpop.f32.mrf.mxu0
    %v1954 = vadd.f32 %v1941, %v1953
    %v1955 = vpop.f32.mrf.mxu0
    %1956 = vdwg.mxu0
    %1957 = vmatpush.bf16.msra.mxu0 %v1454
    %1958 = vmatpush.bf16.msra.mxu0 %v1453
    %1959 = vmatpush.bf16.msra.mxu0 %v1452
    %1960 = vmatpush.bf16.msra.mxu0 %v1451
    %1961 = vmatpush.bf16.msra.mxu0 %v1450
    %1962 = vmatpush.bf16.msra.mxu0 %v1449
    %1963 = vmatpush.bf16.msra.mxu0 %v1448
    %1964 = vmatpush.bf16.msra.mxu0 %v1447
    %1965 = vmatmul.bf16.gmra.mxu0 %v451
    %v1966 = vpop.f32.mrf.mxu0
    %v1967 = vadd.f32 %v1954, %v1966
    %v1968 = vpop.f32.mrf.mxu0
    %1969 = vdwg.mxu0
    %1970 = vmatpush.bf16.msra.mxu0 0
    %1971 = vmatpush.bf16.msra.mxu0 0
    %1972 = vmatpush.bf16.msra.mxu0 0
    %1973 = vmatpush.bf16.msra.mxu0 0
    %1974 = vmatpush.bf16.msra.mxu0 %v1458
    %1975 = vmatpush.bf16.msra.mxu0 %v1457
    %1976 = vmatpush.bf16.msra.mxu0 %v1456
    %1977 = vmatpush.bf16.msra.mxu0 %v1455
    %1978 = vmatmul.bf16.gmra.mxu0 %v1656
    %v1979 = vpop.f32.mrf.mxu0
    %v1980 = vadd.f32 %v1967, %v1979
    %v1981 = vpop.f32.mrf.mxu0
    %1982 = vdwg.mxu0
    %v1983 = vmax.f32 %v1980, 0.0
    %v1984 = vpack.c.bf16 %v1983, %v1983
    %v1985 = vld [vmem:[%s3] sm:$0xf]
    %v1986 = vld [vmem:[%s3 + $0x4] sm:$0xf]
    %v1987 = vld [vmem:[%s3 + $0x8] sm:$0xf]
    %v1988 = vld [vmem:[%s3 + $0xc] sm:$0xf]
    %v1989 = vld [vmem:[%s3 + $0x10] sm:$0xf]
    %v1990 = vld [vmem:[%s3 + $0x14] sm:$0xf]
    %v1991 = vld [vmem:[%s3 + $0x18] sm:$0xf]
    %v1992 = vld [vmem:[%s3 + $0x1c] sm:$0xf]
    %v1993 = vld [vmem:[%s3 + $0x20] sm:$0xf]
    %v1994 = vld [vmem:[%s3 + $0x24] sm:$0xf]
    %v1995 = vld [vmem:[%s3 + $0x28] sm:$0xf]
    %v1996 = vld [vmem:[%s3 + $0x2c] sm:$0xf]
    %v1997 = vld [vmem:[%s3 + $0x30] sm:$0xf]
    %v1998 = vld [vmem:[%s3 + $0x34] sm:$0xf]
    %v1999 = vld [vmem:[%s3 + $0x38] sm:$0xf]
    %v2000 = vld [vmem:[%s3 + $0x3c] sm:$0xf]
    %v2001 = vld [vmem:[%s4] sm:$0x1]
    %v2003 = vperm.slane %v2001, 0
    %v2021 = vunpack.c.l.b16 %v1985
    %v2022 = vunpack.c.l.b16 %v1986
    %v2023 = vunpack.c.l.b16 %v1987
    %v2024 = vunpack.c.l.b16 %v1988
    %v2025 = vunpack.c.l.b16 %v1989
    %v2026 = vunpack.c.l.b16 %v1990
    %v2027 = vunpack.c.l.b16 %v1991
    %v2028 = vunpack.c.l.b16 %v1992
    %v2029 = vunpack.c.l.b16 %v1993
    %v2030 = vunpack.c.l.b16 %v1994
    %v2031 = vunpack.c.l.b16 %v1995
    %v2032 = vunpack.c.l.b16 %v1996
    %v2033 = vunpack.c.l.b16 %v1997
    %v2034 = vunpack.c.l.b16 %v1998
    %v2035 = vunpack.c.l.b16 %v1999
    %v2036 = vunpack.c.l.b16 %v2000
    %v2037 = vpack.c.b16 %v2022, %v2021
    %v2038 = vpack.c.b16 %v2024, %v2023
    %v2039 = vpack.c.b16 %v2026, %v2025
    %v2040 = vpack.c.b16 %v2028, %v2027
    %v2041 = vpack.c.b16 %v2030, %v2029
    %v2042 = vpack.c.b16 %v2032, %v2031
    %v2043 = vpack.c.b16 %v2034, %v2033
    %v2044 = vpack.c.b16 %v2036, %v2035
    %2053 = vmatpush.bf16.msra.mxu0 %v2044
    %2054 = vmatpush.bf16.msra.mxu0 %v2043
    %2055 = vmatpush.bf16.msra.mxu0 %v2042
    %2056 = vmatpush.bf16.msra.mxu0 %v2041
    %2057 = vmatpush.bf16.msra.mxu0 %v2040
    %2058 = vmatpush.bf16.msra.mxu0 %v2039
    %2059 = vmatpush.bf16.msra.mxu0 %v2038
    %2060 = vmatpush.bf16.msra.mxu0 %v2037
    %2061 = vmatmul.bf16.gmra.mxu0 %v1984
    %v2062 = vpop.f32.mrf.mxu0
    %v2063 = vadd.f32 %v2003, %v2062
    %v2064 = vpop.f32.mrf.mxu0
    %2065 = vdwg.mxu0
    %vm2066 = vcmask 74752
    %2067 = vst.msk [vmem:[#allocation2] sm:$0x3] %vm2066, %v2063
    // Predicated region
    $region22: #{cnn_forward.5} parent=1 // pred_check
      _
    $region23: #{cnn_forward.5} parent=1 // pred_check_branch
      %2069 = sbr.rel (0) target = $region25
    $region24: #{cnn_forward.5} parent=1 // pred_region
      %2071 = vsyncadd [#allocation3], 0
      %s2073 = sshll.u32 [#allocation2], 4
      %s2074 = int_to_ptr.vmem [resolvable:$true] %s2073
      %s2075 = sshll.u32 %s5, 4
      %s2076 = int_to_ptr.hbm [resolvable:$true] %s2075
      %2078 = dma.vmem_to_hbm [thread:$0]  %s2074, 32, %s2076, [#allocation3]
    $region25: #{cnn_forward.5} parent=1 // pred_fallthru
      _
    // Predicated region
    $region26: #{cnn_forward.5} parent=1 // pred_check
      _
    $region27: #{cnn_forward.5} parent=1 // pred_check_branch
      %2080 = sbr.rel (0) target = $region29
    $region28: #{cnn_forward.5} parent=1 // pred_region
      %2082 = dma.done [#allocation3], 32
    $region29: #{cnn_forward.5} parent=1 // pred_fallthru
      _
    %2083 = vsyncpa [#allocation3], 1

</llo_original>
